<compile_context>
chip_gen: v7x
topology: tpu7x:2x2x1
jax: 0.10.0
libtpu: 0.0.40
codegen_flags: <defaults>
</compile_context>

<pallas_src>
import math

import jax
import jax.numpy as jnp
from jax.experimental import pallas as pl
from jax.experimental.pallas import tpu as pltpu

SEQ = 8             # tokens per text (<= max_length=128 in the reference)
HID = 32            # hidden size (768 in bert-base)
NHEAD = 4           # attention heads
HEAD = HID // NHEAD
FFN = 64            # intermediate size
VOCAB = 128         # padded to a full lane group
NLAYERS = 2
NTEXT = 2           # both texts packed into one activation tile
ROWS = NTEXT * SEQ  # 16 sublanes (SEQ is a multiple of 8 -> tile-boundary reshapes)
LN_EPS = 1e-12      # BERT LayerNorm epsilon
COS_EPS = 1e-8      # nn.CosineSimilarity eps
SCALE = 1.0 / math.sqrt(HEAD)

VPAD = 128          # lane width used for the packed bias/LN vector operand
NGLOBAL = 3         # packed-vector rows 0..2: emb LN gamma, emb LN beta, pooler bias
V_EMB_G, V_EMB_B, V_POOL_B = 0, 1, 2
LROWS = 8           # packed rows per layer
R_BQKV, R_BO, R_LN1G, R_LN1B, R_B1, R_B2, R_LN2G, R_LN2B = range(LROWS)


# ----------------------------- in-kernel helpers -----------------------------

def _layernorm(x, gamma, beta):
    mu = jnp.mean(x, axis=-1, keepdims=True)
    var = jnp.mean((x - mu) ** 2, axis=-1, keepdims=True)
    return (x - mu) * jax.lax.rsqrt(var + LN_EPS) * gamma + beta


# ------------------------------- fused kernel --------------------------------

def similarity_kernel(ids_ref,       # SMEM (ROWS,) int32 token ids (both texts)
                      wemb_ref,      # (VOCAB, HID) word-embedding table
                      pos_ref,       # (ROWS, HID) pos + token-type embeddings
                      wqkv_ref,      # (NLAYERS, HID, 3*HID) fused QKV weight
                      wo_ref,        # (NLAYERS, HID, HID)
                      w1_ref,        # (NLAYERS, HID, FFN)
                      w2_ref,        # (NLAYERS, FFN, HID)
                      vecs_ref,      # (NGLOBAL + LROWS*NLAYERS, VPAD) packed vectors
                      pw_ref,        # (HID, HID) pooler weight
                      sim_ref):      # out: (1, 1) cosine similarity
    vecs = vecs_ref[...]

    def vrow(i, n):                  # row i of the packed-vector operand, first n lanes
        return vecs[i:i + 1, :n]

    # ---- embedding: one-hot built from SMEM ids -> MXU gather -> +pos -> LayerNorm ----
    sub = jax.lax.broadcasted_iota(jnp.int32, (ROWS, VOCAB), 0)
    lane = jax.lax.broadcasted_iota(jnp.int32, (ROWS, VOCAB), 1)
    onehot = jnp.zeros((ROWS, VOCAB), jnp.float32)
    for r in range(ROWS):
        onehot = jnp.where((sub == r) & (lane == ids_ref[r]), 1.0, onehot)
    emb = jnp.dot(onehot, wemb_ref[...],
                  preferred_element_type=jnp.float32) + pos_ref[...]
    x = _layernorm(emb, vrow(V_EMB_G, HID), vrow(V_EMB_B, HID))

    # ---- NLAYERS encoder layers, fully unrolled, weights all resident ----
    for l in range(NLAYERS):
        base = NGLOBAL + l * LROWS

        # fused QKV projection: one MXU push, 3x wider N; scale already folded into Q.
        qkv = (jnp.dot(x, wqkv_ref[l], preferred_element_type=jnp.float32)
               + vrow(base + R_BQKV, 3 * HID))                     # (ROWS, 3*HID)
        qkv3 = qkv.reshape(NTEXT, SEQ, 3 * HID)                    # tile-boundary split

        def to_heads(off):
            # (NTEXT, SEQ, 3*HID) -> (NTEXT*NHEAD, SEQ, HEAD); batch index = h*NTEXT + b
            return jnp.concatenate(
                [qkv3[:, :, off + h * HEAD: off + (h + 1) * HEAD]
                 for h in range(NHEAD)], axis=0)

        q3 = to_heads(0)
        k3 = to_heads(HID)
        v3 = to_heads(2 * HID)

        # batched attention over (text, head)
        s = jnp.einsum('bqd,bkd->bqk', q3, k3, preferred_element_type=jnp.float32)
        s = s - jnp.max(s, axis=-1, keepdims=True)
        e = jnp.exp(s)
        p = e * pl.reciprocal(jnp.sum(e, axis=-1, keepdims=True), approx=True)
        o3 = jnp.einsum('bqk,bkd->bqd', p, v3, preferred_element_type=jnp.float32)

        # merge heads: leading-axis slices + one lane concat + tile-boundary reshape
        attn = jnp.concatenate(
            [o3[h * NTEXT:(h + 1) * NTEXT] for h in range(NHEAD)],
            axis=-1).reshape(ROWS, HID)
        attn = (jnp.dot(attn, wo_ref[l], preferred_element_type=jnp.float32)
                + vrow(base + R_BO, HID))
        h1 = _layernorm(x + attn, vrow(base + R_LN1G, HID), vrow(base + R_LN1B, HID))

        ff = jnp.dot(h1, w1_ref[l], preferred_element_type=jnp.float32) + vrow(base + R_B1, FFN)
        ff = jax.nn.gelu(ff, approximate=True)   # TODO(synk): HF BERT uses exact erf GELU
        ff = jnp.dot(ff, w2_ref[l], preferred_element_type=jnp.float32) + vrow(base + R_B2, HID)
        x = _layernorm(h1 + ff, vrow(base + R_LN2G, HID), vrow(base + R_LN2B, HID))

    # ---- BertPooler on the two CLS rows only + cosine similarity ----
    cls = jnp.concatenate([x[0:1, :], x[SEQ:SEQ + 1, :]], axis=0)   # (2, HID)
    pooled = jnp.tanh(jnp.dot(cls, pw_ref[...], preferred_element_type=jnp.float32)
                      + vrow(V_POOL_B, HID))
    a = pooled[0:1, :]
    b = pooled[1:2, :]
    dot = jnp.sum(a * b, axis=-1, keepdims=True)
    na = jnp.sqrt(jnp.sum(a * a, axis=-1, keepdims=True))
    nb = jnp.sqrt(jnp.sum(b * b, axis=-1, keepdims=True))
    # torch.nn.CosineSimilarity clamps the *product* of norms with eps.
    sim_ref[...] = dot / jnp.maximum(na * nb, COS_EPS)


# ----------------------------- pallas_call glue -------------------------------

_VMEM = pl.BlockSpec(memory_space=pltpu.MemorySpace.VMEM)
_SMEM = pl.BlockSpec(memory_space=pltpu.MemorySpace.SMEM)

_similarity_call = pl.pallas_call(
    similarity_kernel,
    out_shape=jax.ShapeDtypeStruct((1, 1), jnp.float32),
    in_specs=[_SMEM] + [_VMEM] * 8,   # ids in SMEM; everything else whole-array in VMEM
    out_specs=_VMEM,
)


# -------------------------------- parameters ----------------------------------

def init_params(key):
    kit = iter(jax.random.split(key, 48))

    def dense(shape, scale=0.02):
        return (scale * jax.random.normal(next(kit), shape)).astype(jnp.float32)

    def vec(n, base=0.0, scale=0.02):
        return (base + scale * jax.random.normal(next(kit), (n,))).astype(jnp.float32)

    word_emb = dense((VOCAB, HID))
    # position + token-type embeddings, pre-tiled for the two packed sequences.
    pos_type = jnp.tile(dense((SEQ, HID)) + dense((1, HID)), (NTEXT, 1))

    # Fused QKV weight; 1/sqrt(HEAD) folded into the Q weight (and Q bias) columns.
    wq = dense((NLAYERS, HID, HID)) * SCALE
    wk = dense((NLAYERS, HID, HID))
    wv = dense((NLAYERS, HID, HID))
    wqkv = jnp.concatenate([wq, wk, wv], axis=-1)          # (NLAYERS, HID, 3*HID)
    wo = dense((NLAYERS, HID, HID))
    w1 = dense((NLAYERS, HID, FFN))
    w2 = dense((NLAYERS, FFN, HID))
    pool_w = dense((HID, HID))

    def row(v):
        v = v.reshape(1, -1)
        return jnp.pad(v, ((0, 0), (0, VPAD - v.shape[-1])))

    rows = [row(vec(HID, base=1.0)),           # 0: embedding LayerNorm gamma
            row(vec(HID)),                     # 1: embedding LayerNorm beta
            row(vec(HID))]                     # 2: pooler bias
    for _ in range(NLAYERS):
        bq = vec(HID) * SCALE                  # same folded scale as wq
        bk, bv = vec(HID), vec(HID)
        rows += [row(jnp.concatenate([bq, bk, bv])),         # fused QKV bias
                 row(vec(HID)),                              # attention output bias
                 row(vec(HID, base=1.0)), row(vec(HID)),     # post-attention LN g, b
                 row(vec(FFN)),                              # FFN bias 1
                 row(vec(HID)),                              # FFN bias 2
                 row(vec(HID, base=1.0)), row(vec(HID))]     # post-FFN LN g, b
    vecs = jnp.concatenate(rows, axis=0)                     # (NGLOBAL + 8*NLAYERS, 128)

    return dict(word_emb=word_emb, pos_type=pos_type, wqkv=wqkv, wo=wo,
                w1=w1, w2=w2, vecs=vecs, pool_w=pool_w)


# ------------------------------- forward pass ----------------------------------

@jax.jit
def text_similarity(tokens_a, tokens_b, params):
    """Pre-tokenized int32 ids [SEQ] x2 -> scalar cosine similarity (mirrors .item())."""
    ids = jnp.concatenate([tokens_a, tokens_b], axis=0).astype(jnp.int32)   # (ROWS,)
    sim = _similarity_call(
        ids, params["word_emb"], params["pos_type"],
        params["wqkv"], params["wo"], params["w1"], params["w2"],
        params["vecs"], params["pool_w"])
    return sim[0, 0]


# ------------------------------------ main --------------------------------------

if __name__ == "__main__":
    key = jax.random.PRNGKey(0)
    k_params, k_a, k_b = jax.random.split(key, 3)
    params = init_params(k_params)

    # Pre-tokenized inputs (the tokenizer itself is not translatable).
    tokens_a = jax.random.randint(k_a, (SEQ,), 0, VOCAB, dtype=jnp.int32)
    tokens_b = jax.random.randint(k_b, (SEQ,), 0, VOCAB, dtype=jnp.int32)

    score = text_similarity(tokens_a, tokens_b, params)
    score = jax.block_until_ready(score)
    assert jnp.isfinite(score)
    assert -1.0001 <= float(score) <= 1.0001
    print("KERNEL_OK")
</pallas_src>

<mosaic_0001>
module attributes {stable_mosaic.version = 11 : i64} {
  func.func @similarity_kernel(%arg0: memref<16xi32, #tpu.memory_space<smem>>, %arg1: memref<128x32xf32, #tpu.memory_space<vmem>>, %arg2: memref<16x32xf32, #tpu.memory_space<vmem>>, %arg3: memref<2x32x96xf32, #tpu.memory_space<vmem>>, %arg4: memref<2x32x32xf32, #tpu.memory_space<vmem>>, %arg5: memref<2x32x64xf32, #tpu.memory_space<vmem>>, %arg6: memref<2x64x32xf32, #tpu.memory_space<vmem>>, %arg7: memref<19x128xf32, #tpu.memory_space<vmem>>, %arg8: memref<32x32xf32, #tpu.memory_space<vmem>>, %arg9: memref<1x1xf32, #tpu.memory_space<vmem>>) attributes {dimension_semantics = [], scalar_prefetch = 0 : i64, scratch_operands = 0 : i64, tpu.core_type = #tpu.core_type<tc>} {
    %c0 = arith.constant 0 : index
    %c0_0 = arith.constant 0 : index
    %0 = vector.load %arg7[%c0, %c0_0] : memref<19x128xf32, #tpu.memory_space<vmem>>, vector<19x128xf32>
    %1 = tpu.iota {dimensions = array<i32: 0>} : vector<16x128xi32>
    %2 = tpu.iota {dimensions = array<i32: 1>} : vector<16x128xi32>
    %cst = arith.constant 0.000000e+00 : f32
    %3 = vector.broadcast %cst : f32 to vector<16x128xf32>
    %c0_i32 = arith.constant 0 : i32
    %4 = vector.broadcast %c0_i32 : i32 to vector<16x128xi32>
    %5 = arith.cmpi eq, %1, %4 : vector<16x128xi32>
    %c0_1 = arith.constant 0 : index
    %6 = memref.load %arg0[%c0_1] : memref<16xi32, #tpu.memory_space<smem>>
    %7 = vector.broadcast %6 : i32 to vector<16x128xi32>
    %8 = arith.cmpi eq, %2, %7 : vector<16x128xi32>
    %9 = arith.andi %5, %8 : vector<16x128xi1>
    %cst_2 = arith.constant 1.000000e+00 : f32
    %10 = vector.broadcast %cst_2 : f32 to vector<16x128xf32>
    %11 = arith.select %9, %10, %3 : vector<16x128xi1>, vector<16x128xf32>
    %c1_i32 = arith.constant 1 : i32
    %12 = vector.broadcast %c1_i32 : i32 to vector<16x128xi32>
    %13 = arith.cmpi eq, %1, %12 : vector<16x128xi32>
    %c1 = arith.constant 1 : index
    %14 = memref.load %arg0[%c1] : memref<16xi32, #tpu.memory_space<smem>>
    %15 = vector.broadcast %14 : i32 to vector<16x128xi32>
    %16 = arith.cmpi eq, %2, %15 : vector<16x128xi32>
    %17 = arith.andi %13, %16 : vector<16x128xi1>
    %cst_3 = arith.constant 1.000000e+00 : f32
    %18 = vector.broadcast %cst_3 : f32 to vector<16x128xf32>
    %19 = arith.select %17, %18, %11 : vector<16x128xi1>, vector<16x128xf32>
    %c2_i32 = arith.constant 2 : i32
    %20 = vector.broadcast %c2_i32 : i32 to vector<16x128xi32>
    %21 = arith.cmpi eq, %1, %20 : vector<16x128xi32>
    %c2 = arith.constant 2 : index
    %22 = memref.load %arg0[%c2] : memref<16xi32, #tpu.memory_space<smem>>
    %23 = vector.broadcast %22 : i32 to vector<16x128xi32>
    %24 = arith.cmpi eq, %2, %23 : vector<16x128xi32>
    %25 = arith.andi %21, %24 : vector<16x128xi1>
    %cst_4 = arith.constant 1.000000e+00 : f32
    %26 = vector.broadcast %cst_4 : f32 to vector<16x128xf32>
    %27 = arith.select %25, %26, %19 : vector<16x128xi1>, vector<16x128xf32>
    %c3_i32 = arith.constant 3 : i32
    %28 = vector.broadcast %c3_i32 : i32 to vector<16x128xi32>
    %29 = arith.cmpi eq, %1, %28 : vector<16x128xi32>
    %c3 = arith.constant 3 : index
    %30 = memref.load %arg0[%c3] : memref<16xi32, #tpu.memory_space<smem>>
    %31 = vector.broadcast %30 : i32 to vector<16x128xi32>
    %32 = arith.cmpi eq, %2, %31 : vector<16x128xi32>
    %33 = arith.andi %29, %32 : vector<16x128xi1>
    %cst_5 = arith.constant 1.000000e+00 : f32
    %34 = vector.broadcast %cst_5 : f32 to vector<16x128xf32>
    %35 = arith.select %33, %34, %27 : vector<16x128xi1>, vector<16x128xf32>
    %c4_i32 = arith.constant 4 : i32
    %36 = vector.broadcast %c4_i32 : i32 to vector<16x128xi32>
    %37 = arith.cmpi eq, %1, %36 : vector<16x128xi32>
    %c4 = arith.constant 4 : index
    %38 = memref.load %arg0[%c4] : memref<16xi32, #tpu.memory_space<smem>>
    %39 = vector.broadcast %38 : i32 to vector<16x128xi32>
    %40 = arith.cmpi eq, %2, %39 : vector<16x128xi32>
    %41 = arith.andi %37, %40 : vector<16x128xi1>
    %cst_6 = arith.constant 1.000000e+00 : f32
    %42 = vector.broadcast %cst_6 : f32 to vector<16x128xf32>
    %43 = arith.select %41, %42, %35 : vector<16x128xi1>, vector<16x128xf32>
    %c5_i32 = arith.constant 5 : i32
    %44 = vector.broadcast %c5_i32 : i32 to vector<16x128xi32>
    %45 = arith.cmpi eq, %1, %44 : vector<16x128xi32>
    %c5 = arith.constant 5 : index
    %46 = memref.load %arg0[%c5] : memref<16xi32, #tpu.memory_space<smem>>
    %47 = vector.broadcast %46 : i32 to vector<16x128xi32>
    %48 = arith.cmpi eq, %2, %47 : vector<16x128xi32>
    %49 = arith.andi %45, %48 : vector<16x128xi1>
    %cst_7 = arith.constant 1.000000e+00 : f32
    %50 = vector.broadcast %cst_7 : f32 to vector<16x128xf32>
    %51 = arith.select %49, %50, %43 : vector<16x128xi1>, vector<16x128xf32>
    %c6_i32 = arith.constant 6 : i32
    %52 = vector.broadcast %c6_i32 : i32 to vector<16x128xi32>
    %53 = arith.cmpi eq, %1, %52 : vector<16x128xi32>
    %c6 = arith.constant 6 : index
    %54 = memref.load %arg0[%c6] : memref<16xi32, #tpu.memory_space<smem>>
    %55 = vector.broadcast %54 : i32 to vector<16x128xi32>
    %56 = arith.cmpi eq, %2, %55 : vector<16x128xi32>
    %57 = arith.andi %53, %56 : vector<16x128xi1>
    %cst_8 = arith.constant 1.000000e+00 : f32
    %58 = vector.broadcast %cst_8 : f32 to vector<16x128xf32>
    %59 = arith.select %57, %58, %51 : vector<16x128xi1>, vector<16x128xf32>
    %c7_i32 = arith.constant 7 : i32
    %60 = vector.broadcast %c7_i32 : i32 to vector<16x128xi32>
    %61 = arith.cmpi eq, %1, %60 : vector<16x128xi32>
    %c7 = arith.constant 7 : index
    %62 = memref.load %arg0[%c7] : memref<16xi32, #tpu.memory_space<smem>>
    %63 = vector.broadcast %62 : i32 to vector<16x128xi32>
    %64 = arith.cmpi eq, %2, %63 : vector<16x128xi32>
    %65 = arith.andi %61, %64 : vector<16x128xi1>
    %cst_9 = arith.constant 1.000000e+00 : f32
    %66 = vector.broadcast %cst_9 : f32 to vector<16x128xf32>
    %67 = arith.select %65, %66, %59 : vector<16x128xi1>, vector<16x128xf32>
    %c8_i32 = arith.constant 8 : i32
    %68 = vector.broadcast %c8_i32 : i32 to vector<16x128xi32>
    %69 = arith.cmpi eq, %1, %68 : vector<16x128xi32>
    %c8 = arith.constant 8 : index
    %70 = memref.load %arg0[%c8] : memref<16xi32, #tpu.memory_space<smem>>
    %71 = vector.broadcast %70 : i32 to vector<16x128xi32>
    %72 = arith.cmpi eq, %2, %71 : vector<16x128xi32>
    %73 = arith.andi %69, %72 : vector<16x128xi1>
    %cst_10 = arith.constant 1.000000e+00 : f32
    %74 = vector.broadcast %cst_10 : f32 to vector<16x128xf32>
    %75 = arith.select %73, %74, %67 : vector<16x128xi1>, vector<16x128xf32>
    %c9_i32 = arith.constant 9 : i32
    %76 = vector.broadcast %c9_i32 : i32 to vector<16x128xi32>
    %77 = arith.cmpi eq, %1, %76 : vector<16x128xi32>
    %c9 = arith.constant 9 : index
    %78 = memref.load %arg0[%c9] : memref<16xi32, #tpu.memory_space<smem>>
    %79 = vector.broadcast %78 : i32 to vector<16x128xi32>
    %80 = arith.cmpi eq, %2, %79 : vector<16x128xi32>
    %81 = arith.andi %77, %80 : vector<16x128xi1>
    %cst_11 = arith.constant 1.000000e+00 : f32
    %82 = vector.broadcast %cst_11 : f32 to vector<16x128xf32>
    %83 = arith.select %81, %82, %75 : vector<16x128xi1>, vector<16x128xf32>
    %c10_i32 = arith.constant 10 : i32
    %84 = vector.broadcast %c10_i32 : i32 to vector<16x128xi32>
    %85 = arith.cmpi eq, %1, %84 : vector<16x128xi32>
    %c10 = arith.constant 10 : index
    %86 = memref.load %arg0[%c10] : memref<16xi32, #tpu.memory_space<smem>>
    %87 = vector.broadcast %86 : i32 to vector<16x128xi32>
    %88 = arith.cmpi eq, %2, %87 : vector<16x128xi32>
    %89 = arith.andi %85, %88 : vector<16x128xi1>
    %cst_12 = arith.constant 1.000000e+00 : f32
    %90 = vector.broadcast %cst_12 : f32 to vector<16x128xf32>
    %91 = arith.select %89, %90, %83 : vector<16x128xi1>, vector<16x128xf32>
    %c11_i32 = arith.constant 11 : i32
    %92 = vector.broadcast %c11_i32 : i32 to vector<16x128xi32>
    %93 = arith.cmpi eq, %1, %92 : vector<16x128xi32>
    %c11 = arith.constant 11 : index
    %94 = memref.load %arg0[%c11] : memref<16xi32, #tpu.memory_space<smem>>
    %95 = vector.broadcast %94 : i32 to vector<16x128xi32>
    %96 = arith.cmpi eq, %2, %95 : vector<16x128xi32>
    %97 = arith.andi %93, %96 : vector<16x128xi1>
    %cst_13 = arith.constant 1.000000e+00 : f32
    %98 = vector.broadcast %cst_13 : f32 to vector<16x128xf32>
    %99 = arith.select %97, %98, %91 : vector<16x128xi1>, vector<16x128xf32>
    %c12_i32 = arith.constant 12 : i32
    %100 = vector.broadcast %c12_i32 : i32 to vector<16x128xi32>
    %101 = arith.cmpi eq, %1, %100 : vector<16x128xi32>
    %c12 = arith.constant 12 : index
    %102 = memref.load %arg0[%c12] : memref<16xi32, #tpu.memory_space<smem>>
    %103 = vector.broadcast %102 : i32 to vector<16x128xi32>
    %104 = arith.cmpi eq, %2, %103 : vector<16x128xi32>
    %105 = arith.andi %101, %104 : vector<16x128xi1>
    %cst_14 = arith.constant 1.000000e+00 : f32
    %106 = vector.broadcast %cst_14 : f32 to vector<16x128xf32>
    %107 = arith.select %105, %106, %99 : vector<16x128xi1>, vector<16x128xf32>
    %c13_i32 = arith.constant 13 : i32
    %108 = vector.broadcast %c13_i32 : i32 to vector<16x128xi32>
    %109 = arith.cmpi eq, %1, %108 : vector<16x128xi32>
    %c13 = arith.constant 13 : index
    %110 = memref.load %arg0[%c13] : memref<16xi32, #tpu.memory_space<smem>>
    %111 = vector.broadcast %110 : i32 to vector<16x128xi32>
    %112 = arith.cmpi eq, %2, %111 : vector<16x128xi32>
    %113 = arith.andi %109, %112 : vector<16x128xi1>
    %cst_15 = arith.constant 1.000000e+00 : f32
    %114 = vector.broadcast %cst_15 : f32 to vector<16x128xf32>
    %115 = arith.select %113, %114, %107 : vector<16x128xi1>, vector<16x128xf32>
    %c14_i32 = arith.constant 14 : i32
    %116 = vector.broadcast %c14_i32 : i32 to vector<16x128xi32>
    %117 = arith.cmpi eq, %1, %116 : vector<16x128xi32>
    %c14 = arith.constant 14 : index
    %118 = memref.load %arg0[%c14] : memref<16xi32, #tpu.memory_space<smem>>
    %119 = vector.broadcast %118 : i32 to vector<16x128xi32>
    %120 = arith.cmpi eq, %2, %119 : vector<16x128xi32>
    %121 = arith.andi %117, %120 : vector<16x128xi1>
    %cst_16 = arith.constant 1.000000e+00 : f32
    %122 = vector.broadcast %cst_16 : f32 to vector<16x128xf32>
    %123 = arith.select %121, %122, %115 : vector<16x128xi1>, vector<16x128xf32>
    %c15_i32 = arith.constant 15 : i32
    %124 = vector.broadcast %c15_i32 : i32 to vector<16x128xi32>
    %125 = arith.cmpi eq, %1, %124 : vector<16x128xi32>
    %c15 = arith.constant 15 : index
    %126 = memref.load %arg0[%c15] : memref<16xi32, #tpu.memory_space<smem>>
    %127 = vector.broadcast %126 : i32 to vector<16x128xi32>
    %128 = arith.cmpi eq, %2, %127 : vector<16x128xi32>
    %129 = arith.andi %125, %128 : vector<16x128xi1>
    %cst_17 = arith.constant 1.000000e+00 : f32
    %130 = vector.broadcast %cst_17 : f32 to vector<16x128xf32>
    %131 = arith.select %129, %130, %123 : vector<16x128xi1>, vector<16x128xf32>
    %c0_18 = arith.constant 0 : index
    %c0_19 = arith.constant 0 : index
    %132 = vector.load %arg1[%c0_18, %c0_19] : memref<128x32xf32, #tpu.memory_space<vmem>>, vector<128x32xf32>
    %cst_20 = arith.constant dense<0.000000e+00> : vector<16x32xf32>
    %133 = tpu.matmul %131, %132, %cst_20 {dimension_numbers = #tpu.dot_dimension_numbers<[1], [0], [0], [1], [0, 0, 1, 1], [], []>} : vector<16x128xf32>, vector<128x32xf32>, vector<16x32xf32> -> vector<16x32xf32>
    %c0_21 = arith.constant 0 : index
    %c0_22 = arith.constant 0 : index
    %134 = vector.load %arg2[%c0_21, %c0_22] : memref<16x32xf32, #tpu.memory_space<vmem>>, vector<16x32xf32>
    %135 = arith.addf %133, %134 : vector<16x32xf32>
    %136 = vector.extract_strided_slice %0 {offsets = [0, 0], sizes = [1, 32], strides = [1, 1]} : vector<19x128xf32> to vector<1x32xf32>
    %137 = vector.extract_strided_slice %0 {offsets = [1, 0], sizes = [1, 32], strides = [1, 1]} : vector<19x128xf32> to vector<1x32xf32>
    %cst_23 = arith.constant dense<0.000000e+00> : vector<16xf32>
    %138 = vector.multi_reduction <add>, %135, %cst_23 [1] : vector<16x32xf32> to vector<16xf32>
    %139 = vector.shape_cast %138 : vector<16xf32> to vector<16x1xf32>
    %cst_24 = arith.constant 3.200000e+01 : f32
    %140 = vector.broadcast %cst_24 : f32 to vector<16x1xf32>
    %141 = arith.divf %139, %140 : vector<16x1xf32>
    %142 = vector.broadcast %141 : vector<16x1xf32> to vector<16x32xf32>
    %143 = arith.subf %135, %142 : vector<16x32xf32>
    %144 = arith.mulf %143, %143 : vector<16x32xf32>
    %cst_25 = arith.constant dense<0.000000e+00> : vector<16xf32>
    %145 = vector.multi_reduction <add>, %144, %cst_25 [1] : vector<16x32xf32> to vector<16xf32>
    %146 = vector.shape_cast %145 : vector<16xf32> to vector<16x1xf32>
    %cst_26 = arith.constant 3.200000e+01 : f32
    %147 = vector.broadcast %cst_26 : f32 to vector<16x1xf32>
    %148 = arith.divf %146, %147 : vector<16x1xf32>
    %149 = vector.broadcast %141 : vector<16x1xf32> to vector<16x32xf32>
    %150 = arith.subf %135, %149 : vector<16x32xf32>
    %cst_27 = arith.constant 9.99999996E-13 : f32
    %151 = vector.broadcast %cst_27 : f32 to vector<16x1xf32>
    %152 = arith.addf %148, %151 : vector<16x1xf32>
    %153 = math.rsqrt %152 : vector<16x1xf32>
    %154 = vector.broadcast %153 : vector<16x1xf32> to vector<16x32xf32>
    %155 = arith.mulf %150, %154 : vector<16x32xf32>
    %156 = vector.broadcast %136 : vector<1x32xf32> to vector<16x32xf32>
    %157 = arith.mulf %155, %156 : vector<16x32xf32>
    %158 = vector.broadcast %137 : vector<1x32xf32> to vector<16x32xf32>
    %159 = arith.addf %157, %158 : vector<16x32xf32>
    %c0_28 = arith.constant 0 : index
    %c0_29 = arith.constant 0 : index
    %c0_30 = arith.constant 0 : index
    %160 = vector.load %arg3[%c0_28, %c0_29, %c0_30] : memref<2x32x96xf32, #tpu.memory_space<vmem>>, vector<1x32x96xf32>
    %161 = vector.shape_cast %160 : vector<1x32x96xf32> to vector<32x96xf32>
    %cst_31 = arith.constant dense<0.000000e+00> : vector<16x96xf32>
    %162 = tpu.matmul %159, %161, %cst_31 {dimension_numbers = #tpu.dot_dimension_numbers<[1], [0], [0], [1], [0, 0, 1, 1], [], []>} : vector<16x32xf32>, vector<32x96xf32>, vector<16x96xf32> -> vector<16x96xf32>
    %163 = vector.extract_strided_slice %0 {offsets = [3, 0], sizes = [1, 96], strides = [1, 1]} : vector<19x128xf32> to vector<1x96xf32>
    %164 = vector.broadcast %163 : vector<1x96xf32> to vector<16x96xf32>
    %165 = arith.addf %162, %164 : vector<16x96xf32>
    %166 = vector.shape_cast %165 : vector<16x96xf32> to vector<2x8x96xf32>
    %167 = vector.extract_strided_slice %166 {offsets = [0, 0, 0], sizes = [2, 8, 8], strides = [1, 1, 1]} : vector<2x8x96xf32> to vector<2x8x8xf32>
    %168 = vector.extract_strided_slice %166 {offsets = [0, 0, 8], sizes = [2, 8, 8], strides = [1, 1, 1]} : vector<2x8x96xf32> to vector<2x8x8xf32>
    %169 = vector.extract_strided_slice %166 {offsets = [0, 0, 16], sizes = [2, 8, 8], strides = [1, 1, 1]} : vector<2x8x96xf32> to vector<2x8x8xf32>
    %170 = vector.extract_strided_slice %166 {offsets = [0, 0, 24], sizes = [2, 8, 8], strides = [1, 1, 1]} : vector<2x8x96xf32> to vector<2x8x8xf32>
    %171 = tpu.concatenate %167, %168, %169, %170 in 0 : vector<2x8x8xf32>, vector<2x8x8xf32>, vector<2x8x8xf32>, vector<2x8x8xf32> -> vector<8x8x8xf32>
    %172 = vector.extract_strided_slice %166 {offsets = [0, 0, 32], sizes = [2, 8, 8], strides = [1, 1, 1]} : vector<2x8x96xf32> to vector<2x8x8xf32>
    %173 = vector.extract_strided_slice %166 {offsets = [0, 0, 40], sizes = [2, 8, 8], strides = [1, 1, 1]} : vector<2x8x96xf32> to vector<2x8x8xf32>
    %174 = vector.extract_strided_slice %166 {offsets = [0, 0, 48], sizes = [2, 8, 8], strides = [1, 1, 1]} : vector<2x8x96xf32> to vector<2x8x8xf32>
    %175 = vector.extract_strided_slice %166 {offsets = [0, 0, 56], sizes = [2, 8, 8], strides = [1, 1, 1]} : vector<2x8x96xf32> to vector<2x8x8xf32>
    %176 = tpu.concatenate %172, %173, %174, %175 in 0 : vector<2x8x8xf32>, vector<2x8x8xf32>, vector<2x8x8xf32>, vector<2x8x8xf32> -> vector<8x8x8xf32>
    %177 = vector.extract_strided_slice %166 {offsets = [0, 0, 64], sizes = [2, 8, 8], strides = [1, 1, 1]} : vector<2x8x96xf32> to vector<2x8x8xf32>
    %178 = vector.extract_strided_slice %166 {offsets = [0, 0, 72], sizes = [2, 8, 8], strides = [1, 1, 1]} : vector<2x8x96xf32> to vector<2x8x8xf32>
    %179 = vector.extract_strided_slice %166 {offsets = [0, 0, 80], sizes = [2, 8, 8], strides = [1, 1, 1]} : vector<2x8x96xf32> to vector<2x8x8xf32>
    %180 = vector.extract_strided_slice %166 {offsets = [0, 0, 88], sizes = [2, 8, 8], strides = [1, 1, 1]} : vector<2x8x96xf32> to vector<2x8x8xf32>
    %181 = tpu.concatenate %177, %178, %179, %180 in 0 : vector<2x8x8xf32>, vector<2x8x8xf32>, vector<2x8x8xf32>, vector<2x8x8xf32> -> vector<8x8x8xf32>
    "tpu.trace_start"() <{level = 10 : i32, message = "bqd,bkd->bqk"}> : () -> ()
    %cst_32 = arith.constant dense<0.000000e+00> : vector<8x8x8xf32>
    %182 = tpu.matmul %171, %176, %cst_32 {dimension_numbers = #tpu.dot_dimension_numbers<[2], [2], [1], [1], [0, 0, 0, 1, 1, 1], [0], [0]>} : vector<8x8x8xf32>, vector<8x8x8xf32>, vector<8x8x8xf32> -> vector<8x8x8xf32>
    "tpu.trace_stop"() : () -> ()
    %cst_33 = arith.constant dense<0xFF800000> : vector<8x8xf32>
    %183 = vector.multi_reduction <maximumf>, %182, %cst_33 [2] : vector<8x8x8xf32> to vector<8x8xf32>
    %184 = vector.shape_cast %183 : vector<8x8xf32> to vector<8x8x1xf32>
    %185 = vector.broadcast %184 : vector<8x8x1xf32> to vector<8x8x8xf32>
    %186 = arith.subf %182, %185 : vector<8x8x8xf32>
    %187 = math.exp %186 : vector<8x8x8xf32>
    %cst_34 = arith.constant dense<0.000000e+00> : vector<8x8xf32>
    %188 = vector.multi_reduction <add>, %187, %cst_34 [2] : vector<8x8x8xf32> to vector<8x8xf32>
    %189 = vector.shape_cast %188 : vector<8x8xf32> to vector<8x8x1xf32>
    %190 = tpu.reciprocal %189 {approx = true} : vector<8x8x1xf32> -> vector<8x8x1xf32>
    %191 = vector.broadcast %190 : vector<8x8x1xf32> to vector<8x8x8xf32>
    %192 = arith.mulf %187, %191 : vector<8x8x8xf32>
    "tpu.trace_start"() <{level = 10 : i32, message = "bqk,bkd->bqd"}> : () -> ()
    %cst_35 = arith.constant dense<0.000000e+00> : vector<8x8x8xf32>
    %193 = tpu.matmul %192, %181, %cst_35 {dimension_numbers = #tpu.dot_dimension_numbers<[2], [1], [1], [2], [0, 0, 0, 1, 1, 2], [0], [0]>} : vector<8x8x8xf32>, vector<8x8x8xf32>, vector<8x8x8xf32> -> vector<8x8x8xf32>
    "tpu.trace_stop"() : () -> ()
    %194 = vector.extract_strided_slice %193 {offsets = [0, 0, 0], sizes = [2, 8, 8], strides = [1, 1, 1]} : vector<8x8x8xf32> to vector<2x8x8xf32>
    %195 = vector.extract_strided_slice %193 {offsets = [2, 0, 0], sizes = [2, 8, 8], strides = [1, 1, 1]} : vector<8x8x8xf32> to vector<2x8x8xf32>
    %196 = vector.extract_strided_slice %193 {offsets = [4, 0, 0], sizes = [2, 8, 8], strides = [1, 1, 1]} : vector<8x8x8xf32> to vector<2x8x8xf32>
    %197 = vector.extract_strided_slice %193 {offsets = [6, 0, 0], sizes = [2, 8, 8], strides = [1, 1, 1]} : vector<8x8x8xf32> to vector<2x8x8xf32>
    %198 = tpu.concatenate %194, %195, %196, %197 in 2 : vector<2x8x8xf32>, vector<2x8x8xf32>, vector<2x8x8xf32>, vector<2x8x8xf32> -> vector<2x8x32xf32>
    %199 = vector.shape_cast %198 : vector<2x8x32xf32> to vector<16x32xf32>
    %c0_36 = arith.constant 0 : index
    %c0_37 = arith.constant 0 : index
    %c0_38 = arith.constant 0 : index
    %200 = vector.load %arg4[%c0_36, %c0_37, %c0_38] : memref<2x32x32xf32, #tpu.memory_space<vmem>>, vector<1x32x32xf32>
    %201 = vector.shape_cast %200 : vector<1x32x32xf32> to vector<32x32xf32>
    %cst_39 = arith.constant dense<0.000000e+00> : vector<16x32xf32>
    %202 = tpu.matmul %199, %201, %cst_39 {dimension_numbers = #tpu.dot_dimension_numbers<[1], [0], [0], [1], [0, 0, 1, 1], [], []>} : vector<16x32xf32>, vector<32x32xf32>, vector<16x32xf32> -> vector<16x32xf32>
    %203 = vector.extract_strided_slice %0 {offsets = [4, 0], sizes = [1, 32], strides = [1, 1]} : vector<19x128xf32> to vector<1x32xf32>
    %204 = vector.broadcast %203 : vector<1x32xf32> to vector<16x32xf32>
    %205 = arith.addf %202, %204 : vector<16x32xf32>
    %206 = arith.addf %159, %205 : vector<16x32xf32>
    %207 = vector.extract_strided_slice %0 {offsets = [5, 0], sizes = [1, 32], strides = [1, 1]} : vector<19x128xf32> to vector<1x32xf32>
    %208 = vector.extract_strided_slice %0 {offsets = [6, 0], sizes = [1, 32], strides = [1, 1]} : vector<19x128xf32> to vector<1x32xf32>
    %cst_40 = arith.constant dense<0.000000e+00> : vector<16xf32>
    %209 = vector.multi_reduction <add>, %206, %cst_40 [1] : vector<16x32xf32> to vector<16xf32>
    %210 = vector.shape_cast %209 : vector<16xf32> to vector<16x1xf32>
    %cst_41 = arith.constant 3.200000e+01 : f32
    %211 = vector.broadcast %cst_41 : f32 to vector<16x1xf32>
    %212 = arith.divf %210, %211 : vector<16x1xf32>
    %213 = vector.broadcast %212 : vector<16x1xf32> to vector<16x32xf32>
    %214 = arith.subf %206, %213 : vector<16x32xf32>
    %215 = arith.mulf %214, %214 : vector<16x32xf32>
    %cst_42 = arith.constant dense<0.000000e+00> : vector<16xf32>
    %216 = vector.multi_reduction <add>, %215, %cst_42 [1] : vector<16x32xf32> to vector<16xf32>
    %217 = vector.shape_cast %216 : vector<16xf32> to vector<16x1xf32>
    %cst_43 = arith.constant 3.200000e+01 : f32
    %218 = vector.broadcast %cst_43 : f32 to vector<16x1xf32>
    %219 = arith.divf %217, %218 : vector<16x1xf32>
    %220 = vector.broadcast %212 : vector<16x1xf32> to vector<16x32xf32>
    %221 = arith.subf %206, %220 : vector<16x32xf32>
    %cst_44 = arith.constant 9.99999996E-13 : f32
    %222 = vector.broadcast %cst_44 : f32 to vector<16x1xf32>
    %223 = arith.addf %219, %222 : vector<16x1xf32>
    %224 = math.rsqrt %223 : vector<16x1xf32>
    %225 = vector.broadcast %224 : vector<16x1xf32> to vector<16x32xf32>
    %226 = arith.mulf %221, %225 : vector<16x32xf32>
    %227 = vector.broadcast %207 : vector<1x32xf32> to vector<16x32xf32>
    %228 = arith.mulf %226, %227 : vector<16x32xf32>
    %229 = vector.broadcast %208 : vector<1x32xf32> to vector<16x32xf32>
    %230 = arith.addf %228, %229 : vector<16x32xf32>
    %c0_45 = arith.constant 0 : index
    %c0_46 = arith.constant 0 : index
    %c0_47 = arith.constant 0 : index
    %231 = vector.load %arg5[%c0_45, %c0_46, %c0_47] : memref<2x32x64xf32, #tpu.memory_space<vmem>>, vector<1x32x64xf32>
    %232 = vector.shape_cast %231 : vector<1x32x64xf32> to vector<32x64xf32>
    %cst_48 = arith.constant dense<0.000000e+00> : vector<16x64xf32>
    %233 = tpu.matmul %230, %232, %cst_48 {dimension_numbers = #tpu.dot_dimension_numbers<[1], [0], [0], [1], [0, 0, 1, 1], [], []>} : vector<16x32xf32>, vector<32x64xf32>, vector<16x64xf32> -> vector<16x64xf32>
    %234 = vector.extract_strided_slice %0 {offsets = [7, 0], sizes = [1, 64], strides = [1, 1]} : vector<19x128xf32> to vector<1x64xf32>
    %235 = vector.broadcast %234 : vector<1x64xf32> to vector<16x64xf32>
    %236 = arith.addf %233, %235 : vector<16x64xf32>
    %237 = arith.mulf %236, %236 : vector<16x64xf32>
    %238 = arith.mulf %236, %237 : vector<16x64xf32>
    %cst_49 = arith.constant 4.471500e-02 : f32
    %239 = vector.broadcast %cst_49 : f32 to vector<16x64xf32>
    %240 = arith.mulf %239, %238 : vector<16x64xf32>
    %241 = arith.addf %236, %240 : vector<16x64xf32>
    %cst_50 = arith.constant 0.797884583 : f32
    %242 = vector.broadcast %cst_50 : f32 to vector<16x64xf32>
    %243 = arith.mulf %242, %241 : vector<16x64xf32>
    %244 = math.tanh %243 : vector<16x64xf32>
    %cst_51 = arith.constant 1.000000e+00 : f32
    %245 = vector.broadcast %cst_51 : f32 to vector<16x64xf32>
    %246 = arith.addf %245, %244 : vector<16x64xf32>
    %cst_52 = arith.constant 5.000000e-01 : f32
    %247 = vector.broadcast %cst_52 : f32 to vector<16x64xf32>
    %248 = arith.mulf %247, %246 : vector<16x64xf32>
    %249 = arith.mulf %236, %248 : vector<16x64xf32>
    %c0_53 = arith.constant 0 : index
    %c0_54 = arith.constant 0 : index
    %c0_55 = arith.constant 0 : index
    %250 = vector.load %arg6[%c0_53, %c0_54, %c0_55] : memref<2x64x32xf32, #tpu.memory_space<vmem>>, vector<1x64x32xf32>
    %251 = vector.shape_cast %250 : vector<1x64x32xf32> to vector<64x32xf32>
    %cst_56 = arith.constant dense<0.000000e+00> : vector<16x32xf32>
    %252 = tpu.matmul %249, %251, %cst_56 {dimension_numbers = #tpu.dot_dimension_numbers<[1], [0], [0], [1], [0, 0, 1, 1], [], []>} : vector<16x64xf32>, vector<64x32xf32>, vector<16x32xf32> -> vector<16x32xf32>
    %253 = vector.extract_strided_slice %0 {offsets = [8, 0], sizes = [1, 32], strides = [1, 1]} : vector<19x128xf32> to vector<1x32xf32>
    %254 = vector.broadcast %253 : vector<1x32xf32> to vector<16x32xf32>
    %255 = arith.addf %252, %254 : vector<16x32xf32>
    %256 = arith.addf %230, %255 : vector<16x32xf32>
    %257 = vector.extract_strided_slice %0 {offsets = [9, 0], sizes = [1, 32], strides = [1, 1]} : vector<19x128xf32> to vector<1x32xf32>
    %258 = vector.extract_strided_slice %0 {offsets = [10, 0], sizes = [1, 32], strides = [1, 1]} : vector<19x128xf32> to vector<1x32xf32>
    %cst_57 = arith.constant dense<0.000000e+00> : vector<16xf32>
    %259 = vector.multi_reduction <add>, %256, %cst_57 [1] : vector<16x32xf32> to vector<16xf32>
    %260 = vector.shape_cast %259 : vector<16xf32> to vector<16x1xf32>
    %cst_58 = arith.constant 3.200000e+01 : f32
    %261 = vector.broadcast %cst_58 : f32 to vector<16x1xf32>
    %262 = arith.divf %260, %261 : vector<16x1xf32>
    %263 = vector.broadcast %262 : vector<16x1xf32> to vector<16x32xf32>
    %264 = arith.subf %256, %263 : vector<16x32xf32>
    %265 = arith.mulf %264, %264 : vector<16x32xf32>
    %cst_59 = arith.constant dense<0.000000e+00> : vector<16xf32>
    %266 = vector.multi_reduction <add>, %265, %cst_59 [1] : vector<16x32xf32> to vector<16xf32>
    %267 = vector.shape_cast %266 : vector<16xf32> to vector<16x1xf32>
    %cst_60 = arith.constant 3.200000e+01 : f32
    %268 = vector.broadcast %cst_60 : f32 to vector<16x1xf32>
    %269 = arith.divf %267, %268 : vector<16x1xf32>
    %270 = vector.broadcast %262 : vector<16x1xf32> to vector<16x32xf32>
    %271 = arith.subf %256, %270 : vector<16x32xf32>
    %cst_61 = arith.constant 9.99999996E-13 : f32
    %272 = vector.broadcast %cst_61 : f32 to vector<16x1xf32>
    %273 = arith.addf %269, %272 : vector<16x1xf32>
    %274 = math.rsqrt %273 : vector<16x1xf32>
    %275 = vector.broadcast %274 : vector<16x1xf32> to vector<16x32xf32>
    %276 = arith.mulf %271, %275 : vector<16x32xf32>
    %277 = vector.broadcast %257 : vector<1x32xf32> to vector<16x32xf32>
    %278 = arith.mulf %276, %277 : vector<16x32xf32>
    %279 = vector.broadcast %258 : vector<1x32xf32> to vector<16x32xf32>
    %280 = arith.addf %278, %279 : vector<16x32xf32>
    %c1_62 = arith.constant 1 : index
    %c0_63 = arith.constant 0 : index
    %c0_64 = arith.constant 0 : index
    %281 = vector.load %arg3[%c1_62, %c0_63, %c0_64] : memref<2x32x96xf32, #tpu.memory_space<vmem>>, vector<1x32x96xf32>
    %282 = vector.shape_cast %281 : vector<1x32x96xf32> to vector<32x96xf32>
    %cst_65 = arith.constant dense<0.000000e+00> : vector<16x96xf32>
    %283 = tpu.matmul %280, %282, %cst_65 {dimension_numbers = #tpu.dot_dimension_numbers<[1], [0], [0], [1], [0, 0, 1, 1], [], []>} : vector<16x32xf32>, vector<32x96xf32>, vector<16x96xf32> -> vector<16x96xf32>
    %284 = vector.extract_strided_slice %0 {offsets = [11, 0], sizes = [1, 96], strides = [1, 1]} : vector<19x128xf32> to vector<1x96xf32>
    %285 = vector.broadcast %284 : vector<1x96xf32> to vector<16x96xf32>
    %286 = arith.addf %283, %285 : vector<16x96xf32>
    %287 = vector.shape_cast %286 : vector<16x96xf32> to vector<2x8x96xf32>
    %288 = vector.extract_strided_slice %287 {offsets = [0, 0, 0], sizes = [2, 8, 8], strides = [1, 1, 1]} : vector<2x8x96xf32> to vector<2x8x8xf32>
    %289 = vector.extract_strided_slice %287 {offsets = [0, 0, 8], sizes = [2, 8, 8], strides = [1, 1, 1]} : vector<2x8x96xf32> to vector<2x8x8xf32>
    %290 = vector.extract_strided_slice %287 {offsets = [0, 0, 16], sizes = [2, 8, 8], strides = [1, 1, 1]} : vector<2x8x96xf32> to vector<2x8x8xf32>
    %291 = vector.extract_strided_slice %287 {offsets = [0, 0, 24], sizes = [2, 8, 8], strides = [1, 1, 1]} : vector<2x8x96xf32> to vector<2x8x8xf32>
    %292 = tpu.concatenate %288, %289, %290, %291 in 0 : vector<2x8x8xf32>, vector<2x8x8xf32>, vector<2x8x8xf32>, vector<2x8x8xf32> -> vector<8x8x8xf32>
    %293 = vector.extract_strided_slice %287 {offsets = [0, 0, 32], sizes = [2, 8, 8], strides = [1, 1, 1]} : vector<2x8x96xf32> to vector<2x8x8xf32>
    %294 = vector.extract_strided_slice %287 {offsets = [0, 0, 40], sizes = [2, 8, 8], strides = [1, 1, 1]} : vector<2x8x96xf32> to vector<2x8x8xf32>
    %295 = vector.extract_strided_slice %287 {offsets = [0, 0, 48], sizes = [2, 8, 8], strides = [1, 1, 1]} : vector<2x8x96xf32> to vector<2x8x8xf32>
    %296 = vector.extract_strided_slice %287 {offsets = [0, 0, 56], sizes = [2, 8, 8], strides = [1, 1, 1]} : vector<2x8x96xf32> to vector<2x8x8xf32>
    %297 = tpu.concatenate %293, %294, %295, %296 in 0 : vector<2x8x8xf32>, vector<2x8x8xf32>, vector<2x8x8xf32>, vector<2x8x8xf32> -> vector<8x8x8xf32>
    %298 = vector.extract_strided_slice %287 {offsets = [0, 0, 64], sizes = [2, 8, 8], strides = [1, 1, 1]} : vector<2x8x96xf32> to vector<2x8x8xf32>
    %299 = vector.extract_strided_slice %287 {offsets = [0, 0, 72], sizes = [2, 8, 8], strides = [1, 1, 1]} : vector<2x8x96xf32> to vector<2x8x8xf32>
    %300 = vector.extract_strided_slice %287 {offsets = [0, 0, 80], sizes = [2, 8, 8], strides = [1, 1, 1]} : vector<2x8x96xf32> to vector<2x8x8xf32>
    %301 = vector.extract_strided_slice %287 {offsets = [0, 0, 88], sizes = [2, 8, 8], strides = [1, 1, 1]} : vector<2x8x96xf32> to vector<2x8x8xf32>
    %302 = tpu.concatenate %298, %299, %300, %301 in 0 : vector<2x8x8xf32>, vector<2x8x8xf32>, vector<2x8x8xf32>, vector<2x8x8xf32> -> vector<8x8x8xf32>
    "tpu.trace_start"() <{level = 10 : i32, message = "bqd,bkd->bqk"}> : () -> ()
    %cst_66 = arith.constant dense<0.000000e+00> : vector<8x8x8xf32>
    %303 = tpu.matmul %292, %297, %cst_66 {dimension_numbers = #tpu.dot_dimension_numbers<[2], [2], [1], [1], [0, 0, 0, 1, 1, 1], [0], [0]>} : vector<8x8x8xf32>, vector<8x8x8xf32>, vector<8x8x8xf32> -> vector<8x8x8xf32>
    "tpu.trace_stop"() : () -> ()
    %cst_67 = arith.constant dense<0xFF800000> : vector<8x8xf32>
    %304 = vector.multi_reduction <maximumf>, %303, %cst_67 [2] : vector<8x8x8xf32> to vector<8x8xf32>
    %305 = vector.shape_cast %304 : vector<8x8xf32> to vector<8x8x1xf32>
    %306 = vector.broadcast %305 : vector<8x8x1xf32> to vector<8x8x8xf32>
    %307 = arith.subf %303, %306 : vector<8x8x8xf32>
    %308 = math.exp %307 : vector<8x8x8xf32>
    %cst_68 = arith.constant dense<0.000000e+00> : vector<8x8xf32>
    %309 = vector.multi_reduction <add>, %308, %cst_68 [2] : vector<8x8x8xf32> to vector<8x8xf32>
    %310 = vector.shape_cast %309 : vector<8x8xf32> to vector<8x8x1xf32>
    %311 = tpu.reciprocal %310 {approx = true} : vector<8x8x1xf32> -> vector<8x8x1xf32>
    %312 = vector.broadcast %311 : vector<8x8x1xf32> to vector<8x8x8xf32>
    %313 = arith.mulf %308, %312 : vector<8x8x8xf32>
    "tpu.trace_start"() <{level = 10 : i32, message = "bqk,bkd->bqd"}> : () -> ()
    %cst_69 = arith.constant dense<0.000000e+00> : vector<8x8x8xf32>
    %314 = tpu.matmul %313, %302, %cst_69 {dimension_numbers = #tpu.dot_dimension_numbers<[2], [1], [1], [2], [0, 0, 0, 1, 1, 2], [0], [0]>} : vector<8x8x8xf32>, vector<8x8x8xf32>, vector<8x8x8xf32> -> vector<8x8x8xf32>
    "tpu.trace_stop"() : () -> ()
    %315 = vector.extract_strided_slice %314 {offsets = [0, 0, 0], sizes = [2, 8, 8], strides = [1, 1, 1]} : vector<8x8x8xf32> to vector<2x8x8xf32>
    %316 = vector.extract_strided_slice %314 {offsets = [2, 0, 0], sizes = [2, 8, 8], strides = [1, 1, 1]} : vector<8x8x8xf32> to vector<2x8x8xf32>
    %317 = vector.extract_strided_slice %314 {offsets = [4, 0, 0], sizes = [2, 8, 8], strides = [1, 1, 1]} : vector<8x8x8xf32> to vector<2x8x8xf32>
    %318 = vector.extract_strided_slice %314 {offsets = [6, 0, 0], sizes = [2, 8, 8], strides = [1, 1, 1]} : vector<8x8x8xf32> to vector<2x8x8xf32>
    %319 = tpu.concatenate %315, %316, %317, %318 in 2 : vector<2x8x8xf32>, vector<2x8x8xf32>, vector<2x8x8xf32>, vector<2x8x8xf32> -> vector<2x8x32xf32>
    %320 = vector.shape_cast %319 : vector<2x8x32xf32> to vector<16x32xf32>
    %c1_70 = arith.constant 1 : index
    %c0_71 = arith.constant 0 : index
    %c0_72 = arith.constant 0 : index
    %321 = vector.load %arg4[%c1_70, %c0_71, %c0_72] : memref<2x32x32xf32, #tpu.memory_space<vmem>>, vector<1x32x32xf32>
    %322 = vector.shape_cast %321 : vector<1x32x32xf32> to vector<32x32xf32>
    %cst_73 = arith.constant dense<0.000000e+00> : vector<16x32xf32>
    %323 = tpu.matmul %320, %322, %cst_73 {dimension_numbers = #tpu.dot_dimension_numbers<[1], [0], [0], [1], [0, 0, 1, 1], [], []>} : vector<16x32xf32>, vector<32x32xf32>, vector<16x32xf32> -> vector<16x32xf32>
    %324 = vector.extract_strided_slice %0 {offsets = [12, 0], sizes = [1, 32], strides = [1, 1]} : vector<19x128xf32> to vector<1x32xf32>
    %325 = vector.broadcast %324 : vector<1x32xf32> to vector<16x32xf32>
    %326 = arith.addf %323, %325 : vector<16x32xf32>
    %327 = arith.addf %280, %326 : vector<16x32xf32>
    %328 = vector.extract_strided_slice %0 {offsets = [13, 0], sizes = [1, 32], strides = [1, 1]} : vector<19x128xf32> to vector<1x32xf32>
    %329 = vector.extract_strided_slice %0 {offsets = [14, 0], sizes = [1, 32], strides = [1, 1]} : vector<19x128xf32> to vector<1x32xf32>
    %cst_74 = arith.constant dense<0.000000e+00> : vector<16xf32>
    %330 = vector.multi_reduction <add>, %327, %cst_74 [1] : vector<16x32xf32> to vector<16xf32>
    %331 = vector.shape_cast %330 : vector<16xf32> to vector<16x1xf32>
    %cst_75 = arith.constant 3.200000e+01 : f32
    %332 = vector.broadcast %cst_75 : f32 to vector<16x1xf32>
    %333 = arith.divf %331, %332 : vector<16x1xf32>
    %334 = vector.broadcast %333 : vector<16x1xf32> to vector<16x32xf32>
    %335 = arith.subf %327, %334 : vector<16x32xf32>
    %336 = arith.mulf %335, %335 : vector<16x32xf32>
    %cst_76 = arith.constant dense<0.000000e+00> : vector<16xf32>
    %337 = vector.multi_reduction <add>, %336, %cst_76 [1] : vector<16x32xf32> to vector<16xf32>
    %338 = vector.shape_cast %337 : vector<16xf32> to vector<16x1xf32>
    %cst_77 = arith.constant 3.200000e+01 : f32
    %339 = vector.broadcast %cst_77 : f32 to vector<16x1xf32>
    %340 = arith.divf %338, %339 : vector<16x1xf32>
    %341 = vector.broadcast %333 : vector<16x1xf32> to vector<16x32xf32>
    %342 = arith.subf %327, %341 : vector<16x32xf32>
    %cst_78 = arith.constant 9.99999996E-13 : f32
    %343 = vector.broadcast %cst_78 : f32 to vector<16x1xf32>
    %344 = arith.addf %340, %343 : vector<16x1xf32>
    %345 = math.rsqrt %344 : vector<16x1xf32>
    %346 = vector.broadcast %345 : vector<16x1xf32> to vector<16x32xf32>
    %347 = arith.mulf %342, %346 : vector<16x32xf32>
    %348 = vector.broadcast %328 : vector<1x32xf32> to vector<16x32xf32>
    %349 = arith.mulf %347, %348 : vector<16x32xf32>
    %350 = vector.broadcast %329 : vector<1x32xf32> to vector<16x32xf32>
    %351 = arith.addf %349, %350 : vector<16x32xf32>
    %c1_79 = arith.constant 1 : index
    %c0_80 = arith.constant 0 : index
    %c0_81 = arith.constant 0 : index
    %352 = vector.load %arg5[%c1_79, %c0_80, %c0_81] : memref<2x32x64xf32, #tpu.memory_space<vmem>>, vector<1x32x64xf32>
    %353 = vector.shape_cast %352 : vector<1x32x64xf32> to vector<32x64xf32>
    %cst_82 = arith.constant dense<0.000000e+00> : vector<16x64xf32>
    %354 = tpu.matmul %351, %353, %cst_82 {dimension_numbers = #tpu.dot_dimension_numbers<[1], [0], [0], [1], [0, 0, 1, 1], [], []>} : vector<16x32xf32>, vector<32x64xf32>, vector<16x64xf32> -> vector<16x64xf32>
    %355 = vector.extract_strided_slice %0 {offsets = [15, 0], sizes = [1, 64], strides = [1, 1]} : vector<19x128xf32> to vector<1x64xf32>
    %356 = vector.broadcast %355 : vector<1x64xf32> to vector<16x64xf32>
    %357 = arith.addf %354, %356 : vector<16x64xf32>
    %358 = arith.mulf %357, %357 : vector<16x64xf32>
    %359 = arith.mulf %357, %358 : vector<16x64xf32>
    %cst_83 = arith.constant 4.471500e-02 : f32
    %360 = vector.broadcast %cst_83 : f32 to vector<16x64xf32>
    %361 = arith.mulf %360, %359 : vector<16x64xf32>
    %362 = arith.addf %357, %361 : vector<16x64xf32>
    %cst_84 = arith.constant 0.797884583 : f32
    %363 = vector.broadcast %cst_84 : f32 to vector<16x64xf32>
    %364 = arith.mulf %363, %362 : vector<16x64xf32>
    %365 = math.tanh %364 : vector<16x64xf32>
    %cst_85 = arith.constant 1.000000e+00 : f32
    %366 = vector.broadcast %cst_85 : f32 to vector<16x64xf32>
    %367 = arith.addf %366, %365 : vector<16x64xf32>
    %cst_86 = arith.constant 5.000000e-01 : f32
    %368 = vector.broadcast %cst_86 : f32 to vector<16x64xf32>
    %369 = arith.mulf %368, %367 : vector<16x64xf32>
    %370 = arith.mulf %357, %369 : vector<16x64xf32>
    %c1_87 = arith.constant 1 : index
    %c0_88 = arith.constant 0 : index
    %c0_89 = arith.constant 0 : index
    %371 = vector.load %arg6[%c1_87, %c0_88, %c0_89] : memref<2x64x32xf32, #tpu.memory_space<vmem>>, vector<1x64x32xf32>
    %372 = vector.shape_cast %371 : vector<1x64x32xf32> to vector<64x32xf32>
    %cst_90 = arith.constant dense<0.000000e+00> : vector<16x32xf32>
    %373 = tpu.matmul %370, %372, %cst_90 {dimension_numbers = #tpu.dot_dimension_numbers<[1], [0], [0], [1], [0, 0, 1, 1], [], []>} : vector<16x64xf32>, vector<64x32xf32>, vector<16x32xf32> -> vector<16x32xf32>
    %374 = vector.extract_strided_slice %0 {offsets = [16, 0], sizes = [1, 32], strides = [1, 1]} : vector<19x128xf32> to vector<1x32xf32>
    %375 = vector.broadcast %374 : vector<1x32xf32> to vector<16x32xf32>
    %376 = arith.addf %373, %375 : vector<16x32xf32>
    %377 = arith.addf %351, %376 : vector<16x32xf32>
    %378 = vector.extract_strided_slice %0 {offsets = [17, 0], sizes = [1, 32], strides = [1, 1]} : vector<19x128xf32> to vector<1x32xf32>
    %379 = vector.extract_strided_slice %0 {offsets = [18, 0], sizes = [1, 32], strides = [1, 1]} : vector<19x128xf32> to vector<1x32xf32>
    %cst_91 = arith.constant dense<0.000000e+00> : vector<16xf32>
    %380 = vector.multi_reduction <add>, %377, %cst_91 [1] : vector<16x32xf32> to vector<16xf32>
    %381 = vector.shape_cast %380 : vector<16xf32> to vector<16x1xf32>
    %cst_92 = arith.constant 3.200000e+01 : f32
    %382 = vector.broadcast %cst_92 : f32 to vector<16x1xf32>
    %383 = arith.divf %381, %382 : vector<16x1xf32>
    %384 = vector.broadcast %383 : vector<16x1xf32> to vector<16x32xf32>
    %385 = arith.subf %377, %384 : vector<16x32xf32>
    %386 = arith.mulf %385, %385 : vector<16x32xf32>
    %cst_93 = arith.constant dense<0.000000e+00> : vector<16xf32>
    %387 = vector.multi_reduction <add>, %386, %cst_93 [1] : vector<16x32xf32> to vector<16xf32>
    %388 = vector.shape_cast %387 : vector<16xf32> to vector<16x1xf32>
    %cst_94 = arith.constant 3.200000e+01 : f32
    %389 = vector.broadcast %cst_94 : f32 to vector<16x1xf32>
    %390 = arith.divf %388, %389 : vector<16x1xf32>
    %391 = vector.broadcast %383 : vector<16x1xf32> to vector<16x32xf32>
    %392 = arith.subf %377, %391 : vector<16x32xf32>
    %cst_95 = arith.constant 9.99999996E-13 : f32
    %393 = vector.broadcast %cst_95 : f32 to vector<16x1xf32>
    %394 = arith.addf %390, %393 : vector<16x1xf32>
    %395 = math.rsqrt %394 : vector<16x1xf32>
    %396 = vector.broadcast %395 : vector<16x1xf32> to vector<16x32xf32>
    %397 = arith.mulf %392, %396 : vector<16x32xf32>
    %398 = vector.broadcast %378 : vector<1x32xf32> to vector<16x32xf32>
    %399 = arith.mulf %397, %398 : vector<16x32xf32>
    %400 = vector.broadcast %379 : vector<1x32xf32> to vector<16x32xf32>
    %401 = arith.addf %399, %400 : vector<16x32xf32>
    %402 = vector.extract_strided_slice %401 {offsets = [0, 0], sizes = [1, 32], strides = [1, 1]} : vector<16x32xf32> to vector<1x32xf32>
    %403 = vector.extract_strided_slice %401 {offsets = [8, 0], sizes = [1, 32], strides = [1, 1]} : vector<16x32xf32> to vector<1x32xf32>
    %404 = tpu.concatenate %402, %403 in 0 : vector<1x32xf32>, vector<1x32xf32> -> vector<2x32xf32>
    %c0_96 = arith.constant 0 : index
    %c0_97 = arith.constant 0 : index
    %405 = vector.load %arg8[%c0_96, %c0_97] : memref<32x32xf32, #tpu.memory_space<vmem>>, vector<32x32xf32>
    %cst_98 = arith.constant dense<0.000000e+00> : vector<2x32xf32>
    %406 = tpu.matmul %404, %405, %cst_98 {dimension_numbers = #tpu.dot_dimension_numbers<[1], [0], [0], [1], [0, 0, 1, 1], [], []>} : vector<2x32xf32>, vector<32x32xf32>, vector<2x32xf32> -> vector<2x32xf32>
    %407 = vector.extract_strided_slice %0 {offsets = [2, 0], sizes = [1, 32], strides = [1, 1]} : vector<19x128xf32> to vector<1x32xf32>
    %408 = vector.broadcast %407 : vector<1x32xf32> to vector<2x32xf32>
    %409 = arith.addf %406, %408 : vector<2x32xf32>
    %410 = math.tanh %409 : vector<2x32xf32>
    %411 = vector.extract_strided_slice %410 {offsets = [0, 0], sizes = [1, 32], strides = [1, 1]} : vector<2x32xf32> to vector<1x32xf32>
    %412 = vector.extract_strided_slice %410 {offsets = [1, 0], sizes = [1, 32], strides = [1, 1]} : vector<2x32xf32> to vector<1x32xf32>
    %413 = arith.mulf %411, %412 : vector<1x32xf32>
    %cst_99 = arith.constant dense<0.000000e+00> : vector<1xf32>
    %414 = vector.multi_reduction <add>, %413, %cst_99 [1] : vector<1x32xf32> to vector<1xf32>
    %415 = vector.shape_cast %414 : vector<1xf32> to vector<1x1xf32>
    %416 = arith.mulf %411, %411 : vector<1x32xf32>
    %cst_100 = arith.constant dense<0.000000e+00> : vector<1xf32>
    %417 = vector.multi_reduction <add>, %416, %cst_100 [1] : vector<1x32xf32> to vector<1xf32>
    %418 = vector.shape_cast %417 : vector<1xf32> to vector<1x1xf32>
    %419 = math.sqrt %418 : vector<1x1xf32>
    %420 = arith.mulf %412, %412 : vector<1x32xf32>
    %cst_101 = arith.constant dense<0.000000e+00> : vector<1xf32>
    %421 = vector.multi_reduction <add>, %420, %cst_101 [1] : vector<1x32xf32> to vector<1xf32>
    %422 = vector.shape_cast %421 : vector<1xf32> to vector<1x1xf32>
    %423 = math.sqrt %422 : vector<1x1xf32>
    %424 = arith.mulf %419, %423 : vector<1x1xf32>
    %cst_102 = arith.constant 9.99999993E-9 : f32
    %425 = vector.broadcast %cst_102 : f32 to vector<1x1xf32>
    %426 = arith.maximumf %424, %425 : vector<1x1xf32>
    %427 = arith.divf %415, %426 : vector<1x1xf32>
    %c0_103 = arith.constant 0 : index
    %c0_104 = arith.constant 0 : index
    %428 = vector.load %arg9[%c0_103, %c0_104] : memref<1x1xf32, #tpu.memory_space<vmem>>, vector<1x1xf32>
    tpu.vector_store %arg9[%c0_103, %c0_104], %427 {strides = array<i32>} : memref<1x1xf32, #tpu.memory_space<vmem>>, vector<1x1xf32>,
    return
  }
}

</mosaic_0001>

<llo_original>
// kernel: text_similarity.1
$region0: #{text_similarity.1}
  #allocation0 [shape = 'u32[]', space=smem, size = 0x4, offset = 0x4, fixed_abs, tag = 'smem constant byte address 0x4 - core index']
  #allocation1 [shape = 'u32[144,128]{1,0:T(1,128)}', space=vmem, size = 0x12000, scoped, tag = 'internal scratch']
  %s0 = inlined_call_operand.vmem [shape: s32[16], index: 0, kind: input, shape index: {}]
  %s1 = inlined_call_operand.vmem [shape: f32[128,32], index: 1, kind: input, shape index: {}]
  %s2 = inlined_call_operand.vmem [shape: f32[16,32], index: 2, kind: input, shape index: {}]
  %s3 = inlined_call_operand.vmem [shape: f32[2,32,96], index: 3, kind: input, shape index: {}]
  %s4 = inlined_call_operand.vmem [shape: f32[2,32,32], index: 4, kind: input, shape index: {}]
  %s5 = inlined_call_operand.vmem [shape: f32[2,32,64], index: 5, kind: input, shape index: {}]
  %s6 = inlined_call_operand.vmem [shape: f32[2,64,32], index: 6, kind: input, shape index: {}]
  %s7 = inlined_call_operand.vmem [shape: f32[19,128], index: 7, kind: input, shape index: {}]
  %s8 = inlined_call_operand.vmem [shape: f32[32,32], index: 8, kind: input, shape index: {}]
  %s9 = inlined_call_operand.hbm [shape: f32[1,1], index: 9, kind: output, shape index: {}]
  %s10 = sld [smem:[#allocation0]]
  $region50: #{text_similarity.1} parent=0
    _
  %s12 = ssub.s32 1, %s10
  %s13 = scalar_select 0, %s12, %s10
  $region1: #{text_similarity.1} parent=0
    #allocation2 [shape = 'u8[512]{0}', space=smem, size = 0x200, scoped, tag = 'input window, operand 0, single buffered']
    #allocation3 [shape = 's32[1]{0}', space=sflag, size = 0x4, scoped, tag = 'scoped memory for text_similarity.1']
    #allocation4 [shape = 's32[1]{0}', space=sflag, size = 0x4, scoped, tag = 'scoped memory for text_similarity.1']
    #allocation5 [shape = 'u8[512]{0}', space=vmem, size = 0x400, scoped, tag = 'output window, operand 0, single buffered']
    %14 = vsyncpa [#allocation4], 0
    %15 = vsyncpa [#allocation3], 0
    // Predicated region
    $region2: #{text_similarity.1} parent=1 // pred_check
      _
    $region3: #{text_similarity.1} parent=1 // pred_check_branch
      %17 = sbr.rel (0) target = $region5
    $region4: #{text_similarity.1} parent=1 // pred_region
      %s19 = ssub.s32 16, 16
      %20 = vsyncadd [#allocation4], %s19
      %s22 = sshll.u32 %s0, 4
      %s23 = int_to_ptr.vmem [resolvable:$true] %s22
      %25 = dma.vmem_to_smem %s23, 16, [#allocation2], [#allocation4]
    $region5: #{text_similarity.1} parent=1 // pred_fallthru
      _
    // Predicated region
    $region6: #{text_similarity.1} parent=1 // pred_check
      _
    $region7: #{text_similarity.1} parent=1 // pred_check_branch
      %27 = sbr.rel (0) target = $region9
    $region8: #{text_similarity.1} parent=1 // pred_region
      _
    $region9: #{text_similarity.1} parent=1 // pred_fallthru
      _
    // Predicated region
    $region10: #{text_similarity.1} parent=1 // pred_check
      _
    $region11: #{text_similarity.1} parent=1 // pred_check_branch
      %29 = sbr.rel (0) target = $region13
    $region12: #{text_similarity.1} parent=1 // pred_region
      _
    $region13: #{text_similarity.1} parent=1 // pred_fallthru
      _
    // Predicated region
    $region14: #{text_similarity.1} parent=1 // pred_check
      _
    $region15: #{text_similarity.1} parent=1 // pred_check_branch
      %31 = sbr.rel (0) target = $region17
    $region16: #{text_similarity.1} parent=1 // pred_region
      _
    $region17: #{text_similarity.1} parent=1 // pred_fallthru
      _
    // Predicated region
    $region18: #{text_similarity.1} parent=1 // pred_check
      _
    $region19: #{text_similarity.1} parent=1 // pred_check_branch
      %33 = sbr.rel (0) target = $region21
    $region20: #{text_similarity.1} parent=1 // pred_region
      _
    $region21: #{text_similarity.1} parent=1 // pred_fallthru
      _
    // Predicated region
    $region22: #{text_similarity.1} parent=1 // pred_check
      _
    $region23: #{text_similarity.1} parent=1 // pred_check_branch
      %35 = sbr.rel (0) target = $region25
    $region24: #{text_similarity.1} parent=1 // pred_region
      _
    $region25: #{text_similarity.1} parent=1 // pred_fallthru
      _
    // Predicated region
    $region26: #{text_similarity.1} parent=1 // pred_check
      _
    $region27: #{text_similarity.1} parent=1 // pred_check_branch
      %37 = sbr.rel (0) target = $region29
    $region28: #{text_similarity.1} parent=1 // pred_region
      _
    $region29: #{text_similarity.1} parent=1 // pred_fallthru
      _
    // Predicated region
    $region30: #{text_similarity.1} parent=1 // pred_check
      _
    $region31: #{text_similarity.1} parent=1 // pred_check_branch
      %39 = sbr.rel (0) target = $region33
    $region32: #{text_similarity.1} parent=1 // pred_region
      _
    $region33: #{text_similarity.1} parent=1 // pred_fallthru
      _
    // Predicated region
    $region34: #{text_similarity.1} parent=1 // pred_check
      _
    $region35: #{text_similarity.1} parent=1 // pred_check_branch
      %41 = sbr.rel (0) target = $region37
    $region36: #{text_similarity.1} parent=1 // pred_region
      _
    $region37: #{text_similarity.1} parent=1 // pred_fallthru
      _
    // Predicated region
    $region38: #{text_similarity.1} parent=1 // pred_check
      _
    $region39: #{text_similarity.1} parent=1 // pred_check_branch
      %43 = sbr.rel (0) target = $region41
    $region40: #{text_similarity.1} parent=1 // pred_region
      %44 = dma.done [#allocation4], 16
    $region41: #{text_similarity.1} parent=1 // pred_fallthru
      _
    %45 = sfence
    %v46 = vld [vmem:[%s7] sm:$0xff]
    %v47 = vld [vmem:[%s7 + $0x8] sm:$0xff]
    %v48 = vld [vmem:[%s7 + $0x10] sm:$0x7]
    %v49 = vlaneseq
    %v50 = vshrl.u32 %v49, 7
    %v51 = vadd.s32 %v50, 8
    %v52 = vlaneseq
    %v53 = vand.u32 %v52, 127
    %vm54 = vcmp.eq.s32.totalorder %v50, 0
    %vm55 = vcmp.eq.s32.totalorder %v51, 0
    %s56 = sld [smem:[#allocation2]]
    %v57 = vstv %s56
    %vm58 = vcmp.eq.s32.totalorder %v53, %v57
    %vm59 = vmand %vm54, %vm58
    %vm60 = vmand %vm55, %vm58
    %v61 = vsel %vm59, 1.0, 0.0
    %v62 = vsel %vm60, 1.0, 0.0
    %vm63 = vcmp.eq.s32.totalorder %v50, 1
    %vm64 = vcmp.eq.s32.totalorder %v51, 1
    %s65 = sld [smem:[#allocation2 + $0x1]]
    %v66 = vstv %s65
    %vm67 = vcmp.eq.s32.totalorder %v53, %v66
    %vm68 = vmand %vm63, %vm67
    %vm69 = vmand %vm64, %vm67
    %v70 = vsel %vm68, 1.0, %v61
    %v71 = vsel %vm69, 1.0, %v62
    %vm72 = vcmp.eq.s32.totalorder %v50, 2
    %vm73 = vcmp.eq.s32.totalorder %v51, 2
    %s74 = sld [smem:[#allocation2 + $0x2]]
    %v75 = vstv %s74
    %vm76 = vcmp.eq.s32.totalorder %v53, %v75
    %vm77 = vmand %vm72, %vm76
    %vm78 = vmand %vm73, %vm76
    %v79 = vsel %vm77, 1.0, %v70
    %v80 = vsel %vm78, 1.0, %v71
    %vm81 = vcmp.eq.s32.totalorder %v50, 3
    %vm82 = vcmp.eq.s32.totalorder %v51, 3
    %s83 = sld [smem:[#allocation2 + $0x3]]
    %v84 = vstv %s83
    %vm85 = vcmp.eq.s32.totalorder %v53, %v84
    %vm86 = vmand %vm81, %vm85
    %vm87 = vmand %vm82, %vm85
    %v88 = vsel %vm86, 1.0, %v79
    %v89 = vsel %vm87, 1.0, %v80
    %vm90 = vcmp.eq.s32.totalorder %v50, 4
    %vm91 = vcmp.eq.s32.totalorder %v51, 4
    %s92 = sld [smem:[#allocation2 + $0x4]]
    %v93 = vstv %s92
    %vm94 = vcmp.eq.s32.totalorder %v53, %v93
    %vm95 = vmand %vm90, %vm94
    %vm96 = vmand %vm91, %vm94
    %v97 = vsel %vm95, 1.0, %v88
    %v98 = vsel %vm96, 1.0, %v89
    %vm99 = vcmp.eq.s32.totalorder %v50, 5
    %vm100 = vcmp.eq.s32.totalorder %v51, 5
    %s101 = sld [smem:[#allocation2 + $0x5]]
    %v102 = vstv %s101
    %vm103 = vcmp.eq.s32.totalorder %v53, %v102
    %vm104 = vmand %vm99, %vm103
    %vm105 = vmand %vm100, %vm103
    %v106 = vsel %vm104, 1.0, %v97
    %v107 = vsel %vm105, 1.0, %v98
    %vm108 = vcmp.eq.s32.totalorder %v50, 6
    %vm109 = vcmp.eq.s32.totalorder %v51, 6
    %s110 = sld [smem:[#allocation2 + $0x6]]
    %v111 = vstv %s110
    %vm112 = vcmp.eq.s32.totalorder %v53, %v111
    %vm113 = vmand %vm108, %vm112
    %vm114 = vmand %vm109, %vm112
    %v115 = vsel %vm113, 1.0, %v106
    %v116 = vsel %vm114, 1.0, %v107
    %vm117 = vcmp.eq.s32.totalorder %v50, 7
    %vm118 = vcmp.eq.s32.totalorder %v51, 7
    %s119 = sld [smem:[#allocation2 + $0x7]]
    %v120 = vstv %s119
    %vm121 = vcmp.eq.s32.totalorder %v53, %v120
    %vm122 = vmand %vm117, %vm121
    %vm123 = vmand %vm118, %vm121
    %v124 = vsel %vm122, 1.0, %v115
    %v125 = vsel %vm123, 1.0, %v116
    %vm126 = vcmp.eq.s32.totalorder %v50, 8
    %vm127 = vcmp.eq.s32.totalorder %v51, 8
    %s128 = sld [smem:[#allocation2 + $0x8]]
    %v129 = vstv %s128
    %vm130 = vcmp.eq.s32.totalorder %v53, %v129
    %vm131 = vmand %vm126, %vm130
    %vm132 = vmand %vm127, %vm130
    %v133 = vsel %vm131, 1.0, %v124
    %v134 = vsel %vm132, 1.0, %v125
    %vm135 = vcmp.eq.s32.totalorder %v50, 9
    %vm136 = vcmp.eq.s32.totalorder %v51, 9
    %s137 = sld [smem:[#allocation2 + $0x9]]
    %v138 = vstv %s137
    %vm139 = vcmp.eq.s32.totalorder %v53, %v138
    %vm140 = vmand %vm135, %vm139
    %vm141 = vmand %vm136, %vm139
    %v142 = vsel %vm140, 1.0, %v133
    %v143 = vsel %vm141, 1.0, %v134
    %vm144 = vcmp.eq.s32.totalorder %v50, 10
    %vm145 = vcmp.eq.s32.totalorder %v51, 10
    %s146 = sld [smem:[#allocation2 + $0xa]]
    %v147 = vstv %s146
    %vm148 = vcmp.eq.s32.totalorder %v53, %v147
    %vm149 = vmand %vm144, %vm148
    %vm150 = vmand %vm145, %vm148
    %v151 = vsel %vm149, 1.0, %v142
    %v152 = vsel %vm150, 1.0, %v143
    %vm153 = vcmp.eq.s32.totalorder %v50, 11
    %vm154 = vcmp.eq.s32.totalorder %v51, 11
    %s155 = sld [smem:[#allocation2 + $0xb]]
    %v156 = vstv %s155
    %vm157 = vcmp.eq.s32.totalorder %v53, %v156
    %vm158 = vmand %vm153, %vm157
    %vm159 = vmand %vm154, %vm157
    %v160 = vsel %vm158, 1.0, %v151
    %v161 = vsel %vm159, 1.0, %v152
    %vm162 = vcmp.eq.s32.totalorder %v50, 12
    %vm163 = vcmp.eq.s32.totalorder %v51, 12
    %s164 = sld [smem:[#allocation2 + $0xc]]
    %v165 = vstv %s164
    %vm166 = vcmp.eq.s32.totalorder %v53, %v165
    %vm167 = vmand %vm162, %vm166
    %vm168 = vmand %vm163, %vm166
    %v169 = vsel %vm167, 1.0, %v160
    %v170 = vsel %vm168, 1.0, %v161
    %vm171 = vcmp.eq.s32.totalorder %v50, 13
    %vm172 = vcmp.eq.s32.totalorder %v51, 13
    %s173 = sld [smem:[#allocation2 + $0xd]]
    %v174 = vstv %s173
    %vm175 = vcmp.eq.s32.totalorder %v53, %v174
    %vm176 = vmand %vm171, %vm175
    %vm177 = vmand %vm172, %vm175
    %v178 = vsel %vm176, 1.0, %v169
    %v179 = vsel %vm177, 1.0, %v170
    %vm180 = vcmp.eq.s32.totalorder %v50, 14
    %vm181 = vcmp.eq.s32.totalorder %v51, 14
    %s182 = sld [smem:[#allocation2 + $0xe]]
    %v183 = vstv %s182
    %vm184 = vcmp.eq.s32.totalorder %v53, %v183
    %vm185 = vmand %vm180, %vm184
    %vm186 = vmand %vm181, %vm184
    %v187 = vsel %vm185, 1.0, %v178
    %v188 = vsel %vm186, 1.0, %v179
    %vm189 = vcmp.eq.s32.totalorder %v50, 15
    %vm190 = vcmp.eq.s32.totalorder %v51, 15
    %s191 = sld [smem:[#allocation2 + $0xf]]
    %v192 = vstv %s191
    %vm193 = vcmp.eq.s32.totalorder %v53, %v192
    %vm194 = vmand %vm189, %vm193
    %vm195 = vmand %vm190, %vm193
    %v196 = vsel %vm194, 1.0, %v187
    %v197 = vsel %vm195, 1.0, %v188
    %v198 = vld [vmem:[%s1] sm:$0xff]
    %v199 = vld [vmem:[%s1 + $0x8] sm:$0xff]
    %v200 = vld [vmem:[%s1 + $0x10] sm:$0xff]
    %v201 = vld [vmem:[%s1 + $0x18] sm:$0xff]
    %v202 = vld [vmem:[%s1 + $0x20] sm:$0xff]
    %v203 = vld [vmem:[%s1 + $0x28] sm:$0xff]
    %v204 = vld [vmem:[%s1 + $0x30] sm:$0xff]
    %v205 = vld [vmem:[%s1 + $0x38] sm:$0xff]
    %v206 = vld [vmem:[%s1 + $0x40] sm:$0xff]
    %v207 = vld [vmem:[%s1 + $0x48] sm:$0xff]
    %v208 = vld [vmem:[%s1 + $0x50] sm:$0xff]
    %v209 = vld [vmem:[%s1 + $0x58] sm:$0xff]
    %v210 = vld [vmem:[%s1 + $0x60] sm:$0xff]
    %v211 = vld [vmem:[%s1 + $0x68] sm:$0xff]
    %v212 = vld [vmem:[%s1 + $0x70] sm:$0xff]
    %v213 = vld [vmem:[%s1 + $0x78] sm:$0xff]
    %v214 = vld [vmem:[%s2] sm:$0xff]
    %v215 = vld [vmem:[%s2 + $0x8] sm:$0xff]
    %216 = vmatprep.subr.mxu0 0.0
    %217 = vmatpush1.msra.mxu0 %v198
    %218 = vmatprep.subr.mxu0 0.0
    %219 = vmatpush1.msra.mxu0 %v199
    %220 = vmatprep.subr.mxu0 0.0
    %221 = vmatpush1.msra.mxu0 %v200
    %222 = vmatprep.subr.mxu0 0.0
    %223 = vmatpush1.msra.mxu0 %v201
    %224 = vmatprep.subr.mxu0 0.0
    %225 = vmatpush1.msra.mxu0 %v202
    %226 = vmatprep.subr.mxu0 0.0
    %227 = vmatpush1.msra.mxu0 %v203
    %228 = vmatprep.subr.mxu0 0.0
    %229 = vmatpush1.msra.mxu0 %v204
    %230 = vmatprep.subr.mxu0 0.0
    %231 = vmatpush1.msra.mxu0 %v205
    %232 = vmatprep.subr.mxu0 0.0
    %233 = vmatpush1.msra.mxu0 %v206
    %234 = vmatprep.subr.mxu0 0.0
    %235 = vmatpush1.msra.mxu0 %v207
    %236 = vmatprep.subr.mxu0 0.0
    %237 = vmatpush1.msra.mxu0 %v208
    %238 = vmatprep.subr.mxu0 0.0
    %239 = vmatpush1.msra.mxu0 %v209
    %240 = vmatprep.subr.mxu0 0.0
    %241 = vmatpush1.msra.mxu0 %v210
    %242 = vmatprep.subr.mxu0 0.0
    %243 = vmatpush1.msra.mxu0 %v211
    %244 = vmatprep.subr.mxu0 0.0
    %245 = vmatpush1.msra.mxu0 %v212
    %246 = vmatprep.subr.mxu0 0.0
    %247 = vmatpush1.msra.mxu0 %v213
    %248 = vmatprep.subr.mxu0 0.0
    %249 = vmatpush1.msra.mxu0 0.0
    %250 = vmatprep.subr.mxu0 0.0
    %251 = vmatpush1.msra.mxu0 0.0
    %252 = vmatprep.subr.mxu0 0.0
    %253 = vmatpush1.msra.mxu0 0.0
    %254 = vmatprep.subr.mxu0 0.0
    %255 = vmatpush1.msra.mxu0 0.0
    %256 = vmatprep.subr.mxu0 0.0
    %257 = vmatpush1.msra.mxu0 0.0
    %258 = vmatprep.subr.mxu0 0.0
    %259 = vmatpush1.msra.mxu0 0.0
    %260 = vmatprep.subr.mxu0 0.0
    %261 = vmatpush1.msra.mxu0 0.0
    %262 = vmatprep.subr.mxu0 0.0
    %263 = vmatpush1.msra.mxu0 0.0
    %264 = vmatprep.subr.mxu0 0.0
    %265 = vmatpush1.msra.mxu0 0.0
    %266 = vmatprep.subr.mxu0 0.0
    %267 = vmatpush1.msra.mxu0 0.0
    %268 = vmatprep.subr.mxu0 0.0
    %269 = vmatpush1.msra.mxu0 0.0
    %270 = vmatprep.subr.mxu0 0.0
    %271 = vmatpush1.msra.mxu0 0.0
    %272 = vmatprep.subr.mxu0 0.0
    %273 = vmatpush1.msra.mxu0 0.0
    %274 = vmatprep.subr.mxu0 0.0
    %275 = vmatpush1.msra.mxu0 0.0
    %276 = vmatprep.subr.mxu0 0.0
    %277 = vmatpush1.msra.mxu0 0.0
    %278 = vmatprep.subr.mxu0 0.0
    %279 = vmatpush1.msra.mxu0 0.0
    %280 = vmatprep.mubr.f32.mxu0 0.0
    %281 = vmatmul.mubr.f32.gmra.mrb[0].mxu0 %v196
    %v282 = vpop.f32.mrb[0].mxu0
    %v283 = vadd.f32 %v214, %v282
    %v284 = vpop.f32.mrb[0].mxu0
    %285 = vmatprep.mubr.f32.mxu0 0.0
    %286 = vmatmul.mubr.f32.gmra.mrb[0].mxu0 %v197
    %v287 = vpop.f32.mrb[0].mxu0
    %v288 = vadd.f32 %v215, %v287
    %v289 = vpop.f32.mrb[0].mxu0
    %290 = vdwg.mxu0
    %vm291 = vcmask 261120
    %v292 = vsel %vm291, %v283, 0.0
    %293 = vadd.xlane.f32.xlu0 %v292
    %v294 = vpop.xlane.xlu0 %293
    %v295 = vsel %vm291, %v288, 0.0
    %296 = vadd.xlane.f32.xlu0 %v295
    %v297 = vpop.xlane.xlu0 %296
    %v298 = vrcp.pop 32.0
    %v299 = vmul.f32 %v294, %v298
    %v300 = vmul.f32 %v297, %v298
    %v301 = vsub.f32 %v283, %v299
    %v302 = vsub.f32 %v288, %v300
    %v303 = vmul.f32 %v301, %v301
    %v304 = vmul.f32 %v302, %v302
    %v305 = vsel %vm291, %v303, 0.0
    %306 = vadd.xlane.f32.xlu0 %v305
    %v307 = vpop.xlane.xlu0 %306
    %v308 = vsel %vm291, %v304, 0.0
    %309 = vadd.xlane.f32.xlu0 %v308
    %v310 = vpop.xlane.xlu0 %309
    %v311 = vmul.f32 %v307, %v298
    %v312 = vmul.f32 %v310, %v298
    %v313 = vadd.f32 %v311, 1e-12
    %v314 = vadd.f32 %v312, 1e-12
    %v315 = vrsqrt.pop %v313
    %v316 = vrsqrt.pop %v314
    %v317 = vmul.f32 %v301, %v315
    %v318 = vmul.f32 %v302, %v316
    %v319 = vlaneseq
    %v320 = vshrl.u32 %v319, 7
    %v321 = vsub.s32 0, %v320
    %v322 = vrot.slane %v46, %v321
    %v323 = vmul.f32 %v317, %v322
    %v324 = vmul.f32 %v318, %v322
    %v325 = vlaneseq
    %v326 = vshrl.u32 %v325, 7
    %v327 = vsub.s32 1, %v326
    %v328 = vrot.slane %v46, %v327
    %v329 = vadd.f32 %v323, %v328
    %v330 = vadd.f32 %v324, %v328
    %v331 = vld [vmem:[%s3] sm:$0xff]
    %v332 = vld [vmem:[%s3 + $0x8] sm:$0xff]
    %v333 = vld [vmem:[%s3 + $0x10] sm:$0xff]
    %v334 = vld [vmem:[%s3 + $0x18] sm:$0xff]
    %v335 = vlaneseq
    %v336 = vshrl.u32 %v335, 7
    %v337 = vsub.s32 3, %v336
    %v338 = vrot.slane %v46, %v337
    %v340 = vsel %vm291, %v329, 0
    %v343 = vsel %vm291, %v330, 0
    %345 = vmatprep.subr.mxu0 0.0
    %346 = vmatpush1.msra.mxu0 %v331
    %347 = vmatprep.subr.mxu0 0.0
    %348 = vmatpush1.msra.mxu0 %v332
    %349 = vmatprep.subr.mxu0 0.0
    %350 = vmatpush1.msra.mxu0 %v333
    %351 = vmatprep.subr.mxu0 0.0
    %352 = vmatpush1.msra.mxu0 %v334
    %353 = vmatprep.subr.mxu0 0.0
    %354 = vmatpush1.msra.mxu0 0.0
    %355 = vmatprep.subr.mxu0 0.0
    %356 = vmatpush1.msra.mxu0 0.0
    %357 = vmatprep.subr.mxu0 0.0
    %358 = vmatpush1.msra.mxu0 0.0
    %359 = vmatprep.subr.mxu0 0.0
    %360 = vmatpush1.msra.mxu0 0.0
    %361 = vmatprep.subr.mxu0 0.0
    %362 = vmatpush1.msra.mxu0 0.0
    %363 = vmatprep.subr.mxu0 0.0
    %364 = vmatpush1.msra.mxu0 0.0
    %365 = vmatprep.subr.mxu0 0.0
    %366 = vmatpush1.msra.mxu0 0.0
    %367 = vmatprep.subr.mxu0 0.0
    %368 = vmatpush1.msra.mxu0 0.0
    %369 = vmatprep.subr.mxu0 0.0
    %370 = vmatpush1.msra.mxu0 0.0
    %371 = vmatprep.subr.mxu0 0.0
    %372 = vmatpush1.msra.mxu0 0.0
    %373 = vmatprep.subr.mxu0 0.0
    %374 = vmatpush1.msra.mxu0 0.0
    %375 = vmatprep.subr.mxu0 0.0
    %376 = vmatpush1.msra.mxu0 0.0
    %377 = vmatprep.subr.mxu0 0.0
    %378 = vmatpush1.msra.mxu0 0.0
    %379 = vmatprep.subr.mxu0 0.0
    %380 = vmatpush1.msra.mxu0 0.0
    %381 = vmatprep.subr.mxu0 0.0
    %382 = vmatpush1.msra.mxu0 0.0
    %383 = vmatprep.subr.mxu0 0.0
    %384 = vmatpush1.msra.mxu0 0.0
    %385 = vmatprep.subr.mxu0 0.0
    %386 = vmatpush1.msra.mxu0 0.0
    %387 = vmatprep.subr.mxu0 0.0
    %388 = vmatpush1.msra.mxu0 0.0
    %389 = vmatprep.subr.mxu0 0.0
    %390 = vmatpush1.msra.mxu0 0.0
    %391 = vmatprep.subr.mxu0 0.0
    %392 = vmatpush1.msra.mxu0 0.0
    %393 = vmatprep.subr.mxu0 0.0
    %394 = vmatpush1.msra.mxu0 0.0
    %395 = vmatprep.subr.mxu0 0.0
    %396 = vmatpush1.msra.mxu0 0.0
    %397 = vmatprep.subr.mxu0 0.0
    %398 = vmatpush1.msra.mxu0 0.0
    %399 = vmatprep.subr.mxu0 0.0
    %400 = vmatpush1.msra.mxu0 0.0
    %401 = vmatprep.subr.mxu0 0.0
    %402 = vmatpush1.msra.mxu0 0.0
    %403 = vmatprep.subr.mxu0 0.0
    %404 = vmatpush1.msra.mxu0 0.0
    %405 = vmatprep.subr.mxu0 0.0
    %406 = vmatpush1.msra.mxu0 0.0
    %407 = vmatprep.subr.mxu0 0.0
    %408 = vmatpush1.msra.mxu0 0.0
    %409 = vmatprep.mubr.f32.mxu0 0.0
    %410 = vmatmul.mubr.f32.gmra.mrb[0].mxu0 %v340
    %v411 = vpop.f32.mrb[0].mxu0
    %v412 = vadd.f32 %v338, %v411
    %v413 = vpop.f32.mrb[0].mxu0
    %414 = vmatprep.mubr.f32.mxu0 0.0
    %415 = vmatmul.mubr.f32.gmra.mrb[0].mxu0 %v343
    %v416 = vpop.f32.mrb[0].mxu0
    %v417 = vadd.f32 %v338, %v416
    %v418 = vpop.f32.mrb[0].mxu0
    %419 = vdwg.mxu0
    %422 = vrot.lane.b32.xlu0 %v412, 120
    %v423 = vpop.permute.xlu0 %422
    %424 = vrot.lane.b32.xlu0 %v417, 120
    %v425 = vpop.permute.xlu0 %424
    %426 = vrot.lane.b32.xlu0 %v412, 112
    %v427 = vpop.permute.xlu0 %426
    %428 = vrot.lane.b32.xlu0 %v417, 112
    %v429 = vpop.permute.xlu0 %428
    %430 = vrot.lane.b32.xlu0 %v412, 104
    %v431 = vpop.permute.xlu0 %430
    %432 = vrot.lane.b32.xlu0 %v417, 104
    %v433 = vpop.permute.xlu0 %432
    %434 = vrot.lane.b32.xlu0 %v412, 96
    %v435 = vpop.permute.xlu0 %434
    %vm436 = vcmask 64512
    %v437 = vsel %vm436, %v412, 0
    %v439 = vsel %vm436, %v435, 0
    %441 = vmatprep.subr.mxu0 0.0
    %442 = vmatpush1.xpose.msra.mxu0 %v439
    %443 = vmatprep.subr.mxu0 0.0
    %444 = vmatpush1.xpose.msra.mxu0 0.0
    %445 = vmatprep.subr.mxu0 0.0
    %446 = vmatpush1.xpose.msra.mxu0 0.0
    %447 = vmatprep.subr.mxu0 0.0
    %448 = vmatpush1.xpose.msra.mxu0 0.0
    %449 = vmatprep.subr.mxu0 0.0
    %450 = vmatpush1.xpose.msra.mxu0 0.0
    %451 = vmatprep.subr.mxu0 0.0
    %452 = vmatpush1.xpose.msra.mxu0 0.0
    %453 = vmatprep.subr.mxu0 0.0
    %454 = vmatpush1.xpose.msra.mxu0 0.0
    %455 = vmatprep.subr.mxu0 0.0
    %456 = vmatpush1.xpose.msra.mxu0 0.0
    %457 = vmatprep.subr.mxu0 0.0
    %458 = vmatpush1.xpose.msra.mxu0 0.0
    %459 = vmatprep.subr.mxu0 0.0
    %460 = vmatpush1.xpose.msra.mxu0 0.0
    %461 = vmatprep.subr.mxu0 0.0
    %462 = vmatpush1.xpose.msra.mxu0 0.0
    %463 = vmatprep.subr.mxu0 0.0
    %464 = vmatpush1.xpose.msra.mxu0 0.0
    %465 = vmatprep.subr.mxu0 0.0
    %466 = vmatpush1.xpose.msra.mxu0 0.0
    %467 = vmatprep.subr.mxu0 0.0
    %468 = vmatpush1.xpose.msra.mxu0 0.0
    %469 = vmatprep.subr.mxu0 0.0
    %470 = vmatpush1.xpose.msra.mxu0 0.0
    %471 = vmatprep.subr.mxu0 0.0
    %472 = vmatpush1.xpose.msra.mxu0 0.0
    %473 = vmatprep.subr.mxu0 0.0
    %474 = vmatpush1.xpose.msra.mxu0 0.0
    %475 = vmatprep.subr.mxu0 0.0
    %476 = vmatpush1.xpose.msra.mxu0 0.0
    %477 = vmatprep.subr.mxu0 0.0
    %478 = vmatpush1.xpose.msra.mxu0 0.0
    %479 = vmatprep.subr.mxu0 0.0
    %480 = vmatpush1.xpose.msra.mxu0 0.0
    %481 = vmatprep.subr.mxu0 0.0
    %482 = vmatpush1.xpose.msra.mxu0 0.0
    %483 = vmatprep.subr.mxu0 0.0
    %484 = vmatpush1.xpose.msra.mxu0 0.0
    %485 = vmatprep.subr.mxu0 0.0
    %486 = vmatpush1.xpose.msra.mxu0 0.0
    %487 = vmatprep.subr.mxu0 0.0
    %488 = vmatpush1.xpose.msra.mxu0 0.0
    %489 = vmatprep.subr.mxu0 0.0
    %490 = vmatpush1.xpose.msra.mxu0 0.0
    %491 = vmatprep.subr.mxu0 0.0
    %492 = vmatpush1.xpose.msra.mxu0 0.0
    %493 = vmatprep.subr.mxu0 0.0
    %494 = vmatpush1.xpose.msra.mxu0 0.0
    %495 = vmatprep.subr.mxu0 0.0
    %496 = vmatpush1.xpose.msra.mxu0 0.0
    %497 = vmatprep.subr.mxu0 0.0
    %498 = vmatpush1.xpose.msra.mxu0 0.0
    %499 = vmatprep.subr.mxu0 0.0
    %500 = vmatpush1.xpose.msra.mxu0 0.0
    %501 = vmatprep.subr.mxu0 0.0
    %502 = vmatpush1.xpose.msra.mxu0 0.0
    %503 = vmatprep.subr.mxu0 0.0
    %504 = vmatpush1.xpose.msra.mxu0 0.0
    %505 = vmatprep.mubr.f32.mxu0 0.0
    %506 = vmatmul.mubr.f32.gmra.mrb[0].mxu0 %v437
    %v507 = vpop.f32.mrb[0].mxu0
    %v508 = vadd.f32 0.0, %v507
    %v509 = vpop.f32.mrb[0].mxu0
    %510 = vdwg.mxu0
    %511 = vrot.lane.b32.xlu0 %v417, 96
    %v512 = vpop.permute.xlu0 %511
    %v513 = vsel %vm436, %v417, 0
    %v515 = vsel %vm436, %v512, 0
    %517 = vmatprep.subr.mxu0 0.0
    %518 = vmatpush1.xpose.msra.mxu0 %v515
    %519 = vmatprep.subr.mxu0 0.0
    %520 = vmatpush1.xpose.msra.mxu0 0.0
    %521 = vmatprep.subr.mxu0 0.0
    %522 = vmatpush1.xpose.msra.mxu0 0.0
    %523 = vmatprep.subr.mxu0 0.0
    %524 = vmatpush1.xpose.msra.mxu0 0.0
    %525 = vmatprep.subr.mxu0 0.0
    %526 = vmatpush1.xpose.msra.mxu0 0.0
    %527 = vmatprep.subr.mxu0 0.0
    %528 = vmatpush1.xpose.msra.mxu0 0.0
    %529 = vmatprep.subr.mxu0 0.0
    %530 = vmatpush1.xpose.msra.mxu0 0.0
    %531 = vmatprep.subr.mxu0 0.0
    %532 = vmatpush1.xpose.msra.mxu0 0.0
    %533 = vmatprep.subr.mxu0 0.0
    %534 = vmatpush1.xpose.msra.mxu0 0.0
    %535 = vmatprep.subr.mxu0 0.0
    %536 = vmatpush1.xpose.msra.mxu0 0.0
    %537 = vmatprep.subr.mxu0 0.0
    %538 = vmatpush1.xpose.msra.mxu0 0.0
    %539 = vmatprep.subr.mxu0 0.0
    %540 = vmatpush1.xpose.msra.mxu0 0.0
    %541 = vmatprep.subr.mxu0 0.0
    %542 = vmatpush1.xpose.msra.mxu0 0.0
    %543 = vmatprep.subr.mxu0 0.0
    %544 = vmatpush1.xpose.msra.mxu0 0.0
    %545 = vmatprep.subr.mxu0 0.0
    %546 = vmatpush1.xpose.msra.mxu0 0.0
    %547 = vmatprep.subr.mxu0 0.0
    %548 = vmatpush1.xpose.msra.mxu0 0.0
    %549 = vmatprep.subr.mxu0 0.0
    %550 = vmatpush1.xpose.msra.mxu0 0.0
    %551 = vmatprep.subr.mxu0 0.0
    %552 = vmatpush1.xpose.msra.mxu0 0.0
    %553 = vmatprep.subr.mxu0 0.0
    %554 = vmatpush1.xpose.msra.mxu0 0.0
    %555 = vmatprep.subr.mxu0 0.0
    %556 = vmatpush1.xpose.msra.mxu0 0.0
    %557 = vmatprep.subr.mxu0 0.0
    %558 = vmatpush1.xpose.msra.mxu0 0.0
    %559 = vmatprep.subr.mxu0 0.0
    %560 = vmatpush1.xpose.msra.mxu0 0.0
    %561 = vmatprep.subr.mxu0 0.0
    %562 = vmatpush1.xpose.msra.mxu0 0.0
    %563 = vmatprep.subr.mxu0 0.0
    %564 = vmatpush1.xpose.msra.mxu0 0.0
    %565 = vmatprep.subr.mxu0 0.0
    %566 = vmatpush1.xpose.msra.mxu0 0.0
    %567 = vmatprep.subr.mxu0 0.0
    %568 = vmatpush1.xpose.msra.mxu0 0.0
    %569 = vmatprep.subr.mxu0 0.0
    %570 = vmatpush1.xpose.msra.mxu0 0.0
    %571 = vmatprep.subr.mxu0 0.0
    %572 = vmatpush1.xpose.msra.mxu0 0.0
    %573 = vmatprep.subr.mxu0 0.0
    %574 = vmatpush1.xpose.msra.mxu0 0.0
    %575 = vmatprep.subr.mxu0 0.0
    %576 = vmatpush1.xpose.msra.mxu0 0.0
    %577 = vmatprep.subr.mxu0 0.0
    %578 = vmatpush1.xpose.msra.mxu0 0.0
    %579 = vmatprep.subr.mxu0 0.0
    %580 = vmatpush1.xpose.msra.mxu0 0.0
    %581 = vmatprep.mubr.f32.mxu0 0.0
    %582 = vmatmul.mubr.f32.gmra.mrb[0].mxu0 %v513
    %v583 = vpop.f32.mrb[0].mxu0
    %v584 = vadd.f32 0.0, %v583
    %v585 = vpop.f32.mrb[0].mxu0
    %586 = vdwg.mxu0
    %587 = vrot.lane.b32.xlu0 %v423, 96
    %v588 = vpop.permute.xlu0 %587
    %v589 = vsel %vm436, %v423, 0
    %v591 = vsel %vm436, %v588, 0
    %593 = vmatprep.subr.mxu0 0.0
    %594 = vmatpush1.xpose.msra.mxu0 %v591
    %595 = vmatprep.subr.mxu0 0.0
    %596 = vmatpush1.xpose.msra.mxu0 0.0
    %597 = vmatprep.subr.mxu0 0.0
    %598 = vmatpush1.xpose.msra.mxu0 0.0
    %599 = vmatprep.subr.mxu0 0.0
    %600 = vmatpush1.xpose.msra.mxu0 0.0
    %601 = vmatprep.subr.mxu0 0.0
    %602 = vmatpush1.xpose.msra.mxu0 0.0
    %603 = vmatprep.subr.mxu0 0.0
    %604 = vmatpush1.xpose.msra.mxu0 0.0
    %605 = vmatprep.subr.mxu0 0.0
    %606 = vmatpush1.xpose.msra.mxu0 0.0
    %607 = vmatprep.subr.mxu0 0.0
    %608 = vmatpush1.xpose.msra.mxu0 0.0
    %609 = vmatprep.subr.mxu0 0.0
    %610 = vmatpush1.xpose.msra.mxu0 0.0
    %611 = vmatprep.subr.mxu0 0.0
    %612 = vmatpush1.xpose.msra.mxu0 0.0
    %613 = vmatprep.subr.mxu0 0.0
    %614 = vmatpush1.xpose.msra.mxu0 0.0
    %615 = vmatprep.subr.mxu0 0.0
    %616 = vmatpush1.xpose.msra.mxu0 0.0
    %617 = vmatprep.subr.mxu0 0.0
    %618 = vmatpush1.xpose.msra.mxu0 0.0
    %619 = vmatprep.subr.mxu0 0.0
    %620 = vmatpush1.xpose.msra.mxu0 0.0
    %621 = vmatprep.subr.mxu0 0.0
    %622 = vmatpush1.xpose.msra.mxu0 0.0
    %623 = vmatprep.subr.mxu0 0.0
    %624 = vmatpush1.xpose.msra.mxu0 0.0
    %625 = vmatprep.subr.mxu0 0.0
    %626 = vmatpush1.xpose.msra.mxu0 0.0
    %627 = vmatprep.subr.mxu0 0.0
    %628 = vmatpush1.xpose.msra.mxu0 0.0
    %629 = vmatprep.subr.mxu0 0.0
    %630 = vmatpush1.xpose.msra.mxu0 0.0
    %631 = vmatprep.subr.mxu0 0.0
    %632 = vmatpush1.xpose.msra.mxu0 0.0
    %633 = vmatprep.subr.mxu0 0.0
    %634 = vmatpush1.xpose.msra.mxu0 0.0
    %635 = vmatprep.subr.mxu0 0.0
    %636 = vmatpush1.xpose.msra.mxu0 0.0
    %637 = vmatprep.subr.mxu0 0.0
    %638 = vmatpush1.xpose.msra.mxu0 0.0
    %639 = vmatprep.subr.mxu0 0.0
    %640 = vmatpush1.xpose.msra.mxu0 0.0
    %641 = vmatprep.subr.mxu0 0.0
    %642 = vmatpush1.xpose.msra.mxu0 0.0
    %643 = vmatprep.subr.mxu0 0.0
    %644 = vmatpush1.xpose.msra.mxu0 0.0
    %645 = vmatprep.subr.mxu0 0.0
    %646 = vmatpush1.xpose.msra.mxu0 0.0
    %647 = vmatprep.subr.mxu0 0.0
    %648 = vmatpush1.xpose.msra.mxu0 0.0
    %649 = vmatprep.subr.mxu0 0.0
    %650 = vmatpush1.xpose.msra.mxu0 0.0
    %651 = vmatprep.subr.mxu0 0.0
    %652 = vmatpush1.xpose.msra.mxu0 0.0
    %653 = vmatprep.subr.mxu0 0.0
    %654 = vmatpush1.xpose.msra.mxu0 0.0
    %655 = vmatprep.subr.mxu0 0.0
    %656 = vmatpush1.xpose.msra.mxu0 0.0
    %657 = vmatprep.mubr.f32.mxu0 0.0
    %658 = vmatmul.mubr.f32.gmra.mrb[0].mxu0 %v589
    %v659 = vpop.f32.mrb[0].mxu0
    %v660 = vadd.f32 0.0, %v659
    %v661 = vpop.f32.mrb[0].mxu0
    %662 = vdwg.mxu0
    %663 = vrot.lane.b32.xlu0 %v425, 96
    %v664 = vpop.permute.xlu0 %663
    %v665 = vsel %vm436, %v425, 0
    %v667 = vsel %vm436, %v664, 0
    %669 = vmatprep.subr.mxu0 0.0
    %670 = vmatpush1.xpose.msra.mxu0 %v667
    %671 = vmatprep.subr.mxu0 0.0
    %672 = vmatpush1.xpose.msra.mxu0 0.0
    %673 = vmatprep.subr.mxu0 0.0
    %674 = vmatpush1.xpose.msra.mxu0 0.0
    %675 = vmatprep.subr.mxu0 0.0
    %676 = vmatpush1.xpose.msra.mxu0 0.0
    %677 = vmatprep.subr.mxu0 0.0
    %678 = vmatpush1.xpose.msra.mxu0 0.0
    %679 = vmatprep.subr.mxu0 0.0
    %680 = vmatpush1.xpose.msra.mxu0 0.0
    %681 = vmatprep.subr.mxu0 0.0
    %682 = vmatpush1.xpose.msra.mxu0 0.0
    %683 = vmatprep.subr.mxu0 0.0
    %684 = vmatpush1.xpose.msra.mxu0 0.0
    %685 = vmatprep.subr.mxu0 0.0
    %686 = vmatpush1.xpose.msra.mxu0 0.0
    %687 = vmatprep.subr.mxu0 0.0
    %688 = vmatpush1.xpose.msra.mxu0 0.0
    %689 = vmatprep.subr.mxu0 0.0
    %690 = vmatpush1.xpose.msra.mxu0 0.0
    %691 = vmatprep.subr.mxu0 0.0
    %692 = vmatpush1.xpose.msra.mxu0 0.0
    %693 = vmatprep.subr.mxu0 0.0
    %694 = vmatpush1.xpose.msra.mxu0 0.0
    %695 = vmatprep.subr.mxu0 0.0
    %696 = vmatpush1.xpose.msra.mxu0 0.0
    %697 = vmatprep.subr.mxu0 0.0
    %698 = vmatpush1.xpose.msra.mxu0 0.0
    %699 = vmatprep.subr.mxu0 0.0
    %700 = vmatpush1.xpose.msra.mxu0 0.0
    %701 = vmatprep.subr.mxu0 0.0
    %702 = vmatpush1.xpose.msra.mxu0 0.0
    %703 = vmatprep.subr.mxu0 0.0
    %704 = vmatpush1.xpose.msra.mxu0 0.0
    %705 = vmatprep.subr.mxu0 0.0
    %706 = vmatpush1.xpose.msra.mxu0 0.0
    %707 = vmatprep.subr.mxu0 0.0
    %708 = vmatpush1.xpose.msra.mxu0 0.0
    %709 = vmatprep.subr.mxu0 0.0
    %710 = vmatpush1.xpose.msra.mxu0 0.0
    %711 = vmatprep.subr.mxu0 0.0
    %712 = vmatpush1.xpose.msra.mxu0 0.0
    %713 = vmatprep.subr.mxu0 0.0
    %714 = vmatpush1.xpose.msra.mxu0 0.0
    %715 = vmatprep.subr.mxu0 0.0
    %716 = vmatpush1.xpose.msra.mxu0 0.0
    %717 = vmatprep.subr.mxu0 0.0
    %718 = vmatpush1.xpose.msra.mxu0 0.0
    %719 = vmatprep.subr.mxu0 0.0
    %720 = vmatpush1.xpose.msra.mxu0 0.0
    %721 = vmatprep.subr.mxu0 0.0
    %722 = vmatpush1.xpose.msra.mxu0 0.0
    %723 = vmatprep.subr.mxu0 0.0
    %724 = vmatpush1.xpose.msra.mxu0 0.0
    %725 = vmatprep.subr.mxu0 0.0
    %726 = vmatpush1.xpose.msra.mxu0 0.0
    %727 = vmatprep.subr.mxu0 0.0
    %728 = vmatpush1.xpose.msra.mxu0 0.0
    %729 = vmatprep.subr.mxu0 0.0
    %730 = vmatpush1.xpose.msra.mxu0 0.0
    %731 = vmatprep.subr.mxu0 0.0
    %732 = vmatpush1.xpose.msra.mxu0 0.0
    %733 = vmatprep.mubr.f32.mxu0 0.0
    %734 = vmatmul.mubr.f32.gmra.mrb[0].mxu0 %v665
    %v735 = vpop.f32.mrb[0].mxu0
    %v736 = vadd.f32 0.0, %v735
    %v737 = vpop.f32.mrb[0].mxu0
    %738 = vdwg.mxu0
    %739 = vrot.lane.b32.xlu0 %v427, 96
    %v740 = vpop.permute.xlu0 %739
    %v741 = vsel %vm436, %v427, 0
    %v743 = vsel %vm436, %v740, 0
    %745 = vmatprep.subr.mxu0 0.0
    %746 = vmatpush1.xpose.msra.mxu0 %v743
    %747 = vmatprep.subr.mxu0 0.0
    %748 = vmatpush1.xpose.msra.mxu0 0.0
    %749 = vmatprep.subr.mxu0 0.0
    %750 = vmatpush1.xpose.msra.mxu0 0.0
    %751 = vmatprep.subr.mxu0 0.0
    %752 = vmatpush1.xpose.msra.mxu0 0.0
    %753 = vmatprep.subr.mxu0 0.0
    %754 = vmatpush1.xpose.msra.mxu0 0.0
    %755 = vmatprep.subr.mxu0 0.0
    %756 = vmatpush1.xpose.msra.mxu0 0.0
    %757 = vmatprep.subr.mxu0 0.0
    %758 = vmatpush1.xpose.msra.mxu0 0.0
    %759 = vmatprep.subr.mxu0 0.0
    %760 = vmatpush1.xpose.msra.mxu0 0.0
    %761 = vmatprep.subr.mxu0 0.0
    %762 = vmatpush1.xpose.msra.mxu0 0.0
    %763 = vmatprep.subr.mxu0 0.0
    %764 = vmatpush1.xpose.msra.mxu0 0.0
    %765 = vmatprep.subr.mxu0 0.0
    %766 = vmatpush1.xpose.msra.mxu0 0.0
    %767 = vmatprep.subr.mxu0 0.0
    %768 = vmatpush1.xpose.msra.mxu0 0.0
    %769 = vmatprep.subr.mxu0 0.0
    %770 = vmatpush1.xpose.msra.mxu0 0.0
    %771 = vmatprep.subr.mxu0 0.0
    %772 = vmatpush1.xpose.msra.mxu0 0.0
    %773 = vmatprep.subr.mxu0 0.0
    %774 = vmatpush1.xpose.msra.mxu0 0.0
    %775 = vmatprep.subr.mxu0 0.0
    %776 = vmatpush1.xpose.msra.mxu0 0.0
    %777 = vmatprep.subr.mxu0 0.0
    %778 = vmatpush1.xpose.msra.mxu0 0.0
    %779 = vmatprep.subr.mxu0 0.0
    %780 = vmatpush1.xpose.msra.mxu0 0.0
    %781 = vmatprep.subr.mxu0 0.0
    %782 = vmatpush1.xpose.msra.mxu0 0.0
    %783 = vmatprep.subr.mxu0 0.0
    %784 = vmatpush1.xpose.msra.mxu0 0.0
    %785 = vmatprep.subr.mxu0 0.0
    %786 = vmatpush1.xpose.msra.mxu0 0.0
    %787 = vmatprep.subr.mxu0 0.0
    %788 = vmatpush1.xpose.msra.mxu0 0.0
    %789 = vmatprep.subr.mxu0 0.0
    %790 = vmatpush1.xpose.msra.mxu0 0.0
    %791 = vmatprep.subr.mxu0 0.0
    %792 = vmatpush1.xpose.msra.mxu0 0.0
    %793 = vmatprep.subr.mxu0 0.0
    %794 = vmatpush1.xpose.msra.mxu0 0.0
    %795 = vmatprep.subr.mxu0 0.0
    %796 = vmatpush1.xpose.msra.mxu0 0.0
    %797 = vmatprep.subr.mxu0 0.0
    %798 = vmatpush1.xpose.msra.mxu0 0.0
    %799 = vmatprep.subr.mxu0 0.0
    %800 = vmatpush1.xpose.msra.mxu0 0.0
    %801 = vmatprep.subr.mxu0 0.0
    %802 = vmatpush1.xpose.msra.mxu0 0.0
    %803 = vmatprep.subr.mxu0 0.0
    %804 = vmatpush1.xpose.msra.mxu0 0.0
    %805 = vmatprep.subr.mxu0 0.0
    %806 = vmatpush1.xpose.msra.mxu0 0.0
    %807 = vmatprep.subr.mxu0 0.0
    %808 = vmatpush1.xpose.msra.mxu0 0.0
    %809 = vmatprep.mubr.f32.mxu0 0.0
    %810 = vmatmul.mubr.f32.gmra.mrb[0].mxu0 %v741
    %v811 = vpop.f32.mrb[0].mxu0
    %v812 = vadd.f32 0.0, %v811
    %v813 = vpop.f32.mrb[0].mxu0
    %814 = vdwg.mxu0
    %815 = vrot.lane.b32.xlu0 %v429, 96
    %v816 = vpop.permute.xlu0 %815
    %v817 = vsel %vm436, %v429, 0
    %v819 = vsel %vm436, %v816, 0
    %821 = vmatprep.subr.mxu0 0.0
    %822 = vmatpush1.xpose.msra.mxu0 %v819
    %823 = vmatprep.subr.mxu0 0.0
    %824 = vmatpush1.xpose.msra.mxu0 0.0
    %825 = vmatprep.subr.mxu0 0.0
    %826 = vmatpush1.xpose.msra.mxu0 0.0
    %827 = vmatprep.subr.mxu0 0.0
    %828 = vmatpush1.xpose.msra.mxu0 0.0
    %829 = vmatprep.subr.mxu0 0.0
    %830 = vmatpush1.xpose.msra.mxu0 0.0
    %831 = vmatprep.subr.mxu0 0.0
    %832 = vmatpush1.xpose.msra.mxu0 0.0
    %833 = vmatprep.subr.mxu0 0.0
    %834 = vmatpush1.xpose.msra.mxu0 0.0
    %835 = vmatprep.subr.mxu0 0.0
    %836 = vmatpush1.xpose.msra.mxu0 0.0
    %837 = vmatprep.subr.mxu0 0.0
    %838 = vmatpush1.xpose.msra.mxu0 0.0
    %839 = vmatprep.subr.mxu0 0.0
    %840 = vmatpush1.xpose.msra.mxu0 0.0
    %841 = vmatprep.subr.mxu0 0.0
    %842 = vmatpush1.xpose.msra.mxu0 0.0
    %843 = vmatprep.subr.mxu0 0.0
    %844 = vmatpush1.xpose.msra.mxu0 0.0
    %845 = vmatprep.subr.mxu0 0.0
    %846 = vmatpush1.xpose.msra.mxu0 0.0
    %847 = vmatprep.subr.mxu0 0.0
    %848 = vmatpush1.xpose.msra.mxu0 0.0
    %849 = vmatprep.subr.mxu0 0.0
    %850 = vmatpush1.xpose.msra.mxu0 0.0
    %851 = vmatprep.subr.mxu0 0.0
    %852 = vmatpush1.xpose.msra.mxu0 0.0
    %853 = vmatprep.subr.mxu0 0.0
    %854 = vmatpush1.xpose.msra.mxu0 0.0
    %855 = vmatprep.subr.mxu0 0.0
    %856 = vmatpush1.xpose.msra.mxu0 0.0
    %857 = vmatprep.subr.mxu0 0.0
    %858 = vmatpush1.xpose.msra.mxu0 0.0
    %859 = vmatprep.subr.mxu0 0.0
    %860 = vmatpush1.xpose.msra.mxu0 0.0
    %861 = vmatprep.subr.mxu0 0.0
    %862 = vmatpush1.xpose.msra.mxu0 0.0
    %863 = vmatprep.subr.mxu0 0.0
    %864 = vmatpush1.xpose.msra.mxu0 0.0
    %865 = vmatprep.subr.mxu0 0.0
    %866 = vmatpush1.xpose.msra.mxu0 0.0
    %867 = vmatprep.subr.mxu0 0.0
    %868 = vmatpush1.xpose.msra.mxu0 0.0
    %869 = vmatprep.subr.mxu0 0.0
    %870 = vmatpush1.xpose.msra.mxu0 0.0
    %871 = vmatprep.subr.mxu0 0.0
    %872 = vmatpush1.xpose.msra.mxu0 0.0
    %873 = vmatprep.subr.mxu0 0.0
    %874 = vmatpush1.xpose.msra.mxu0 0.0
    %875 = vmatprep.subr.mxu0 0.0
    %876 = vmatpush1.xpose.msra.mxu0 0.0
    %877 = vmatprep.subr.mxu0 0.0
    %878 = vmatpush1.xpose.msra.mxu0 0.0
    %879 = vmatprep.subr.mxu0 0.0
    %880 = vmatpush1.xpose.msra.mxu0 0.0
    %881 = vmatprep.subr.mxu0 0.0
    %882 = vmatpush1.xpose.msra.mxu0 0.0
    %883 = vmatprep.subr.mxu0 0.0
    %884 = vmatpush1.xpose.msra.mxu0 0.0
    %885 = vmatprep.mubr.f32.mxu0 0.0
    %886 = vmatmul.mubr.f32.gmra.mrb[0].mxu0 %v817
    %v887 = vpop.f32.mrb[0].mxu0
    %v888 = vadd.f32 0.0, %v887
    %v889 = vpop.f32.mrb[0].mxu0
    %890 = vdwg.mxu0
    %891 = vrot.lane.b32.xlu0 %v431, 96
    %v892 = vpop.permute.xlu0 %891
    %v893 = vsel %vm436, %v431, 0
    %v895 = vsel %vm436, %v892, 0
    %897 = vmatprep.subr.mxu0 0.0
    %898 = vmatpush1.xpose.msra.mxu0 %v895
    %899 = vmatprep.subr.mxu0 0.0
    %900 = vmatpush1.xpose.msra.mxu0 0.0
    %901 = vmatprep.subr.mxu0 0.0
    %902 = vmatpush1.xpose.msra.mxu0 0.0
    %903 = vmatprep.subr.mxu0 0.0
    %904 = vmatpush1.xpose.msra.mxu0 0.0
    %905 = vmatprep.subr.mxu0 0.0
    %906 = vmatpush1.xpose.msra.mxu0 0.0
    %907 = vmatprep.subr.mxu0 0.0
    %908 = vmatpush1.xpose.msra.mxu0 0.0
    %909 = vmatprep.subr.mxu0 0.0
    %910 = vmatpush1.xpose.msra.mxu0 0.0
    %911 = vmatprep.subr.mxu0 0.0
    %912 = vmatpush1.xpose.msra.mxu0 0.0
    %913 = vmatprep.subr.mxu0 0.0
    %914 = vmatpush1.xpose.msra.mxu0 0.0
    %915 = vmatprep.subr.mxu0 0.0
    %916 = vmatpush1.xpose.msra.mxu0 0.0
    %917 = vmatprep.subr.mxu0 0.0
    %918 = vmatpush1.xpose.msra.mxu0 0.0
    %919 = vmatprep.subr.mxu0 0.0
    %920 = vmatpush1.xpose.msra.mxu0 0.0
    %921 = vmatprep.subr.mxu0 0.0
    %922 = vmatpush1.xpose.msra.mxu0 0.0
    %923 = vmatprep.subr.mxu0 0.0
    %924 = vmatpush1.xpose.msra.mxu0 0.0
    %925 = vmatprep.subr.mxu0 0.0
    %926 = vmatpush1.xpose.msra.mxu0 0.0
    %927 = vmatprep.subr.mxu0 0.0
    %928 = vmatpush1.xpose.msra.mxu0 0.0
    %929 = vmatprep.subr.mxu0 0.0
    %930 = vmatpush1.xpose.msra.mxu0 0.0
    %931 = vmatprep.subr.mxu0 0.0
    %932 = vmatpush1.xpose.msra.mxu0 0.0
    %933 = vmatprep.subr.mxu0 0.0
    %934 = vmatpush1.xpose.msra.mxu0 0.0
    %935 = vmatprep.subr.mxu0 0.0
    %936 = vmatpush1.xpose.msra.mxu0 0.0
    %937 = vmatprep.subr.mxu0 0.0
    %938 = vmatpush1.xpose.msra.mxu0 0.0
    %939 = vmatprep.subr.mxu0 0.0
    %940 = vmatpush1.xpose.msra.mxu0 0.0
    %941 = vmatprep.subr.mxu0 0.0
    %942 = vmatpush1.xpose.msra.mxu0 0.0
    %943 = vmatprep.subr.mxu0 0.0
    %944 = vmatpush1.xpose.msra.mxu0 0.0
    %945 = vmatprep.subr.mxu0 0.0
    %946 = vmatpush1.xpose.msra.mxu0 0.0
    %947 = vmatprep.subr.mxu0 0.0
    %948 = vmatpush1.xpose.msra.mxu0 0.0
    %949 = vmatprep.subr.mxu0 0.0
    %950 = vmatpush1.xpose.msra.mxu0 0.0
    %951 = vmatprep.subr.mxu0 0.0
    %952 = vmatpush1.xpose.msra.mxu0 0.0
    %953 = vmatprep.subr.mxu0 0.0
    %954 = vmatpush1.xpose.msra.mxu0 0.0
    %955 = vmatprep.subr.mxu0 0.0
    %956 = vmatpush1.xpose.msra.mxu0 0.0
    %957 = vmatprep.subr.mxu0 0.0
    %958 = vmatpush1.xpose.msra.mxu0 0.0
    %959 = vmatprep.subr.mxu0 0.0
    %960 = vmatpush1.xpose.msra.mxu0 0.0
    %961 = vmatprep.mubr.f32.mxu0 0.0
    %962 = vmatmul.mubr.f32.gmra.mrb[0].mxu0 %v893
    %v963 = vpop.f32.mrb[0].mxu0
    %v964 = vadd.f32 0.0, %v963
    %v965 = vpop.f32.mrb[0].mxu0
    %966 = vdwg.mxu0
    %967 = vrot.lane.b32.xlu0 %v433, 96
    %v968 = vpop.permute.xlu0 %967
    %v969 = vsel %vm436, %v433, 0
    %v971 = vsel %vm436, %v968, 0
    %973 = vmatprep.subr.mxu0 0.0
    %974 = vmatpush1.xpose.msra.mxu0 %v971
    %975 = vmatprep.subr.mxu0 0.0
    %976 = vmatpush1.xpose.msra.mxu0 0.0
    %977 = vmatprep.subr.mxu0 0.0
    %978 = vmatpush1.xpose.msra.mxu0 0.0
    %979 = vmatprep.subr.mxu0 0.0
    %980 = vmatpush1.xpose.msra.mxu0 0.0
    %981 = vmatprep.subr.mxu0 0.0
    %982 = vmatpush1.xpose.msra.mxu0 0.0
    %983 = vmatprep.subr.mxu0 0.0
    %984 = vmatpush1.xpose.msra.mxu0 0.0
    %985 = vmatprep.subr.mxu0 0.0
    %986 = vmatpush1.xpose.msra.mxu0 0.0
    %987 = vmatprep.subr.mxu0 0.0
    %988 = vmatpush1.xpose.msra.mxu0 0.0
    %989 = vmatprep.subr.mxu0 0.0
    %990 = vmatpush1.xpose.msra.mxu0 0.0
    %991 = vmatprep.subr.mxu0 0.0
    %992 = vmatpush1.xpose.msra.mxu0 0.0
    %993 = vmatprep.subr.mxu0 0.0
    %994 = vmatpush1.xpose.msra.mxu0 0.0
    %995 = vmatprep.subr.mxu0 0.0
    %996 = vmatpush1.xpose.msra.mxu0 0.0
    %997 = vmatprep.subr.mxu0 0.0
    %998 = vmatpush1.xpose.msra.mxu0 0.0
    %999 = vmatprep.subr.mxu0 0.0
    %1000 = vmatpush1.xpose.msra.mxu0 0.0
    %1001 = vmatprep.subr.mxu0 0.0
    %1002 = vmatpush1.xpose.msra.mxu0 0.0
    %1003 = vmatprep.subr.mxu0 0.0
    %1004 = vmatpush1.xpose.msra.mxu0 0.0
    %1005 = vmatprep.subr.mxu0 0.0
    %1006 = vmatpush1.xpose.msra.mxu0 0.0
    %1007 = vmatprep.subr.mxu0 0.0
    %1008 = vmatpush1.xpose.msra.mxu0 0.0
    %1009 = vmatprep.subr.mxu0 0.0
    %1010 = vmatpush1.xpose.msra.mxu0 0.0
    %1011 = vmatprep.subr.mxu0 0.0
    %1012 = vmatpush1.xpose.msra.mxu0 0.0
    %1013 = vmatprep.subr.mxu0 0.0
    %1014 = vmatpush1.xpose.msra.mxu0 0.0
    %1015 = vmatprep.subr.mxu0 0.0
    %1016 = vmatpush1.xpose.msra.mxu0 0.0
    %1017 = vmatprep.subr.mxu0 0.0
    %1018 = vmatpush1.xpose.msra.mxu0 0.0
    %1019 = vmatprep.subr.mxu0 0.0
    %1020 = vmatpush1.xpose.msra.mxu0 0.0
    %1021 = vmatprep.subr.mxu0 0.0
    %1022 = vmatpush1.xpose.msra.mxu0 0.0
    %1023 = vmatprep.subr.mxu0 0.0
    %1024 = vmatpush1.xpose.msra.mxu0 0.0
    %1025 = vmatprep.subr.mxu0 0.0
    %1026 = vmatpush1.xpose.msra.mxu0 0.0
    %1027 = vmatprep.subr.mxu0 0.0
    %1028 = vmatpush1.xpose.msra.mxu0 0.0
    %1029 = vmatprep.subr.mxu0 0.0
    %1030 = vmatpush1.xpose.msra.mxu0 0.0
    %1031 = vmatprep.subr.mxu0 0.0
    %1032 = vmatpush1.xpose.msra.mxu0 0.0
    %1033 = vmatprep.subr.mxu0 0.0
    %1034 = vmatpush1.xpose.msra.mxu0 0.0
    %1035 = vmatprep.subr.mxu0 0.0
    %1036 = vmatpush1.xpose.msra.mxu0 0.0
    %1037 = vmatprep.mubr.f32.mxu0 0.0
    %1038 = vmatmul.mubr.f32.gmra.mrb[0].mxu0 %v969
    %v1039 = vpop.f32.mrb[0].mxu0
    %v1040 = vadd.f32 0.0, %v1039
    %v1041 = vpop.f32.mrb[0].mxu0
    %1042 = vdwg.mxu0
    %v1043 = vsel %vm436, %v508, -inf
    %1044 = vmax.xlane.f32.xlu0 %v1043
    %v1045 = vpop.xlane.xlu0 %1044
    %v1046 = vsel %vm436, %v584, -inf
    %1047 = vmax.xlane.f32.xlu0 %v1046
    %v1048 = vpop.xlane.xlu0 %1047
    %v1049 = vsel %vm436, %v660, -inf
    %1050 = vmax.xlane.f32.xlu0 %v1049
    %v1051 = vpop.xlane.xlu0 %1050
    %v1052 = vsel %vm436, %v736, -inf
    %1053 = vmax.xlane.f32.xlu0 %v1052
    %v1054 = vpop.xlane.xlu0 %1053
    %v1055 = vsel %vm436, %v812, -inf
    %1056 = vmax.xlane.f32.xlu0 %v1055
    %v1057 = vpop.xlane.xlu0 %1056
    %v1058 = vsel %vm436, %v888, -inf
    %1059 = vmax.xlane.f32.xlu0 %v1058
    %v1060 = vpop.xlane.xlu0 %1059
    %v1061 = vsel %vm436, %v964, -inf
    %1062 = vmax.xlane.f32.xlu0 %v1061
    %v1063 = vpop.xlane.xlu0 %1062
    %v1064 = vsel %vm436, %v1040, -inf
    %1065 = vmax.xlane.f32.xlu0 %v1064
    %v1066 = vpop.xlane.xlu0 %1065
    %v1067 = vsub.f32 %v508, %v1045
    %v1068 = vsub.f32 %v584, %v1048
    %v1069 = vsub.f32 %v660, %v1051
    %v1070 = vsub.f32 %v736, %v1054
    %v1071 = vsub.f32 %v812, %v1057
    %v1072 = vsub.f32 %v888, %v1060
    %v1073 = vsub.f32 %v964, %v1063
    %v1074 = vsub.f32 %v1040, %v1066
    %v1075 = vmul.f32 %v1067, 1.442695
    %v1076 = vpow.pop %v1075
    %v1077 = vmul.f32 %v1068, 1.442695
    %v1078 = vpow.pop %v1077
    %v1079 = vmul.f32 %v1069, 1.442695
    %v1080 = vpow.pop %v1079
    %v1081 = vmul.f32 %v1070, 1.442695
    %v1082 = vpow.pop %v1081
    %v1083 = vmul.f32 %v1071, 1.442695
    %v1084 = vpow.pop %v1083
    %v1085 = vmul.f32 %v1072, 1.442695
    %v1086 = vpow.pop %v1085
    %v1087 = vmul.f32 %v1073, 1.442695
    %v1088 = vpow.pop %v1087
    %v1089 = vmul.f32 %v1074, 1.442695
    %v1090 = vpow.pop %v1089
    %v1091 = vsel %vm436, %v1076, 0.0
    %1092 = vadd.xlane.f32.xlu0 %v1091
    %v1093 = vpop.xlane.xlu0 %1092
    %v1094 = vsel %vm436, %v1078, 0.0
    %1095 = vadd.xlane.f32.xlu0 %v1094
    %v1096 = vpop.xlane.xlu0 %1095
    %v1097 = vsel %vm436, %v1080, 0.0
    %1098 = vadd.xlane.f32.xlu0 %v1097
    %v1099 = vpop.xlane.xlu0 %1098
    %v1100 = vsel %vm436, %v1082, 0.0
    %1101 = vadd.xlane.f32.xlu0 %v1100
    %v1102 = vpop.xlane.xlu0 %1101
    %v1103 = vsel %vm436, %v1084, 0.0
    %1104 = vadd.xlane.f32.xlu0 %v1103
    %v1105 = vpop.xlane.xlu0 %1104
    %v1106 = vsel %vm436, %v1086, 0.0
    %1107 = vadd.xlane.f32.xlu0 %v1106
    %v1108 = vpop.xlane.xlu0 %1107
    %v1109 = vsel %vm436, %v1088, 0.0
    %1110 = vadd.xlane.f32.xlu0 %v1109
    %v1111 = vpop.xlane.xlu0 %1110
    %v1112 = vsel %vm436, %v1090, 0.0
    %1113 = vadd.xlane.f32.xlu0 %v1112
    %v1114 = vpop.xlane.xlu0 %1113
    %v1115 = vrcp.pop %v1093
    %v1116 = vrcp.pop %v1096
    %v1117 = vrcp.pop %v1099
    %v1118 = vrcp.pop %v1102
    %v1119 = vrcp.pop %v1105
    %v1120 = vrcp.pop %v1108
    %v1121 = vrcp.pop %v1111
    %v1122 = vrcp.pop %v1114
    %v1123 = vmul.f32 %v1076, %v1115
    %v1124 = vmul.f32 %v1078, %v1116
    %v1125 = vmul.f32 %v1080, %v1117
    %v1126 = vmul.f32 %v1082, %v1118
    %v1127 = vmul.f32 %v1084, %v1119
    %v1128 = vmul.f32 %v1086, %v1120
    %v1129 = vmul.f32 %v1088, %v1121
    %v1130 = vmul.f32 %v1090, %v1122
    %1131 = vrot.lane.b32.xlu0 %v412, 64
    %v1132 = vpop.permute.xlu0 %1131
    %v1135 = vsel %vm436, %v1123, 0
    %1137 = vmatprep.subr.mxu0 0.0
    %1138 = vmatpush1.msra.mxu0 %v1132
    %1139 = vmatprep.subr.mxu0 0.0
    %1140 = vmatpush1.msra.mxu0 0.0
    %1141 = vmatprep.subr.mxu0 0.0
    %1142 = vmatpush1.msra.mxu0 0.0
    %1143 = vmatprep.subr.mxu0 0.0
    %1144 = vmatpush1.msra.mxu0 0.0
    %1145 = vmatprep.subr.mxu0 0.0
    %1146 = vmatpush1.msra.mxu0 0.0
    %1147 = vmatprep.subr.mxu0 0.0
    %1148 = vmatpush1.msra.mxu0 0.0
    %1149 = vmatprep.subr.mxu0 0.0
    %1150 = vmatpush1.msra.mxu0 0.0
    %1151 = vmatprep.subr.mxu0 0.0
    %1152 = vmatpush1.msra.mxu0 0.0
    %1153 = vmatprep.subr.mxu0 0.0
    %1154 = vmatpush1.msra.mxu0 0.0
    %1155 = vmatprep.subr.mxu0 0.0
    %1156 = vmatpush1.msra.mxu0 0.0
    %1157 = vmatprep.subr.mxu0 0.0
    %1158 = vmatpush1.msra.mxu0 0.0
    %1159 = vmatprep.subr.mxu0 0.0
    %1160 = vmatpush1.msra.mxu0 0.0
    %1161 = vmatprep.subr.mxu0 0.0
    %1162 = vmatpush1.msra.mxu0 0.0
    %1163 = vmatprep.subr.mxu0 0.0
    %1164 = vmatpush1.msra.mxu0 0.0
    %1165 = vmatprep.subr.mxu0 0.0
    %1166 = vmatpush1.msra.mxu0 0.0
    %1167 = vmatprep.subr.mxu0 0.0
    %1168 = vmatpush1.msra.mxu0 0.0
    %1169 = vmatprep.subr.mxu0 0.0
    %1170 = vmatpush1.msra.mxu0 0.0
    %1171 = vmatprep.subr.mxu0 0.0
    %1172 = vmatpush1.msra.mxu0 0.0
    %1173 = vmatprep.subr.mxu0 0.0
    %1174 = vmatpush1.msra.mxu0 0.0
    %1175 = vmatprep.subr.mxu0 0.0
    %1176 = vmatpush1.msra.mxu0 0.0
    %1177 = vmatprep.subr.mxu0 0.0
    %1178 = vmatpush1.msra.mxu0 0.0
    %1179 = vmatprep.subr.mxu0 0.0
    %1180 = vmatpush1.msra.mxu0 0.0
    %1181 = vmatprep.subr.mxu0 0.0
    %1182 = vmatpush1.msra.mxu0 0.0
    %1183 = vmatprep.subr.mxu0 0.0
    %1184 = vmatpush1.msra.mxu0 0.0
    %1185 = vmatprep.subr.mxu0 0.0
    %1186 = vmatpush1.msra.mxu0 0.0
    %1187 = vmatprep.subr.mxu0 0.0
    %1188 = vmatpush1.msra.mxu0 0.0
    %1189 = vmatprep.subr.mxu0 0.0
    %1190 = vmatpush1.msra.mxu0 0.0
    %1191 = vmatprep.subr.mxu0 0.0
    %1192 = vmatpush1.msra.mxu0 0.0
    %1193 = vmatprep.subr.mxu0 0.0
    %1194 = vmatpush1.msra.mxu0 0.0
    %1195 = vmatprep.subr.mxu0 0.0
    %1196 = vmatpush1.msra.mxu0 0.0
    %1197 = vmatprep.subr.mxu0 0.0
    %1198 = vmatpush1.msra.mxu0 0.0
    %1199 = vmatprep.subr.mxu0 0.0
    %1200 = vmatpush1.msra.mxu0 0.0
    %1201 = vmatprep.mubr.f32.mxu0 0.0
    %1202 = vmatmul.mubr.f32.gmra.mrb[0].mxu0 %v1135
    %v1203 = vpop.f32.mrb[0].mxu0
    %v1204 = vadd.f32 0.0, %v1203
    %v1205 = vpop.f32.mrb[0].mxu0
    %1206 = vdwg.mxu0
    %1207 = vrot.lane.b32.xlu0 %v417, 64
    %v1208 = vpop.permute.xlu0 %1207
    %v1211 = vsel %vm436, %v1124, 0
    %1213 = vmatprep.subr.mxu0 0.0
    %1214 = vmatpush1.msra.mxu0 %v1208
    %1215 = vmatprep.subr.mxu0 0.0
    %1216 = vmatpush1.msra.mxu0 0.0
    %1217 = vmatprep.subr.mxu0 0.0
    %1218 = vmatpush1.msra.mxu0 0.0
    %1219 = vmatprep.subr.mxu0 0.0
    %1220 = vmatpush1.msra.mxu0 0.0
    %1221 = vmatprep.subr.mxu0 0.0
    %1222 = vmatpush1.msra.mxu0 0.0
    %1223 = vmatprep.subr.mxu0 0.0
    %1224 = vmatpush1.msra.mxu0 0.0
    %1225 = vmatprep.subr.mxu0 0.0
    %1226 = vmatpush1.msra.mxu0 0.0
    %1227 = vmatprep.subr.mxu0 0.0
    %1228 = vmatpush1.msra.mxu0 0.0
    %1229 = vmatprep.subr.mxu0 0.0
    %1230 = vmatpush1.msra.mxu0 0.0
    %1231 = vmatprep.subr.mxu0 0.0
    %1232 = vmatpush1.msra.mxu0 0.0
    %1233 = vmatprep.subr.mxu0 0.0
    %1234 = vmatpush1.msra.mxu0 0.0
    %1235 = vmatprep.subr.mxu0 0.0
    %1236 = vmatpush1.msra.mxu0 0.0
    %1237 = vmatprep.subr.mxu0 0.0
    %1238 = vmatpush1.msra.mxu0 0.0
    %1239 = vmatprep.subr.mxu0 0.0
    %1240 = vmatpush1.msra.mxu0 0.0
    %1241 = vmatprep.subr.mxu0 0.0
    %1242 = vmatpush1.msra.mxu0 0.0
    %1243 = vmatprep.subr.mxu0 0.0
    %1244 = vmatpush1.msra.mxu0 0.0
    %1245 = vmatprep.subr.mxu0 0.0
    %1246 = vmatpush1.msra.mxu0 0.0
    %1247 = vmatprep.subr.mxu0 0.0
    %1248 = vmatpush1.msra.mxu0 0.0
    %1249 = vmatprep.subr.mxu0 0.0
    %1250 = vmatpush1.msra.mxu0 0.0
    %1251 = vmatprep.subr.mxu0 0.0
    %1252 = vmatpush1.msra.mxu0 0.0
    %1253 = vmatprep.subr.mxu0 0.0
    %1254 = vmatpush1.msra.mxu0 0.0
    %1255 = vmatprep.subr.mxu0 0.0
    %1256 = vmatpush1.msra.mxu0 0.0
    %1257 = vmatprep.subr.mxu0 0.0
    %1258 = vmatpush1.msra.mxu0 0.0
    %1259 = vmatprep.subr.mxu0 0.0
    %1260 = vmatpush1.msra.mxu0 0.0
    %1261 = vmatprep.subr.mxu0 0.0
    %1262 = vmatpush1.msra.mxu0 0.0
    %1263 = vmatprep.subr.mxu0 0.0
    %1264 = vmatpush1.msra.mxu0 0.0
    %1265 = vmatprep.subr.mxu0 0.0
    %1266 = vmatpush1.msra.mxu0 0.0
    %1267 = vmatprep.subr.mxu0 0.0
    %1268 = vmatpush1.msra.mxu0 0.0
    %1269 = vmatprep.subr.mxu0 0.0
    %1270 = vmatpush1.msra.mxu0 0.0
    %1271 = vmatprep.subr.mxu0 0.0
    %1272 = vmatpush1.msra.mxu0 0.0
    %1273 = vmatprep.subr.mxu0 0.0
    %1274 = vmatpush1.msra.mxu0 0.0
    %1275 = vmatprep.subr.mxu0 0.0
    %1276 = vmatpush1.msra.mxu0 0.0
    %1277 = vmatprep.mubr.f32.mxu0 0.0
    %1278 = vmatmul.mubr.f32.gmra.mrb[0].mxu0 %v1211
    %v1279 = vpop.f32.mrb[0].mxu0
    %v1280 = vadd.f32 0.0, %v1279
    %v1281 = vpop.f32.mrb[0].mxu0
    %1282 = vdwg.mxu0
    %1283 = vrot.lane.b32.xlu0 %v423, 64
    %v1284 = vpop.permute.xlu0 %1283
    %v1287 = vsel %vm436, %v1125, 0
    %1289 = vmatprep.subr.mxu0 0.0
    %1290 = vmatpush1.msra.mxu0 %v1284
    %1291 = vmatprep.subr.mxu0 0.0
    %1292 = vmatpush1.msra.mxu0 0.0
    %1293 = vmatprep.subr.mxu0 0.0
    %1294 = vmatpush1.msra.mxu0 0.0
    %1295 = vmatprep.subr.mxu0 0.0
    %1296 = vmatpush1.msra.mxu0 0.0
    %1297 = vmatprep.subr.mxu0 0.0
    %1298 = vmatpush1.msra.mxu0 0.0
    %1299 = vmatprep.subr.mxu0 0.0
    %1300 = vmatpush1.msra.mxu0 0.0
    %1301 = vmatprep.subr.mxu0 0.0
    %1302 = vmatpush1.msra.mxu0 0.0
    %1303 = vmatprep.subr.mxu0 0.0
    %1304 = vmatpush1.msra.mxu0 0.0
    %1305 = vmatprep.subr.mxu0 0.0
    %1306 = vmatpush1.msra.mxu0 0.0
    %1307 = vmatprep.subr.mxu0 0.0
    %1308 = vmatpush1.msra.mxu0 0.0
    %1309 = vmatprep.subr.mxu0 0.0
    %1310 = vmatpush1.msra.mxu0 0.0
    %1311 = vmatprep.subr.mxu0 0.0
    %1312 = vmatpush1.msra.mxu0 0.0
    %1313 = vmatprep.subr.mxu0 0.0
    %1314 = vmatpush1.msra.mxu0 0.0
    %1315 = vmatprep.subr.mxu0 0.0
    %1316 = vmatpush1.msra.mxu0 0.0
    %1317 = vmatprep.subr.mxu0 0.0
    %1318 = vmatpush1.msra.mxu0 0.0
    %1319 = vmatprep.subr.mxu0 0.0
    %1320 = vmatpush1.msra.mxu0 0.0
    %1321 = vmatprep.subr.mxu0 0.0
    %1322 = vmatpush1.msra.mxu0 0.0
    %1323 = vmatprep.subr.mxu0 0.0
    %1324 = vmatpush1.msra.mxu0 0.0
    %1325 = vmatprep.subr.mxu0 0.0
    %1326 = vmatpush1.msra.mxu0 0.0
    %1327 = vmatprep.subr.mxu0 0.0
    %1328 = vmatpush1.msra.mxu0 0.0
    %1329 = vmatprep.subr.mxu0 0.0
    %1330 = vmatpush1.msra.mxu0 0.0
    %1331 = vmatprep.subr.mxu0 0.0
    %1332 = vmatpush1.msra.mxu0 0.0
    %1333 = vmatprep.subr.mxu0 0.0
    %1334 = vmatpush1.msra.mxu0 0.0
    %1335 = vmatprep.subr.mxu0 0.0
    %1336 = vmatpush1.msra.mxu0 0.0
    %1337 = vmatprep.subr.mxu0 0.0
    %1338 = vmatpush1.msra.mxu0 0.0
    %1339 = vmatprep.subr.mxu0 0.0
    %1340 = vmatpush1.msra.mxu0 0.0
    %1341 = vmatprep.subr.mxu0 0.0
    %1342 = vmatpush1.msra.mxu0 0.0
    %1343 = vmatprep.subr.mxu0 0.0
    %1344 = vmatpush1.msra.mxu0 0.0
    %1345 = vmatprep.subr.mxu0 0.0
    %1346 = vmatpush1.msra.mxu0 0.0
    %1347 = vmatprep.subr.mxu0 0.0
    %1348 = vmatpush1.msra.mxu0 0.0
    %1349 = vmatprep.subr.mxu0 0.0
    %1350 = vmatpush1.msra.mxu0 0.0
    %1351 = vmatprep.subr.mxu0 0.0
    %1352 = vmatpush1.msra.mxu0 0.0
    %1353 = vmatprep.mubr.f32.mxu0 0.0
    %1354 = vmatmul.mubr.f32.gmra.mrb[0].mxu0 %v1287
    %v1355 = vpop.f32.mrb[0].mxu0
    %v1356 = vadd.f32 0.0, %v1355
    %v1357 = vpop.f32.mrb[0].mxu0
    %1358 = vdwg.mxu0
    %1359 = vrot.lane.b32.xlu0 %v425, 64
    %v1360 = vpop.permute.xlu0 %1359
    %v1363 = vsel %vm436, %v1126, 0
    %1365 = vmatprep.subr.mxu0 0.0
    %1366 = vmatpush1.msra.mxu0 %v1360
    %1367 = vmatprep.subr.mxu0 0.0
    %1368 = vmatpush1.msra.mxu0 0.0
    %1369 = vmatprep.subr.mxu0 0.0
    %1370 = vmatpush1.msra.mxu0 0.0
    %1371 = vmatprep.subr.mxu0 0.0
    %1372 = vmatpush1.msra.mxu0 0.0
    %1373 = vmatprep.subr.mxu0 0.0
    %1374 = vmatpush1.msra.mxu0 0.0
    %1375 = vmatprep.subr.mxu0 0.0
    %1376 = vmatpush1.msra.mxu0 0.0
    %1377 = vmatprep.subr.mxu0 0.0
    %1378 = vmatpush1.msra.mxu0 0.0
    %1379 = vmatprep.subr.mxu0 0.0
    %1380 = vmatpush1.msra.mxu0 0.0
    %1381 = vmatprep.subr.mxu0 0.0
    %1382 = vmatpush1.msra.mxu0 0.0
    %1383 = vmatprep.subr.mxu0 0.0
    %1384 = vmatpush1.msra.mxu0 0.0
    %1385 = vmatprep.subr.mxu0 0.0
    %1386 = vmatpush1.msra.mxu0 0.0
    %1387 = vmatprep.subr.mxu0 0.0
    %1388 = vmatpush1.msra.mxu0 0.0
    %1389 = vmatprep.subr.mxu0 0.0
    %1390 = vmatpush1.msra.mxu0 0.0
    %1391 = vmatprep.subr.mxu0 0.0
    %1392 = vmatpush1.msra.mxu0 0.0
    %1393 = vmatprep.subr.mxu0 0.0
    %1394 = vmatpush1.msra.mxu0 0.0
    %1395 = vmatprep.subr.mxu0 0.0
    %1396 = vmatpush1.msra.mxu0 0.0
    %1397 = vmatprep.subr.mxu0 0.0
    %1398 = vmatpush1.msra.mxu0 0.0
    %1399 = vmatprep.subr.mxu0 0.0
    %1400 = vmatpush1.msra.mxu0 0.0
    %1401 = vmatprep.subr.mxu0 0.0
    %1402 = vmatpush1.msra.mxu0 0.0
    %1403 = vmatprep.subr.mxu0 0.0
    %1404 = vmatpush1.msra.mxu0 0.0
    %1405 = vmatprep.subr.mxu0 0.0
    %1406 = vmatpush1.msra.mxu0 0.0
    %1407 = vmatprep.subr.mxu0 0.0
    %1408 = vmatpush1.msra.mxu0 0.0
    %1409 = vmatprep.subr.mxu0 0.0
    %1410 = vmatpush1.msra.mxu0 0.0
    %1411 = vmatprep.subr.mxu0 0.0
    %1412 = vmatpush1.msra.mxu0 0.0
    %1413 = vmatprep.subr.mxu0 0.0
    %1414 = vmatpush1.msra.mxu0 0.0
    %1415 = vmatprep.subr.mxu0 0.0
    %1416 = vmatpush1.msra.mxu0 0.0
    %1417 = vmatprep.subr.mxu0 0.0
    %1418 = vmatpush1.msra.mxu0 0.0
    %1419 = vmatprep.subr.mxu0 0.0
    %1420 = vmatpush1.msra.mxu0 0.0
    %1421 = vmatprep.subr.mxu0 0.0
    %1422 = vmatpush1.msra.mxu0 0.0
    %1423 = vmatprep.subr.mxu0 0.0
    %1424 = vmatpush1.msra.mxu0 0.0
    %1425 = vmatprep.subr.mxu0 0.0
    %1426 = vmatpush1.msra.mxu0 0.0
    %1427 = vmatprep.subr.mxu0 0.0
    %1428 = vmatpush1.msra.mxu0 0.0
    %1429 = vmatprep.mubr.f32.mxu0 0.0
    %1430 = vmatmul.mubr.f32.gmra.mrb[0].mxu0 %v1363
    %v1431 = vpop.f32.mrb[0].mxu0
    %v1432 = vadd.f32 0.0, %v1431
    %v1433 = vpop.f32.mrb[0].mxu0
    %1434 = vdwg.mxu0
    %1435 = vrot.lane.b32.xlu0 %v427, 64
    %v1436 = vpop.permute.xlu0 %1435
    %v1439 = vsel %vm436, %v1127, 0
    %1441 = vmatprep.subr.mxu0 0.0
    %1442 = vmatpush1.msra.mxu0 %v1436
    %1443 = vmatprep.subr.mxu0 0.0
    %1444 = vmatpush1.msra.mxu0 0.0
    %1445 = vmatprep.subr.mxu0 0.0
    %1446 = vmatpush1.msra.mxu0 0.0
    %1447 = vmatprep.subr.mxu0 0.0
    %1448 = vmatpush1.msra.mxu0 0.0
    %1449 = vmatprep.subr.mxu0 0.0
    %1450 = vmatpush1.msra.mxu0 0.0
    %1451 = vmatprep.subr.mxu0 0.0
    %1452 = vmatpush1.msra.mxu0 0.0
    %1453 = vmatprep.subr.mxu0 0.0
    %1454 = vmatpush1.msra.mxu0 0.0
    %1455 = vmatprep.subr.mxu0 0.0
    %1456 = vmatpush1.msra.mxu0 0.0
    %1457 = vmatprep.subr.mxu0 0.0
    %1458 = vmatpush1.msra.mxu0 0.0
    %1459 = vmatprep.subr.mxu0 0.0
    %1460 = vmatpush1.msra.mxu0 0.0
    %1461 = vmatprep.subr.mxu0 0.0
    %1462 = vmatpush1.msra.mxu0 0.0
    %1463 = vmatprep.subr.mxu0 0.0
    %1464 = vmatpush1.msra.mxu0 0.0
    %1465 = vmatprep.subr.mxu0 0.0
    %1466 = vmatpush1.msra.mxu0 0.0
    %1467 = vmatprep.subr.mxu0 0.0
    %1468 = vmatpush1.msra.mxu0 0.0
    %1469 = vmatprep.subr.mxu0 0.0
    %1470 = vmatpush1.msra.mxu0 0.0
    %1471 = vmatprep.subr.mxu0 0.0
    %1472 = vmatpush1.msra.mxu0 0.0
    %1473 = vmatprep.subr.mxu0 0.0
    %1474 = vmatpush1.msra.mxu0 0.0
    %1475 = vmatprep.subr.mxu0 0.0
    %1476 = vmatpush1.msra.mxu0 0.0
    %1477 = vmatprep.subr.mxu0 0.0
    %1478 = vmatpush1.msra.mxu0 0.0
    %1479 = vmatprep.subr.mxu0 0.0
    %1480 = vmatpush1.msra.mxu0 0.0
    %1481 = vmatprep.subr.mxu0 0.0
    %1482 = vmatpush1.msra.mxu0 0.0
    %1483 = vmatprep.subr.mxu0 0.0
    %1484 = vmatpush1.msra.mxu0 0.0
    %1485 = vmatprep.subr.mxu0 0.0
    %1486 = vmatpush1.msra.mxu0 0.0
    %1487 = vmatprep.subr.mxu0 0.0
    %1488 = vmatpush1.msra.mxu0 0.0
    %1489 = vmatprep.subr.mxu0 0.0
    %1490 = vmatpush1.msra.mxu0 0.0
    %1491 = vmatprep.subr.mxu0 0.0
    %1492 = vmatpush1.msra.mxu0 0.0
    %1493 = vmatprep.subr.mxu0 0.0
    %1494 = vmatpush1.msra.mxu0 0.0
    %1495 = vmatprep.subr.mxu0 0.0
    %1496 = vmatpush1.msra.mxu0 0.0
    %1497 = vmatprep.subr.mxu0 0.0
    %1498 = vmatpush1.msra.mxu0 0.0
    %1499 = vmatprep.subr.mxu0 0.0
    %1500 = vmatpush1.msra.mxu0 0.0
    %1501 = vmatprep.subr.mxu0 0.0
    %1502 = vmatpush1.msra.mxu0 0.0
    %1503 = vmatprep.subr.mxu0 0.0
    %1504 = vmatpush1.msra.mxu0 0.0
    %1505 = vmatprep.mubr.f32.mxu0 0.0
    %1506 = vmatmul.mubr.f32.gmra.mrb[0].mxu0 %v1439
    %v1507 = vpop.f32.mrb[0].mxu0
    %v1508 = vadd.f32 0.0, %v1507
    %v1509 = vpop.f32.mrb[0].mxu0
    %1510 = vdwg.mxu0
    %1511 = vrot.lane.b32.xlu0 %v429, 64
    %v1512 = vpop.permute.xlu0 %1511
    %v1515 = vsel %vm436, %v1128, 0
    %1517 = vmatprep.subr.mxu0 0.0
    %1518 = vmatpush1.msra.mxu0 %v1512
    %1519 = vmatprep.subr.mxu0 0.0
    %1520 = vmatpush1.msra.mxu0 0.0
    %1521 = vmatprep.subr.mxu0 0.0
    %1522 = vmatpush1.msra.mxu0 0.0
    %1523 = vmatprep.subr.mxu0 0.0
    %1524 = vmatpush1.msra.mxu0 0.0
    %1525 = vmatprep.subr.mxu0 0.0
    %1526 = vmatpush1.msra.mxu0 0.0
    %1527 = vmatprep.subr.mxu0 0.0
    %1528 = vmatpush1.msra.mxu0 0.0
    %1529 = vmatprep.subr.mxu0 0.0
    %1530 = vmatpush1.msra.mxu0 0.0
    %1531 = vmatprep.subr.mxu0 0.0
    %1532 = vmatpush1.msra.mxu0 0.0
    %1533 = vmatprep.subr.mxu0 0.0
    %1534 = vmatpush1.msra.mxu0 0.0
    %1535 = vmatprep.subr.mxu0 0.0
    %1536 = vmatpush1.msra.mxu0 0.0
    %1537 = vmatprep.subr.mxu0 0.0
    %1538 = vmatpush1.msra.mxu0 0.0
    %1539 = vmatprep.subr.mxu0 0.0
    %1540 = vmatpush1.msra.mxu0 0.0
    %1541 = vmatprep.subr.mxu0 0.0
    %1542 = vmatpush1.msra.mxu0 0.0
    %1543 = vmatprep.subr.mxu0 0.0
    %1544 = vmatpush1.msra.mxu0 0.0
    %1545 = vmatprep.subr.mxu0 0.0
    %1546 = vmatpush1.msra.mxu0 0.0
    %1547 = vmatprep.subr.mxu0 0.0
    %1548 = vmatpush1.msra.mxu0 0.0
    %1549 = vmatprep.subr.mxu0 0.0
    %1550 = vmatpush1.msra.mxu0 0.0
    %1551 = vmatprep.subr.mxu0 0.0
    %1552 = vmatpush1.msra.mxu0 0.0
    %1553 = vmatprep.subr.mxu0 0.0
    %1554 = vmatpush1.msra.mxu0 0.0
    %1555 = vmatprep.subr.mxu0 0.0
    %1556 = vmatpush1.msra.mxu0 0.0
    %1557 = vmatprep.subr.mxu0 0.0
    %1558 = vmatpush1.msra.mxu0 0.0
    %1559 = vmatprep.subr.mxu0 0.0
    %1560 = vmatpush1.msra.mxu0 0.0
    %1561 = vmatprep.subr.mxu0 0.0
    %1562 = vmatpush1.msra.mxu0 0.0
    %1563 = vmatprep.subr.mxu0 0.0
    %1564 = vmatpush1.msra.mxu0 0.0
    %1565 = vmatprep.subr.mxu0 0.0
    %1566 = vmatpush1.msra.mxu0 0.0
    %1567 = vmatprep.subr.mxu0 0.0
    %1568 = vmatpush1.msra.mxu0 0.0
    %1569 = vmatprep.subr.mxu0 0.0
    %1570 = vmatpush1.msra.mxu0 0.0
    %1571 = vmatprep.subr.mxu0 0.0
    %1572 = vmatpush1.msra.mxu0 0.0
    %1573 = vmatprep.subr.mxu0 0.0
    %1574 = vmatpush1.msra.mxu0 0.0
    %1575 = vmatprep.subr.mxu0 0.0
    %1576 = vmatpush1.msra.mxu0 0.0
    %1577 = vmatprep.subr.mxu0 0.0
    %1578 = vmatpush1.msra.mxu0 0.0
    %1579 = vmatprep.subr.mxu0 0.0
    %1580 = vmatpush1.msra.mxu0 0.0
    %1581 = vmatprep.mubr.f32.mxu0 0.0
    %1582 = vmatmul.mubr.f32.gmra.mrb[0].mxu0 %v1515
    %v1583 = vpop.f32.mrb[0].mxu0
    %v1584 = vadd.f32 0.0, %v1583
    %v1585 = vpop.f32.mrb[0].mxu0
    %1586 = vdwg.mxu0
    %1587 = vrot.lane.b32.xlu0 %v431, 64
    %v1588 = vpop.permute.xlu0 %1587
    %v1591 = vsel %vm436, %v1129, 0
    %1593 = vmatprep.subr.mxu0 0.0
    %1594 = vmatpush1.msra.mxu0 %v1588
    %1595 = vmatprep.subr.mxu0 0.0
    %1596 = vmatpush1.msra.mxu0 0.0
    %1597 = vmatprep.subr.mxu0 0.0
    %1598 = vmatpush1.msra.mxu0 0.0
    %1599 = vmatprep.subr.mxu0 0.0
    %1600 = vmatpush1.msra.mxu0 0.0
    %1601 = vmatprep.subr.mxu0 0.0
    %1602 = vmatpush1.msra.mxu0 0.0
    %1603 = vmatprep.subr.mxu0 0.0
    %1604 = vmatpush1.msra.mxu0 0.0
    %1605 = vmatprep.subr.mxu0 0.0
    %1606 = vmatpush1.msra.mxu0 0.0
    %1607 = vmatprep.subr.mxu0 0.0
    %1608 = vmatpush1.msra.mxu0 0.0
    %1609 = vmatprep.subr.mxu0 0.0
    %1610 = vmatpush1.msra.mxu0 0.0
    %1611 = vmatprep.subr.mxu0 0.0
    %1612 = vmatpush1.msra.mxu0 0.0
    %1613 = vmatprep.subr.mxu0 0.0
    %1614 = vmatpush1.msra.mxu0 0.0
    %1615 = vmatprep.subr.mxu0 0.0
    %1616 = vmatpush1.msra.mxu0 0.0
    %1617 = vmatprep.subr.mxu0 0.0
    %1618 = vmatpush1.msra.mxu0 0.0
    %1619 = vmatprep.subr.mxu0 0.0
    %1620 = vmatpush1.msra.mxu0 0.0
    %1621 = vmatprep.subr.mxu0 0.0
    %1622 = vmatpush1.msra.mxu0 0.0
    %1623 = vmatprep.subr.mxu0 0.0
    %1624 = vmatpush1.msra.mxu0 0.0
    %1625 = vmatprep.subr.mxu0 0.0
    %1626 = vmatpush1.msra.mxu0 0.0
    %1627 = vmatprep.subr.mxu0 0.0
    %1628 = vmatpush1.msra.mxu0 0.0
    %1629 = vmatprep.subr.mxu0 0.0
    %1630 = vmatpush1.msra.mxu0 0.0
    %1631 = vmatprep.subr.mxu0 0.0
    %1632 = vmatpush1.msra.mxu0 0.0
    %1633 = vmatprep.subr.mxu0 0.0
    %1634 = vmatpush1.msra.mxu0 0.0
    %1635 = vmatprep.subr.mxu0 0.0
    %1636 = vmatpush1.msra.mxu0 0.0
    %1637 = vmatprep.subr.mxu0 0.0
    %1638 = vmatpush1.msra.mxu0 0.0
    %1639 = vmatprep.subr.mxu0 0.0
    %1640 = vmatpush1.msra.mxu0 0.0
    %1641 = vmatprep.subr.mxu0 0.0
    %1642 = vmatpush1.msra.mxu0 0.0
    %1643 = vmatprep.subr.mxu0 0.0
    %1644 = vmatpush1.msra.mxu0 0.0
    %1645 = vmatprep.subr.mxu0 0.0
    %1646 = vmatpush1.msra.mxu0 0.0
    %1647 = vmatprep.subr.mxu0 0.0
    %1648 = vmatpush1.msra.mxu0 0.0
    %1649 = vmatprep.subr.mxu0 0.0
    %1650 = vmatpush1.msra.mxu0 0.0
    %1651 = vmatprep.subr.mxu0 0.0
    %1652 = vmatpush1.msra.mxu0 0.0
    %1653 = vmatprep.subr.mxu0 0.0
    %1654 = vmatpush1.msra.mxu0 0.0
    %1655 = vmatprep.subr.mxu0 0.0
    %1656 = vmatpush1.msra.mxu0 0.0
    %1657 = vmatprep.mubr.f32.mxu0 0.0
    %1658 = vmatmul.mubr.f32.gmra.mrb[0].mxu0 %v1591
    %v1659 = vpop.f32.mrb[0].mxu0
    %v1660 = vadd.f32 0.0, %v1659
    %v1661 = vpop.f32.mrb[0].mxu0
    %1662 = vdwg.mxu0
    %1663 = vrot.lane.b32.xlu0 %v433, 64
    %v1664 = vpop.permute.xlu0 %1663
    %v1667 = vsel %vm436, %v1130, 0
    %1669 = vmatprep.subr.mxu0 0.0
    %1670 = vmatpush1.msra.mxu0 %v1664
    %1671 = vmatprep.subr.mxu0 0.0
    %1672 = vmatpush1.msra.mxu0 0.0
    %1673 = vmatprep.subr.mxu0 0.0
    %1674 = vmatpush1.msra.mxu0 0.0
    %1675 = vmatprep.subr.mxu0 0.0
    %1676 = vmatpush1.msra.mxu0 0.0
    %1677 = vmatprep.subr.mxu0 0.0
    %1678 = vmatpush1.msra.mxu0 0.0
    %1679 = vmatprep.subr.mxu0 0.0
    %1680 = vmatpush1.msra.mxu0 0.0
    %1681 = vmatprep.subr.mxu0 0.0
    %1682 = vmatpush1.msra.mxu0 0.0
    %1683 = vmatprep.subr.mxu0 0.0
    %1684 = vmatpush1.msra.mxu0 0.0
    %1685 = vmatprep.subr.mxu0 0.0
    %1686 = vmatpush1.msra.mxu0 0.0
    %1687 = vmatprep.subr.mxu0 0.0
    %1688 = vmatpush1.msra.mxu0 0.0
    %1689 = vmatprep.subr.mxu0 0.0
    %1690 = vmatpush1.msra.mxu0 0.0
    %1691 = vmatprep.subr.mxu0 0.0
    %1692 = vmatpush1.msra.mxu0 0.0
    %1693 = vmatprep.subr.mxu0 0.0
    %1694 = vmatpush1.msra.mxu0 0.0
    %1695 = vmatprep.subr.mxu0 0.0
    %1696 = vmatpush1.msra.mxu0 0.0
    %1697 = vmatprep.subr.mxu0 0.0
    %1698 = vmatpush1.msra.mxu0 0.0
    %1699 = vmatprep.subr.mxu0 0.0
    %1700 = vmatpush1.msra.mxu0 0.0
    %1701 = vmatprep.subr.mxu0 0.0
    %1702 = vmatpush1.msra.mxu0 0.0
    %1703 = vmatprep.subr.mxu0 0.0
    %1704 = vmatpush1.msra.mxu0 0.0
    %1705 = vmatprep.subr.mxu0 0.0
    %1706 = vmatpush1.msra.mxu0 0.0
    %1707 = vmatprep.subr.mxu0 0.0
    %1708 = vmatpush1.msra.mxu0 0.0
    %1709 = vmatprep.subr.mxu0 0.0
    %1710 = vmatpush1.msra.mxu0 0.0
    %1711 = vmatprep.subr.mxu0 0.0
    %1712 = vmatpush1.msra.mxu0 0.0
    %1713 = vmatprep.subr.mxu0 0.0
    %1714 = vmatpush1.msra.mxu0 0.0
    %1715 = vmatprep.subr.mxu0 0.0
    %1716 = vmatpush1.msra.mxu0 0.0
    %1717 = vmatprep.subr.mxu0 0.0
    %1718 = vmatpush1.msra.mxu0 0.0
    %1719 = vmatprep.subr.mxu0 0.0
    %1720 = vmatpush1.msra.mxu0 0.0
    %1721 = vmatprep.subr.mxu0 0.0
    %1722 = vmatpush1.msra.mxu0 0.0
    %1723 = vmatprep.subr.mxu0 0.0
    %1724 = vmatpush1.msra.mxu0 0.0
    %1725 = vmatprep.subr.mxu0 0.0
    %1726 = vmatpush1.msra.mxu0 0.0
    %1727 = vmatprep.subr.mxu0 0.0
    %1728 = vmatpush1.msra.mxu0 0.0
    %1729 = vmatprep.subr.mxu0 0.0
    %1730 = vmatpush1.msra.mxu0 0.0
    %1731 = vmatprep.subr.mxu0 0.0
    %1732 = vmatpush1.msra.mxu0 0.0
    %1733 = vmatprep.mubr.f32.mxu0 0.0
    %1734 = vmatmul.mubr.f32.gmra.mrb[0].mxu0 %v1667
    %v1735 = vpop.f32.mrb[0].mxu0
    %v1736 = vadd.f32 0.0, %v1735
    %v1737 = vpop.f32.mrb[0].mxu0
    %1738 = vdwg.mxu0
    %1741 = vrot.lane.b32.xlu0 %v1356, 8
    %v1742 = vpop.permute.xlu0 %1741
    %1743 = vrot.lane.b32.xlu0 %v1432, 8
    %v1744 = vpop.permute.xlu0 %1743
    %1749 = vrot.lane.b32.xlu0 %v1508, 16
    %v1750 = vpop.permute.xlu0 %1749
    %1751 = vrot.lane.b32.xlu0 %v1584, 16
    %v1752 = vpop.permute.xlu0 %1751
    %1757 = vrot.lane.b32.xlu0 %v1660, 24
    %v1758 = vpop.permute.xlu0 %1757
    %1759 = vrot.lane.b32.xlu0 %v1736, 24
    %v1760 = vpop.permute.xlu0 %1759
    %v1763 = vsel %vm436, %v1204, %v1742
    %v1764 = vsel %vm436, %v1280, %v1744
    %vm1765 = vcmask 130048
    %v1766 = vsel %vm1765, %v1763, %v1750
    %v1767 = vsel %vm1765, %v1764, %v1752
    %vm1768 = vcmask 195584
    %v1769 = vsel %vm1768, %v1766, %v1758
    %v1770 = vsel %vm1768, %v1767, %v1760
    %v1771 = vld [vmem:[%s4] sm:$0xff]
    %v1772 = vld [vmem:[%s4 + $0x8] sm:$0xff]
    %v1773 = vld [vmem:[%s4 + $0x10] sm:$0xff]
    %v1774 = vld [vmem:[%s4 + $0x18] sm:$0xff]
    %v1775 = vlaneseq
    %v1776 = vshrl.u32 %v1775, 7
    %v1777 = vsub.s32 4, %v1776
    %v1778 = vrot.slane %v46, %v1777
    %v1780 = vsel %vm291, %v1769, 0
    %v1783 = vsel %vm291, %v1770, 0
    %1785 = vmatprep.subr.mxu0 0.0
    %1786 = vmatpush1.msra.mxu0 %v1771
    %1787 = vmatprep.subr.mxu0 0.0
    %1788 = vmatpush1.msra.mxu0 %v1772
    %1789 = vmatprep.subr.mxu0 0.0
    %1790 = vmatpush1.msra.mxu0 %v1773
    %1791 = vmatprep.subr.mxu0 0.0
    %1792 = vmatpush1.msra.mxu0 %v1774
    %1793 = vmatprep.subr.mxu0 0.0
    %1794 = vmatpush1.msra.mxu0 0.0
    %1795 = vmatprep.subr.mxu0 0.0
    %1796 = vmatpush1.msra.mxu0 0.0
    %1797 = vmatprep.subr.mxu0 0.0
    %1798 = vmatpush1.msra.mxu0 0.0
    %1799 = vmatprep.subr.mxu0 0.0
    %1800 = vmatpush1.msra.mxu0 0.0
    %1801 = vmatprep.subr.mxu0 0.0
    %1802 = vmatpush1.msra.mxu0 0.0
    %1803 = vmatprep.subr.mxu0 0.0
    %1804 = vmatpush1.msra.mxu0 0.0
    %1805 = vmatprep.subr.mxu0 0.0
    %1806 = vmatpush1.msra.mxu0 0.0
    %1807 = vmatprep.subr.mxu0 0.0
    %1808 = vmatpush1.msra.mxu0 0.0
    %1809 = vmatprep.subr.mxu0 0.0
    %1810 = vmatpush1.msra.mxu0 0.0
    %1811 = vmatprep.subr.mxu0 0.0
    %1812 = vmatpush1.msra.mxu0 0.0
    %1813 = vmatprep.subr.mxu0 0.0
    %1814 = vmatpush1.msra.mxu0 0.0
    %1815 = vmatprep.subr.mxu0 0.0
    %1816 = vmatpush1.msra.mxu0 0.0
    %1817 = vmatprep.subr.mxu0 0.0
    %1818 = vmatpush1.msra.mxu0 0.0
    %1819 = vmatprep.subr.mxu0 0.0
    %1820 = vmatpush1.msra.mxu0 0.0
    %1821 = vmatprep.subr.mxu0 0.0
    %1822 = vmatpush1.msra.mxu0 0.0
    %1823 = vmatprep.subr.mxu0 0.0
    %1824 = vmatpush1.msra.mxu0 0.0
    %1825 = vmatprep.subr.mxu0 0.0
    %1826 = vmatpush1.msra.mxu0 0.0
    %1827 = vmatprep.subr.mxu0 0.0
    %1828 = vmatpush1.msra.mxu0 0.0
    %1829 = vmatprep.subr.mxu0 0.0
    %1830 = vmatpush1.msra.mxu0 0.0
    %1831 = vmatprep.subr.mxu0 0.0
    %1832 = vmatpush1.msra.mxu0 0.0
    %1833 = vmatprep.subr.mxu0 0.0
    %1834 = vmatpush1.msra.mxu0 0.0
    %1835 = vmatprep.subr.mxu0 0.0
    %1836 = vmatpush1.msra.mxu0 0.0
    %1837 = vmatprep.subr.mxu0 0.0
    %1838 = vmatpush1.msra.mxu0 0.0
    %1839 = vmatprep.subr.mxu0 0.0
    %1840 = vmatpush1.msra.mxu0 0.0
    %1841 = vmatprep.subr.mxu0 0.0
    %1842 = vmatpush1.msra.mxu0 0.0
    %1843 = vmatprep.subr.mxu0 0.0
    %1844 = vmatpush1.msra.mxu0 0.0
    %1845 = vmatprep.subr.mxu0 0.0
    %1846 = vmatpush1.msra.mxu0 0.0
    %1847 = vmatprep.subr.mxu0 0.0
    %1848 = vmatpush1.msra.mxu0 0.0
    %1849 = vmatprep.mubr.f32.mxu0 0.0
    %1850 = vmatmul.mubr.f32.gmra.mrb[0].mxu0 %v1780
    %v1851 = vpop.f32.mrb[0].mxu0
    %v1852 = vadd.f32 %v1778, %v1851
    %v1853 = vpop.f32.mrb[0].mxu0
    %1854 = vmatprep.mubr.f32.mxu0 0.0
    %1855 = vmatmul.mubr.f32.gmra.mrb[0].mxu0 %v1783
    %v1856 = vpop.f32.mrb[0].mxu0
    %v1857 = vadd.f32 %v1778, %v1856
    %v1858 = vpop.f32.mrb[0].mxu0
    %1859 = vdwg.mxu0
    %v1860 = vadd.f32 %v329, %v1852
    %v1861 = vadd.f32 %v330, %v1857
    %v1862 = vsel %vm291, %v1860, 0.0
    %1863 = vadd.xlane.f32.xlu0 %v1862
    %v1864 = vpop.xlane.xlu0 %1863
    %v1865 = vsel %vm291, %v1861, 0.0
    %1866 = vadd.xlane.f32.xlu0 %v1865
    %v1867 = vpop.xlane.xlu0 %1866
    %v1868 = vmul.f32 %v1864, %v298
    %v1869 = vmul.f32 %v1867, %v298
    %v1870 = vsub.f32 %v1860, %v1868
    %v1871 = vsub.f32 %v1861, %v1869
    %v1872 = vmul.f32 %v1870, %v1870
    %v1873 = vmul.f32 %v1871, %v1871
    %v1874 = vsel %vm291, %v1872, 0.0
    %1875 = vadd.xlane.f32.xlu0 %v1874
    %v1876 = vpop.xlane.xlu0 %1875
    %v1877 = vsel %vm291, %v1873, 0.0
    %1878 = vadd.xlane.f32.xlu0 %v1877
    %v1879 = vpop.xlane.xlu0 %1878
    %v1880 = vmul.f32 %v1876, %v298
    %v1881 = vmul.f32 %v1879, %v298
    %v1882 = vadd.f32 %v1880, 1e-12
    %v1883 = vadd.f32 %v1881, 1e-12
    %v1884 = vrsqrt.pop %v1882
    %v1885 = vrsqrt.pop %v1883
    %v1886 = vmul.f32 %v1870, %v1884
    %v1887 = vmul.f32 %v1871, %v1885
    %v1888 = vlaneseq
    %v1889 = vshrl.u32 %v1888, 7
    %v1890 = vsub.s32 5, %v1889
    %v1891 = vrot.slane %v46, %v1890
    %v1892 = vmul.f32 %v1886, %v1891
    %v1893 = vmul.f32 %v1887, %v1891
    %v1894 = vlaneseq
    %v1895 = vshrl.u32 %v1894, 7
    %v1896 = vsub.s32 6, %v1895
    %v1897 = vrot.slane %v46, %v1896
    %v1898 = vadd.f32 %v1892, %v1897
    %v1899 = vadd.f32 %v1893, %v1897
    %v1900 = vld [vmem:[%s5] sm:$0xff]
    %v1901 = vld [vmem:[%s5 + $0x8] sm:$0xff]
    %v1902 = vld [vmem:[%s5 + $0x10] sm:$0xff]
    %v1903 = vld [vmem:[%s5 + $0x18] sm:$0xff]
    %v1904 = vlaneseq
    %v1905 = vshrl.u32 %v1904, 7
    %v1906 = vsub.s32 7, %v1905
    %v1907 = vrot.slane %v46, %v1906
    %v1909 = vsel %vm291, %v1898, 0
    %v1912 = vsel %vm291, %v1899, 0
    %1914 = vmatprep.subr.mxu0 0.0
    %1915 = vmatpush1.msra.mxu0 %v1900
    %1916 = vmatprep.subr.mxu0 0.0
    %1917 = vmatpush1.msra.mxu0 %v1901
    %1918 = vmatprep.subr.mxu0 0.0
    %1919 = vmatpush1.msra.mxu0 %v1902
    %1920 = vmatprep.subr.mxu0 0.0
    %1921 = vmatpush1.msra.mxu0 %v1903
    %1922 = vmatprep.subr.mxu0 0.0
    %1923 = vmatpush1.msra.mxu0 0.0
    %1924 = vmatprep.subr.mxu0 0.0
    %1925 = vmatpush1.msra.mxu0 0.0
    %1926 = vmatprep.subr.mxu0 0.0
    %1927 = vmatpush1.msra.mxu0 0.0
    %1928 = vmatprep.subr.mxu0 0.0
    %1929 = vmatpush1.msra.mxu0 0.0
    %1930 = vmatprep.subr.mxu0 0.0
    %1931 = vmatpush1.msra.mxu0 0.0
    %1932 = vmatprep.subr.mxu0 0.0
    %1933 = vmatpush1.msra.mxu0 0.0
    %1934 = vmatprep.subr.mxu0 0.0
    %1935 = vmatpush1.msra.mxu0 0.0
    %1936 = vmatprep.subr.mxu0 0.0
    %1937 = vmatpush1.msra.mxu0 0.0
    %1938 = vmatprep.subr.mxu0 0.0
    %1939 = vmatpush1.msra.mxu0 0.0
    %1940 = vmatprep.subr.mxu0 0.0
    %1941 = vmatpush1.msra.mxu0 0.0
    %1942 = vmatprep.subr.mxu0 0.0
    %1943 = vmatpush1.msra.mxu0 0.0
    %1944 = vmatprep.subr.mxu0 0.0
    %1945 = vmatpush1.msra.mxu0 0.0
    %1946 = vmatprep.subr.mxu0 0.0
    %1947 = vmatpush1.msra.mxu0 0.0
    %1948 = vmatprep.subr.mxu0 0.0
    %1949 = vmatpush1.msra.mxu0 0.0
    %1950 = vmatprep.subr.mxu0 0.0
    %1951 = vmatpush1.msra.mxu0 0.0
    %1952 = vmatprep.subr.mxu0 0.0
    %1953 = vmatpush1.msra.mxu0 0.0
    %1954 = vmatprep.subr.mxu0 0.0
    %1955 = vmatpush1.msra.mxu0 0.0
    %1956 = vmatprep.subr.mxu0 0.0
    %1957 = vmatpush1.msra.mxu0 0.0
    %1958 = vmatprep.subr.mxu0 0.0
    %1959 = vmatpush1.msra.mxu0 0.0
    %1960 = vmatprep.subr.mxu0 0.0
    %1961 = vmatpush1.msra.mxu0 0.0
    %1962 = vmatprep.subr.mxu0 0.0
    %1963 = vmatpush1.msra.mxu0 0.0
    %1964 = vmatprep.subr.mxu0 0.0
    %1965 = vmatpush1.msra.mxu0 0.0
    %1966 = vmatprep.subr.mxu0 0.0
    %1967 = vmatpush1.msra.mxu0 0.0
    %1968 = vmatprep.subr.mxu0 0.0
    %1969 = vmatpush1.msra.mxu0 0.0
    %1970 = vmatprep.subr.mxu0 0.0
    %1971 = vmatpush1.msra.mxu0 0.0
    %1972 = vmatprep.subr.mxu0 0.0
    %1973 = vmatpush1.msra.mxu0 0.0
    %1974 = vmatprep.subr.mxu0 0.0
    %1975 = vmatpush1.msra.mxu0 0.0
    %1976 = vmatprep.subr.mxu0 0.0
    %1977 = vmatpush1.msra.mxu0 0.0
    %1978 = vmatprep.mubr.f32.mxu0 0.0
    %1979 = vmatmul.mubr.f32.gmra.mrb[0].mxu0 %v1909
    %v1980 = vpop.f32.mrb[0].mxu0
    %v1981 = vadd.f32 %v1907, %v1980
    %v1982 = vpop.f32.mrb[0].mxu0
    %1983 = vmatprep.mubr.f32.mxu0 0.0
    %1984 = vmatmul.mubr.f32.gmra.mrb[0].mxu0 %v1912
    %v1985 = vpop.f32.mrb[0].mxu0
    %v1986 = vadd.f32 %v1907, %v1985
    %v1987 = vpop.f32.mrb[0].mxu0
    %1988 = vdwg.mxu0
    %v1989 = vmul.f32 %v1981, %v1981
    %v1990 = vmul.f32 %v1986, %v1986
    %v1991 = vmul.f32 %v1981, %v1989
    %v1992 = vmul.f32 %v1986, %v1990
    %v1993 = vmul.f32 %v1991, 0.044715
    %v1994 = vmul.f32 %v1992, 0.044715
    %v1995 = vadd.f32 %v1981, %v1993
    %v1996 = vadd.f32 %v1986, %v1994
    %v1997 = vmul.f32 %v1995, 0.7978846
    %v1998 = vmul.f32 %v1996, 0.7978846
    %v1999 = vtanh.pop %v1997
    %v2000 = vtanh.pop %v1998
    %v2001 = vadd.f32 %v1999, 1.0
    %v2002 = vadd.f32 %v2000, 1.0
    %v2003 = vmul.f32 %v2001, 0.5
    %v2004 = vmul.f32 %v2002, 0.5
    %v2005 = vmul.f32 %v1981, %v2003
    %v2006 = vmul.f32 %v1986, %v2004
    %v2007 = vld [vmem:[%s6] sm:$0xff]
    %v2008 = vld [vmem:[%s6 + $0x8] sm:$0xff]
    %v2009 = vld [vmem:[%s6 + $0x10] sm:$0xff]
    %v2010 = vld [vmem:[%s6 + $0x18] sm:$0xff]
    %v2011 = vld [vmem:[%s6 + $0x20] sm:$0xff]
    %v2012 = vld [vmem:[%s6 + $0x28] sm:$0xff]
    %v2013 = vld [vmem:[%s6 + $0x30] sm:$0xff]
    %v2014 = vld [vmem:[%s6 + $0x38] sm:$0xff]
    %v2015 = vlaneseq
    %v2016 = vshrl.u32 %v2015, 7
    %v2017 = vsub.s32 0, %v2016
    %v2018 = vrot.slane %v47, %v2017
    %vm2019 = vcmask 523264
    %v2021 = vsel %vm2019, %v2005, 0
    %v2024 = vsel %vm2019, %v2006, 0
    %2026 = vmatprep.subr.mxu0 0.0
    %2027 = vmatpush1.msra.mxu0 %v2007
    %2028 = vmatprep.subr.mxu0 0.0
    %2029 = vmatpush1.msra.mxu0 %v2008
    %2030 = vmatprep.subr.mxu0 0.0
    %2031 = vmatpush1.msra.mxu0 %v2009
    %2032 = vmatprep.subr.mxu0 0.0
    %2033 = vmatpush1.msra.mxu0 %v2010
    %2034 = vmatprep.subr.mxu0 0.0
    %2035 = vmatpush1.msra.mxu0 %v2011
    %2036 = vmatprep.subr.mxu0 0.0
    %2037 = vmatpush1.msra.mxu0 %v2012
    %2038 = vmatprep.subr.mxu0 0.0
    %2039 = vmatpush1.msra.mxu0 %v2013
    %2040 = vmatprep.subr.mxu0 0.0
    %2041 = vmatpush1.msra.mxu0 %v2014
    %2042 = vmatprep.subr.mxu0 0.0
    %2043 = vmatpush1.msra.mxu0 0.0
    %2044 = vmatprep.subr.mxu0 0.0
    %2045 = vmatpush1.msra.mxu0 0.0
    %2046 = vmatprep.subr.mxu0 0.0
    %2047 = vmatpush1.msra.mxu0 0.0
    %2048 = vmatprep.subr.mxu0 0.0
    %2049 = vmatpush1.msra.mxu0 0.0
    %2050 = vmatprep.subr.mxu0 0.0
    %2051 = vmatpush1.msra.mxu0 0.0
    %2052 = vmatprep.subr.mxu0 0.0
    %2053 = vmatpush1.msra.mxu0 0.0
    %2054 = vmatprep.subr.mxu0 0.0
    %2055 = vmatpush1.msra.mxu0 0.0
    %2056 = vmatprep.subr.mxu0 0.0
    %2057 = vmatpush1.msra.mxu0 0.0
    %2058 = vmatprep.subr.mxu0 0.0
    %2059 = vmatpush1.msra.mxu0 0.0
    %2060 = vmatprep.subr.mxu0 0.0
    %2061 = vmatpush1.msra.mxu0 0.0
    %2062 = vmatprep.subr.mxu0 0.0
    %2063 = vmatpush1.msra.mxu0 0.0
    %2064 = vmatprep.subr.mxu0 0.0
    %2065 = vmatpush1.msra.mxu0 0.0
    %2066 = vmatprep.subr.mxu0 0.0
    %2067 = vmatpush1.msra.mxu0 0.0
    %2068 = vmatprep.subr.mxu0 0.0
    %2069 = vmatpush1.msra.mxu0 0.0
    %2070 = vmatprep.subr.mxu0 0.0
    %2071 = vmatpush1.msra.mxu0 0.0
    %2072 = vmatprep.subr.mxu0 0.0
    %2073 = vmatpush1.msra.mxu0 0.0
    %2074 = vmatprep.subr.mxu0 0.0
    %2075 = vmatpush1.msra.mxu0 0.0
    %2076 = vmatprep.subr.mxu0 0.0
    %2077 = vmatpush1.msra.mxu0 0.0
    %2078 = vmatprep.subr.mxu0 0.0
    %2079 = vmatpush1.msra.mxu0 0.0
    %2080 = vmatprep.subr.mxu0 0.0
    %2081 = vmatpush1.msra.mxu0 0.0
    %2082 = vmatprep.subr.mxu0 0.0
    %2083 = vmatpush1.msra.mxu0 0.0
    %2084 = vmatprep.subr.mxu0 0.0
    %2085 = vmatpush1.msra.mxu0 0.0
    %2086 = vmatprep.subr.mxu0 0.0
    %2087 = vmatpush1.msra.mxu0 0.0
    %2088 = vmatprep.subr.mxu0 0.0
    %2089 = vmatpush1.msra.mxu0 0.0
    %2090 = vmatprep.mubr.f32.mxu0 0.0
    %2091 = vmatmul.mubr.f32.gmra.mrb[0].mxu0 %v2021
    %v2092 = vpop.f32.mrb[0].mxu0
    %v2093 = vadd.f32 %v2018, %v2092
    %v2094 = vpop.f32.mrb[0].mxu0
    %2095 = vmatprep.mubr.f32.mxu0 0.0
    %2096 = vmatmul.mubr.f32.gmra.mrb[0].mxu0 %v2024
    %v2097 = vpop.f32.mrb[0].mxu0
    %v2098 = vadd.f32 %v2018, %v2097
    %v2099 = vpop.f32.mrb[0].mxu0
    %2100 = vdwg.mxu0
    %v2101 = vadd.f32 %v1898, %v2093
    %v2102 = vadd.f32 %v1899, %v2098
    %v2103 = vsel %vm291, %v2101, 0.0
    %2104 = vadd.xlane.f32.xlu0 %v2103
    %v2105 = vpop.xlane.xlu0 %2104
    %v2106 = vsel %vm291, %v2102, 0.0
    %2107 = vadd.xlane.f32.xlu0 %v2106
    %v2108 = vpop.xlane.xlu0 %2107
    %v2109 = vmul.f32 %v2105, %v298
    %v2110 = vmul.f32 %v2108, %v298
    %v2111 = vsub.f32 %v2101, %v2109
    %v2112 = vsub.f32 %v2102, %v2110
    %v2113 = vmul.f32 %v2111, %v2111
    %v2114 = vmul.f32 %v2112, %v2112
    %v2115 = vsel %vm291, %v2113, 0.0
    %2116 = vadd.xlane.f32.xlu0 %v2115
    %v2117 = vpop.xlane.xlu0 %2116
    %v2118 = vsel %vm291, %v2114, 0.0
    %2119 = vadd.xlane.f32.xlu0 %v2118
    %v2120 = vpop.xlane.xlu0 %2119
    %v2121 = vmul.f32 %v2117, %v298
    %v2122 = vmul.f32 %v2120, %v298
    %v2123 = vadd.f32 %v2121, 1e-12
    %v2124 = vadd.f32 %v2122, 1e-12
    %v2125 = vrsqrt.pop %v2123
    %v2126 = vrsqrt.pop %v2124
    %v2127 = vmul.f32 %v2111, %v2125
    %v2128 = vmul.f32 %v2112, %v2126
    %v2129 = vlaneseq
    %v2130 = vshrl.u32 %v2129, 7
    %v2131 = vsub.s32 1, %v2130
    %v2132 = vrot.slane %v47, %v2131
    %v2133 = vmul.f32 %v2127, %v2132
    %v2134 = vmul.f32 %v2128, %v2132
    %v2135 = vlaneseq
    %v2136 = vshrl.u32 %v2135, 7
    %v2137 = vsub.s32 2, %v2136
    %v2138 = vrot.slane %v47, %v2137
    %v2139 = vadd.f32 %v2133, %v2138
    %v2140 = vadd.f32 %v2134, %v2138
    %s2141 = scalar_lea.vmem %s3, 32
    %v2142 = vld [vmem:[%s2141] sm:$0xff]
    %v2143 = vld [vmem:[%s2141 + $0x8] sm:$0xff]
    %v2144 = vld [vmem:[%s2141 + $0x10] sm:$0xff]
    %v2145 = vld [vmem:[%s2141 + $0x18] sm:$0xff]
    %v2146 = vlaneseq
    %v2147 = vshrl.u32 %v2146, 7
    %v2148 = vsub.s32 3, %v2147
    %v2149 = vrot.slane %v47, %v2148
    %v2151 = vsel %vm291, %v2139, 0
    %v2154 = vsel %vm291, %v2140, 0
    %2156 = vmatprep.subr.mxu0 0.0
    %2157 = vmatpush1.msra.mxu0 %v2142
    %2158 = vmatprep.subr.mxu0 0.0
    %2159 = vmatpush1.msra.mxu0 %v2143
    %2160 = vmatprep.subr.mxu0 0.0
    %2161 = vmatpush1.msra.mxu0 %v2144
    %2162 = vmatprep.subr.mxu0 0.0
    %2163 = vmatpush1.msra.mxu0 %v2145
    %2164 = vmatprep.subr.mxu0 0.0
    %2165 = vmatpush1.msra.mxu0 0.0
    %2166 = vmatprep.subr.mxu0 0.0
    %2167 = vmatpush1.msra.mxu0 0.0
    %2168 = vmatprep.subr.mxu0 0.0
    %2169 = vmatpush1.msra.mxu0 0.0
    %2170 = vmatprep.subr.mxu0 0.0
    %2171 = vmatpush1.msra.mxu0 0.0
    %2172 = vmatprep.subr.mxu0 0.0
    %2173 = vmatpush1.msra.mxu0 0.0
    %2174 = vmatprep.subr.mxu0 0.0
    %2175 = vmatpush1.msra.mxu0 0.0
    %2176 = vmatprep.subr.mxu0 0.0
    %2177 = vmatpush1.msra.mxu0 0.0
    %2178 = vmatprep.subr.mxu0 0.0
    %2179 = vmatpush1.msra.mxu0 0.0
    %2180 = vmatprep.subr.mxu0 0.0
    %2181 = vmatpush1.msra.mxu0 0.0
    %2182 = vmatprep.subr.mxu0 0.0
    %2183 = vmatpush1.msra.mxu0 0.0
    %2184 = vmatprep.subr.mxu0 0.0
    %2185 = vmatpush1.msra.mxu0 0.0
    %2186 = vmatprep.subr.mxu0 0.0
    %2187 = vmatpush1.msra.mxu0 0.0
    %2188 = vmatprep.subr.mxu0 0.0
    %2189 = vmatpush1.msra.mxu0 0.0
    %2190 = vmatprep.subr.mxu0 0.0
    %2191 = vmatpush1.msra.mxu0 0.0
    %2192 = vmatprep.subr.mxu0 0.0
    %2193 = vmatpush1.msra.mxu0 0.0
    %2194 = vmatprep.subr.mxu0 0.0
    %2195 = vmatpush1.msra.mxu0 0.0
    %2196 = vmatprep.subr.mxu0 0.0
    %2197 = vmatpush1.msra.mxu0 0.0
    %2198 = vmatprep.subr.mxu0 0.0
    %2199 = vmatpush1.msra.mxu0 0.0
    %2200 = vmatprep.subr.mxu0 0.0
    %2201 = vmatpush1.msra.mxu0 0.0
    %2202 = vmatprep.subr.mxu0 0.0
    %2203 = vmatpush1.msra.mxu0 0.0
    %2204 = vmatprep.subr.mxu0 0.0
    %2205 = vmatpush1.msra.mxu0 0.0
    %2206 = vmatprep.subr.mxu0 0.0
    %2207 = vmatpush1.msra.mxu0 0.0
    %2208 = vmatprep.subr.mxu0 0.0
    %2209 = vmatpush1.msra.mxu0 0.0
    %2210 = vmatprep.subr.mxu0 0.0
    %2211 = vmatpush1.msra.mxu0 0.0
    %2212 = vmatprep.subr.mxu0 0.0
    %2213 = vmatpush1.msra.mxu0 0.0
    %2214 = vmatprep.subr.mxu0 0.0
    %2215 = vmatpush1.msra.mxu0 0.0
    %2216 = vmatprep.subr.mxu0 0.0
    %2217 = vmatpush1.msra.mxu0 0.0
    %2218 = vmatprep.subr.mxu0 0.0
    %2219 = vmatpush1.msra.mxu0 0.0
    %2220 = vmatprep.mubr.f32.mxu0 0.0
    %2221 = vmatmul.mubr.f32.gmra.mrb[0].mxu0 %v2151
    %v2222 = vpop.f32.mrb[0].mxu0
    %v2223 = vadd.f32 %v2149, %v2222
    %v2224 = vpop.f32.mrb[0].mxu0
    %2225 = vmatprep.mubr.f32.mxu0 0.0
    %2226 = vmatmul.mubr.f32.gmra.mrb[0].mxu0 %v2154
    %v2227 = vpop.f32.mrb[0].mxu0
    %v2228 = vadd.f32 %v2149, %v2227
    %v2229 = vpop.f32.mrb[0].mxu0
    %2230 = vdwg.mxu0
    %2233 = vrot.lane.b32.xlu0 %v2223, 120
    %v2234 = vpop.permute.xlu0 %2233
    %2235 = vrot.lane.b32.xlu0 %v2228, 120
    %v2236 = vpop.permute.xlu0 %2235
    %2237 = vrot.lane.b32.xlu0 %v2223, 112
    %v2238 = vpop.permute.xlu0 %2237
    %2239 = vrot.lane.b32.xlu0 %v2228, 112
    %v2240 = vpop.permute.xlu0 %2239
    %2241 = vrot.lane.b32.xlu0 %v2223, 104
    %v2242 = vpop.permute.xlu0 %2241
    %2243 = vrot.lane.b32.xlu0 %v2228, 104
    %v2244 = vpop.permute.xlu0 %2243
    %2245 = vrot.lane.b32.xlu0 %v2223, 96
    %v2246 = vpop.permute.xlu0 %2245
    %v2247 = vsel %vm436, %v2223, 0
    %v2249 = vsel %vm436, %v2246, 0
    %2251 = vmatprep.subr.mxu0 0.0
    %2252 = vmatpush1.xpose.msra.mxu0 %v2249
    %2253 = vmatprep.subr.mxu0 0.0
    %2254 = vmatpush1.xpose.msra.mxu0 0.0
    %2255 = vmatprep.subr.mxu0 0.0
    %2256 = vmatpush1.xpose.msra.mxu0 0.0
    %2257 = vmatprep.subr.mxu0 0.0
    %2258 = vmatpush1.xpose.msra.mxu0 0.0
    %2259 = vmatprep.subr.mxu0 0.0
    %2260 = vmatpush1.xpose.msra.mxu0 0.0
    %2261 = vmatprep.subr.mxu0 0.0
    %2262 = vmatpush1.xpose.msra.mxu0 0.0
    %2263 = vmatprep.subr.mxu0 0.0
    %2264 = vmatpush1.xpose.msra.mxu0 0.0
    %2265 = vmatprep.subr.mxu0 0.0
    %2266 = vmatpush1.xpose.msra.mxu0 0.0
    %2267 = vmatprep.subr.mxu0 0.0
    %2268 = vmatpush1.xpose.msra.mxu0 0.0
    %2269 = vmatprep.subr.mxu0 0.0
    %2270 = vmatpush1.xpose.msra.mxu0 0.0
    %2271 = vmatprep.subr.mxu0 0.0
    %2272 = vmatpush1.xpose.msra.mxu0 0.0
    %2273 = vmatprep.subr.mxu0 0.0
    %2274 = vmatpush1.xpose.msra.mxu0 0.0
    %2275 = vmatprep.subr.mxu0 0.0
    %2276 = vmatpush1.xpose.msra.mxu0 0.0
    %2277 = vmatprep.subr.mxu0 0.0
    %2278 = vmatpush1.xpose.msra.mxu0 0.0
    %2279 = vmatprep.subr.mxu0 0.0
    %2280 = vmatpush1.xpose.msra.mxu0 0.0
    %2281 = vmatprep.subr.mxu0 0.0
    %2282 = vmatpush1.xpose.msra.mxu0 0.0
    %2283 = vmatprep.subr.mxu0 0.0
    %2284 = vmatpush1.xpose.msra.mxu0 0.0
    %2285 = vmatprep.subr.mxu0 0.0
    %2286 = vmatpush1.xpose.msra.mxu0 0.0
    %2287 = vmatprep.subr.mxu0 0.0
    %2288 = vmatpush1.xpose.msra.mxu0 0.0
    %2289 = vmatprep.subr.mxu0 0.0
    %2290 = vmatpush1.xpose.msra.mxu0 0.0
    %2291 = vmatprep.subr.mxu0 0.0
    %2292 = vmatpush1.xpose.msra.mxu0 0.0
    %2293 = vmatprep.subr.mxu0 0.0
    %2294 = vmatpush1.xpose.msra.mxu0 0.0
    %2295 = vmatprep.subr.mxu0 0.0
    %2296 = vmatpush1.xpose.msra.mxu0 0.0
    %2297 = vmatprep.subr.mxu0 0.0
    %2298 = vmatpush1.xpose.msra.mxu0 0.0
    %2299 = vmatprep.subr.mxu0 0.0
    %2300 = vmatpush1.xpose.msra.mxu0 0.0
    %2301 = vmatprep.subr.mxu0 0.0
    %2302 = vmatpush1.xpose.msra.mxu0 0.0
    %2303 = vmatprep.subr.mxu0 0.0
    %2304 = vmatpush1.xpose.msra.mxu0 0.0
    %2305 = vmatprep.subr.mxu0 0.0
    %2306 = vmatpush1.xpose.msra.mxu0 0.0
    %2307 = vmatprep.subr.mxu0 0.0
    %2308 = vmatpush1.xpose.msra.mxu0 0.0
    %2309 = vmatprep.subr.mxu0 0.0
    %2310 = vmatpush1.xpose.msra.mxu0 0.0
    %2311 = vmatprep.subr.mxu0 0.0
    %2312 = vmatpush1.xpose.msra.mxu0 0.0
    %2313 = vmatprep.subr.mxu0 0.0
    %2314 = vmatpush1.xpose.msra.mxu0 0.0
    %2315 = vmatprep.mubr.f32.mxu0 0.0
    %2316 = vmatmul.mubr.f32.gmra.mrb[0].mxu0 %v2247
    %v2317 = vpop.f32.mrb[0].mxu0
    %v2318 = vadd.f32 0.0, %v2317
    %v2319 = vpop.f32.mrb[0].mxu0
    %2320 = vdwg.mxu0
    %2321 = vrot.lane.b32.xlu0 %v2228, 96
    %v2322 = vpop.permute.xlu0 %2321
    %v2323 = vsel %vm436, %v2228, 0
    %v2325 = vsel %vm436, %v2322, 0
    %2327 = vmatprep.subr.mxu0 0.0
    %2328 = vmatpush1.xpose.msra.mxu0 %v2325
    %2329 = vmatprep.subr.mxu0 0.0
    %2330 = vmatpush1.xpose.msra.mxu0 0.0
    %2331 = vmatprep.subr.mxu0 0.0
    %2332 = vmatpush1.xpose.msra.mxu0 0.0
    %2333 = vmatprep.subr.mxu0 0.0
    %2334 = vmatpush1.xpose.msra.mxu0 0.0
    %2335 = vmatprep.subr.mxu0 0.0
    %2336 = vmatpush1.xpose.msra.mxu0 0.0
    %2337 = vmatprep.subr.mxu0 0.0
    %2338 = vmatpush1.xpose.msra.mxu0 0.0
    %2339 = vmatprep.subr.mxu0 0.0
    %2340 = vmatpush1.xpose.msra.mxu0 0.0
    %2341 = vmatprep.subr.mxu0 0.0
    %2342 = vmatpush1.xpose.msra.mxu0 0.0
    %2343 = vmatprep.subr.mxu0 0.0
    %2344 = vmatpush1.xpose.msra.mxu0 0.0
    %2345 = vmatprep.subr.mxu0 0.0
    %2346 = vmatpush1.xpose.msra.mxu0 0.0
    %2347 = vmatprep.subr.mxu0 0.0
    %2348 = vmatpush1.xpose.msra.mxu0 0.0
    %2349 = vmatprep.subr.mxu0 0.0
    %2350 = vmatpush1.xpose.msra.mxu0 0.0
    %2351 = vmatprep.subr.mxu0 0.0
    %2352 = vmatpush1.xpose.msra.mxu0 0.0
    %2353 = vmatprep.subr.mxu0 0.0
    %2354 = vmatpush1.xpose.msra.mxu0 0.0
    %2355 = vmatprep.subr.mxu0 0.0
    %2356 = vmatpush1.xpose.msra.mxu0 0.0
    %2357 = vmatprep.subr.mxu0 0.0
    %2358 = vmatpush1.xpose.msra.mxu0 0.0
    %2359 = vmatprep.subr.mxu0 0.0
    %2360 = vmatpush1.xpose.msra.mxu0 0.0
    %2361 = vmatprep.subr.mxu0 0.0
    %2362 = vmatpush1.xpose.msra.mxu0 0.0
    %2363 = vmatprep.subr.mxu0 0.0
    %2364 = vmatpush1.xpose.msra.mxu0 0.0
    %2365 = vmatprep.subr.mxu0 0.0
    %2366 = vmatpush1.xpose.msra.mxu0 0.0
    %2367 = vmatprep.subr.mxu0 0.0
    %2368 = vmatpush1.xpose.msra.mxu0 0.0
    %2369 = vmatprep.subr.mxu0 0.0
    %2370 = vmatpush1.xpose.msra.mxu0 0.0
    %2371 = vmatprep.subr.mxu0 0.0
    %2372 = vmatpush1.xpose.msra.mxu0 0.0
    %2373 = vmatprep.subr.mxu0 0.0
    %2374 = vmatpush1.xpose.msra.mxu0 0.0
    %2375 = vmatprep.subr.mxu0 0.0
    %2376 = vmatpush1.xpose.msra.mxu0 0.0
    %2377 = vmatprep.subr.mxu0 0.0
    %2378 = vmatpush1.xpose.msra.mxu0 0.0
    %2379 = vmatprep.subr.mxu0 0.0
    %2380 = vmatpush1.xpose.msra.mxu0 0.0
    %2381 = vmatprep.subr.mxu0 0.0
    %2382 = vmatpush1.xpose.msra.mxu0 0.0
    %2383 = vmatprep.subr.mxu0 0.0
    %2384 = vmatpush1.xpose.msra.mxu0 0.0
    %2385 = vmatprep.subr.mxu0 0.0
    %2386 = vmatpush1.xpose.msra.mxu0 0.0
    %2387 = vmatprep.subr.mxu0 0.0
    %2388 = vmatpush1.xpose.msra.mxu0 0.0
    %2389 = vmatprep.subr.mxu0 0.0
    %2390 = vmatpush1.xpose.msra.mxu0 0.0
    %2391 = vmatprep.mubr.f32.mxu0 0.0
    %2392 = vmatmul.mubr.f32.gmra.mrb[0].mxu0 %v2323
    %v2393 = vpop.f32.mrb[0].mxu0
    %v2394 = vadd.f32 0.0, %v2393
    %v2395 = vpop.f32.mrb[0].mxu0
    %2396 = vdwg.mxu0
    %2397 = vrot.lane.b32.xlu0 %v2234, 96
    %v2398 = vpop.permute.xlu0 %2397
    %v2399 = vsel %vm436, %v2234, 0
    %v2401 = vsel %vm436, %v2398, 0
    %2403 = vmatprep.subr.mxu0 0.0
    %2404 = vmatpush1.xpose.msra.mxu0 %v2401
    %2405 = vmatprep.subr.mxu0 0.0
    %2406 = vmatpush1.xpose.msra.mxu0 0.0
    %2407 = vmatprep.subr.mxu0 0.0
    %2408 = vmatpush1.xpose.msra.mxu0 0.0
    %2409 = vmatprep.subr.mxu0 0.0
    %2410 = vmatpush1.xpose.msra.mxu0 0.0
    %2411 = vmatprep.subr.mxu0 0.0
    %2412 = vmatpush1.xpose.msra.mxu0 0.0
    %2413 = vmatprep.subr.mxu0 0.0
    %2414 = vmatpush1.xpose.msra.mxu0 0.0
    %2415 = vmatprep.subr.mxu0 0.0
    %2416 = vmatpush1.xpose.msra.mxu0 0.0
    %2417 = vmatprep.subr.mxu0 0.0
    %2418 = vmatpush1.xpose.msra.mxu0 0.0
    %2419 = vmatprep.subr.mxu0 0.0
    %2420 = vmatpush1.xpose.msra.mxu0 0.0
    %2421 = vmatprep.subr.mxu0 0.0
    %2422 = vmatpush1.xpose.msra.mxu0 0.0
    %2423 = vmatprep.subr.mxu0 0.0
    %2424 = vmatpush1.xpose.msra.mxu0 0.0
    %2425 = vmatprep.subr.mxu0 0.0
    %2426 = vmatpush1.xpose.msra.mxu0 0.0
    %2427 = vmatprep.subr.mxu0 0.0
    %2428 = vmatpush1.xpose.msra.mxu0 0.0
    %2429 = vmatprep.subr.mxu0 0.0
    %2430 = vmatpush1.xpose.msra.mxu0 0.0
    %2431 = vmatprep.subr.mxu0 0.0
    %2432 = vmatpush1.xpose.msra.mxu0 0.0
    %2433 = vmatprep.subr.mxu0 0.0
    %2434 = vmatpush1.xpose.msra.mxu0 0.0
    %2435 = vmatprep.subr.mxu0 0.0
    %2436 = vmatpush1.xpose.msra.mxu0 0.0
    %2437 = vmatprep.subr.mxu0 0.0
    %2438 = vmatpush1.xpose.msra.mxu0 0.0
    %2439 = vmatprep.subr.mxu0 0.0
    %2440 = vmatpush1.xpose.msra.mxu0 0.0
    %2441 = vmatprep.subr.mxu0 0.0
    %2442 = vmatpush1.xpose.msra.mxu0 0.0
    %2443 = vmatprep.subr.mxu0 0.0
    %2444 = vmatpush1.xpose.msra.mxu0 0.0
    %2445 = vmatprep.subr.mxu0 0.0
    %2446 = vmatpush1.xpose.msra.mxu0 0.0
    %2447 = vmatprep.subr.mxu0 0.0
    %2448 = vmatpush1.xpose.msra.mxu0 0.0
    %2449 = vmatprep.subr.mxu0 0.0
    %2450 = vmatpush1.xpose.msra.mxu0 0.0
    %2451 = vmatprep.subr.mxu0 0.0
    %2452 = vmatpush1.xpose.msra.mxu0 0.0
    %2453 = vmatprep.subr.mxu0 0.0
    %2454 = vmatpush1.xpose.msra.mxu0 0.0
    %2455 = vmatprep.subr.mxu0 0.0
    %2456 = vmatpush1.xpose.msra.mxu0 0.0
    %2457 = vmatprep.subr.mxu0 0.0
    %2458 = vmatpush1.xpose.msra.mxu0 0.0
    %2459 = vmatprep.subr.mxu0 0.0
    %2460 = vmatpush1.xpose.msra.mxu0 0.0
    %2461 = vmatprep.subr.mxu0 0.0
    %2462 = vmatpush1.xpose.msra.mxu0 0.0
    %2463 = vmatprep.subr.mxu0 0.0
    %2464 = vmatpush1.xpose.msra.mxu0 0.0
    %2465 = vmatprep.subr.mxu0 0.0
    %2466 = vmatpush1.xpose.msra.mxu0 0.0
    %2467 = vmatprep.mubr.f32.mxu0 0.0
    %2468 = vmatmul.mubr.f32.gmra.mrb[0].mxu0 %v2399
    %v2469 = vpop.f32.mrb[0].mxu0
    %v2470 = vadd.f32 0.0, %v2469
    %v2471 = vpop.f32.mrb[0].mxu0
    %2472 = vdwg.mxu0
    %2473 = vrot.lane.b32.xlu0 %v2236, 96
    %v2474 = vpop.permute.xlu0 %2473
    %v2475 = vsel %vm436, %v2236, 0
    %v2477 = vsel %vm436, %v2474, 0
    %2479 = vmatprep.subr.mxu0 0.0
    %2480 = vmatpush1.xpose.msra.mxu0 %v2477
    %2481 = vmatprep.subr.mxu0 0.0
    %2482 = vmatpush1.xpose.msra.mxu0 0.0
    %2483 = vmatprep.subr.mxu0 0.0
    %2484 = vmatpush1.xpose.msra.mxu0 0.0
    %2485 = vmatprep.subr.mxu0 0.0
    %2486 = vmatpush1.xpose.msra.mxu0 0.0
    %2487 = vmatprep.subr.mxu0 0.0
    %2488 = vmatpush1.xpose.msra.mxu0 0.0
    %2489 = vmatprep.subr.mxu0 0.0
    %2490 = vmatpush1.xpose.msra.mxu0 0.0
    %2491 = vmatprep.subr.mxu0 0.0
    %2492 = vmatpush1.xpose.msra.mxu0 0.0
    %2493 = vmatprep.subr.mxu0 0.0
    %2494 = vmatpush1.xpose.msra.mxu0 0.0
    %2495 = vmatprep.subr.mxu0 0.0
    %2496 = vmatpush1.xpose.msra.mxu0 0.0
    %2497 = vmatprep.subr.mxu0 0.0
    %2498 = vmatpush1.xpose.msra.mxu0 0.0
    %2499 = vmatprep.subr.mxu0 0.0
    %2500 = vmatpush1.xpose.msra.mxu0 0.0
    %2501 = vmatprep.subr.mxu0 0.0
    %2502 = vmatpush1.xpose.msra.mxu0 0.0
    %2503 = vmatprep.subr.mxu0 0.0
    %2504 = vmatpush1.xpose.msra.mxu0 0.0
    %2505 = vmatprep.subr.mxu0 0.0
    %2506 = vmatpush1.xpose.msra.mxu0 0.0
    %2507 = vmatprep.subr.mxu0 0.0
    %2508 = vmatpush1.xpose.msra.mxu0 0.0
    %2509 = vmatprep.subr.mxu0 0.0
    %2510 = vmatpush1.xpose.msra.mxu0 0.0
    %2511 = vmatprep.subr.mxu0 0.0
    %2512 = vmatpush1.xpose.msra.mxu0 0.0
    %2513 = vmatprep.subr.mxu0 0.0
    %2514 = vmatpush1.xpose.msra.mxu0 0.0
    %2515 = vmatprep.subr.mxu0 0.0
    %2516 = vmatpush1.xpose.msra.mxu0 0.0
    %2517 = vmatprep.subr.mxu0 0.0
    %2518 = vmatpush1.xpose.msra.mxu0 0.0
    %2519 = vmatprep.subr.mxu0 0.0
    %2520 = vmatpush1.xpose.msra.mxu0 0.0
    %2521 = vmatprep.subr.mxu0 0.0
    %2522 = vmatpush1.xpose.msra.mxu0 0.0
    %2523 = vmatprep.subr.mxu0 0.0
    %2524 = vmatpush1.xpose.msra.mxu0 0.0
    %2525 = vmatprep.subr.mxu0 0.0
    %2526 = vmatpush1.xpose.msra.mxu0 0.0
    %2527 = vmatprep.subr.mxu0 0.0
    %2528 = vmatpush1.xpose.msra.mxu0 0.0
    %2529 = vmatprep.subr.mxu0 0.0
    %2530 = vmatpush1.xpose.msra.mxu0 0.0
    %2531 = vmatprep.subr.mxu0 0.0
    %2532 = vmatpush1.xpose.msra.mxu0 0.0
    %2533 = vmatprep.subr.mxu0 0.0
    %2534 = vmatpush1.xpose.msra.mxu0 0.0
    %2535 = vmatprep.subr.mxu0 0.0
    %2536 = vmatpush1.xpose.msra.mxu0 0.0
    %2537 = vmatprep.subr.mxu0 0.0
    %2538 = vmatpush1.xpose.msra.mxu0 0.0
    %2539 = vmatprep.subr.mxu0 0.0
    %2540 = vmatpush1.xpose.msra.mxu0 0.0
    %2541 = vmatprep.subr.mxu0 0.0
    %2542 = vmatpush1.xpose.msra.mxu0 0.0
    %2543 = vmatprep.mubr.f32.mxu0 0.0
    %2544 = vmatmul.mubr.f32.gmra.mrb[0].mxu0 %v2475
    %v2545 = vpop.f32.mrb[0].mxu0
    %v2546 = vadd.f32 0.0, %v2545
    %v2547 = vpop.f32.mrb[0].mxu0
    %2548 = vdwg.mxu0
    %2549 = vrot.lane.b32.xlu0 %v2238, 96
    %v2550 = vpop.permute.xlu0 %2549
    %v2551 = vsel %vm436, %v2238, 0
    %v2553 = vsel %vm436, %v2550, 0
    %2555 = vmatprep.subr.mxu0 0.0
    %2556 = vmatpush1.xpose.msra.mxu0 %v2553
    %2557 = vmatprep.subr.mxu0 0.0
    %2558 = vmatpush1.xpose.msra.mxu0 0.0
    %2559 = vmatprep.subr.mxu0 0.0
    %2560 = vmatpush1.xpose.msra.mxu0 0.0
    %2561 = vmatprep.subr.mxu0 0.0
    %2562 = vmatpush1.xpose.msra.mxu0 0.0
    %2563 = vmatprep.subr.mxu0 0.0
    %2564 = vmatpush1.xpose.msra.mxu0 0.0
    %2565 = vmatprep.subr.mxu0 0.0
    %2566 = vmatpush1.xpose.msra.mxu0 0.0
    %2567 = vmatprep.subr.mxu0 0.0
    %2568 = vmatpush1.xpose.msra.mxu0 0.0
    %2569 = vmatprep.subr.mxu0 0.0
    %2570 = vmatpush1.xpose.msra.mxu0 0.0
    %2571 = vmatprep.subr.mxu0 0.0
    %2572 = vmatpush1.xpose.msra.mxu0 0.0
    %2573 = vmatprep.subr.mxu0 0.0
    %2574 = vmatpush1.xpose.msra.mxu0 0.0
    %2575 = vmatprep.subr.mxu0 0.0
    %2576 = vmatpush1.xpose.msra.mxu0 0.0
    %2577 = vmatprep.subr.mxu0 0.0
    %2578 = vmatpush1.xpose.msra.mxu0 0.0
    %2579 = vmatprep.subr.mxu0 0.0
    %2580 = vmatpush1.xpose.msra.mxu0 0.0
    %2581 = vmatprep.subr.mxu0 0.0
    %2582 = vmatpush1.xpose.msra.mxu0 0.0
    %2583 = vmatprep.subr.mxu0 0.0
    %2584 = vmatpush1.xpose.msra.mxu0 0.0
    %2585 = vmatprep.subr.mxu0 0.0
    %2586 = vmatpush1.xpose.msra.mxu0 0.0
    %2587 = vmatprep.subr.mxu0 0.0
    %2588 = vmatpush1.xpose.msra.mxu0 0.0
    %2589 = vmatprep.subr.mxu0 0.0
    %2590 = vmatpush1.xpose.msra.mxu0 0.0
    %2591 = vmatprep.subr.mxu0 0.0
    %2592 = vmatpush1.xpose.msra.mxu0 0.0
    %2593 = vmatprep.subr.mxu0 0.0
    %2594 = vmatpush1.xpose.msra.mxu0 0.0
    %2595 = vmatprep.subr.mxu0 0.0
    %2596 = vmatpush1.xpose.msra.mxu0 0.0
    %2597 = vmatprep.subr.mxu0 0.0
    %2598 = vmatpush1.xpose.msra.mxu0 0.0
    %2599 = vmatprep.subr.mxu0 0.0
    %2600 = vmatpush1.xpose.msra.mxu0 0.0
    %2601 = vmatprep.subr.mxu0 0.0
    %2602 = vmatpush1.xpose.msra.mxu0 0.0
    %2603 = vmatprep.subr.mxu0 0.0
    %2604 = vmatpush1.xpose.msra.mxu0 0.0
    %2605 = vmatprep.subr.mxu0 0.0
    %2606 = vmatpush1.xpose.msra.mxu0 0.0
    %2607 = vmatprep.subr.mxu0 0.0
    %2608 = vmatpush1.xpose.msra.mxu0 0.0
    %2609 = vmatprep.subr.mxu0 0.0
    %2610 = vmatpush1.xpose.msra.mxu0 0.0
    %2611 = vmatprep.subr.mxu0 0.0
    %2612 = vmatpush1.xpose.msra.mxu0 0.0
    %2613 = vmatprep.subr.mxu0 0.0
    %2614 = vmatpush1.xpose.msra.mxu0 0.0
    %2615 = vmatprep.subr.mxu0 0.0
    %2616 = vmatpush1.xpose.msra.mxu0 0.0
    %2617 = vmatprep.subr.mxu0 0.0
    %2618 = vmatpush1.xpose.msra.mxu0 0.0
    %2619 = vmatprep.mubr.f32.mxu0 0.0
    %2620 = vmatmul.mubr.f32.gmra.mrb[0].mxu0 %v2551
    %v2621 = vpop.f32.mrb[0].mxu0
    %v2622 = vadd.f32 0.0, %v2621
    %v2623 = vpop.f32.mrb[0].mxu0
    %2624 = vdwg.mxu0
    %2625 = vrot.lane.b32.xlu0 %v2240, 96
    %v2626 = vpop.permute.xlu0 %2625
    %v2627 = vsel %vm436, %v2240, 0
    %v2629 = vsel %vm436, %v2626, 0
    %2631 = vmatprep.subr.mxu0 0.0
    %2632 = vmatpush1.xpose.msra.mxu0 %v2629
    %2633 = vmatprep.subr.mxu0 0.0
    %2634 = vmatpush1.xpose.msra.mxu0 0.0
    %2635 = vmatprep.subr.mxu0 0.0
    %2636 = vmatpush1.xpose.msra.mxu0 0.0
    %2637 = vmatprep.subr.mxu0 0.0
    %2638 = vmatpush1.xpose.msra.mxu0 0.0
    %2639 = vmatprep.subr.mxu0 0.0
    %2640 = vmatpush1.xpose.msra.mxu0 0.0
    %2641 = vmatprep.subr.mxu0 0.0
    %2642 = vmatpush1.xpose.msra.mxu0 0.0
    %2643 = vmatprep.subr.mxu0 0.0
    %2644 = vmatpush1.xpose.msra.mxu0 0.0
    %2645 = vmatprep.subr.mxu0 0.0
    %2646 = vmatpush1.xpose.msra.mxu0 0.0
    %2647 = vmatprep.subr.mxu0 0.0
    %2648 = vmatpush1.xpose.msra.mxu0 0.0
    %2649 = vmatprep.subr.mxu0 0.0
    %2650 = vmatpush1.xpose.msra.mxu0 0.0
    %2651 = vmatprep.subr.mxu0 0.0
    %2652 = vmatpush1.xpose.msra.mxu0 0.0
    %2653 = vmatprep.subr.mxu0 0.0
    %2654 = vmatpush1.xpose.msra.mxu0 0.0
    %2655 = vmatprep.subr.mxu0 0.0
    %2656 = vmatpush1.xpose.msra.mxu0 0.0
    %2657 = vmatprep.subr.mxu0 0.0
    %2658 = vmatpush1.xpose.msra.mxu0 0.0
    %2659 = vmatprep.subr.mxu0 0.0
    %2660 = vmatpush1.xpose.msra.mxu0 0.0
    %2661 = vmatprep.subr.mxu0 0.0
    %2662 = vmatpush1.xpose.msra.mxu0 0.0
    %2663 = vmatprep.subr.mxu0 0.0
    %2664 = vmatpush1.xpose.msra.mxu0 0.0
    %2665 = vmatprep.subr.mxu0 0.0
    %2666 = vmatpush1.xpose.msra.mxu0 0.0
    %2667 = vmatprep.subr.mxu0 0.0
    %2668 = vmatpush1.xpose.msra.mxu0 0.0
    %2669 = vmatprep.subr.mxu0 0.0
    %2670 = vmatpush1.xpose.msra.mxu0 0.0
    %2671 = vmatprep.subr.mxu0 0.0
    %2672 = vmatpush1.xpose.msra.mxu0 0.0
    %2673 = vmatprep.subr.mxu0 0.0
    %2674 = vmatpush1.xpose.msra.mxu0 0.0
    %2675 = vmatprep.subr.mxu0 0.0
    %2676 = vmatpush1.xpose.msra.mxu0 0.0
    %2677 = vmatprep.subr.mxu0 0.0
    %2678 = vmatpush1.xpose.msra.mxu0 0.0
    %2679 = vmatprep.subr.mxu0 0.0
    %2680 = vmatpush1.xpose.msra.mxu0 0.0
    %2681 = vmatprep.subr.mxu0 0.0
    %2682 = vmatpush1.xpose.msra.mxu0 0.0
    %2683 = vmatprep.subr.mxu0 0.0
    %2684 = vmatpush1.xpose.msra.mxu0 0.0
    %2685 = vmatprep.subr.mxu0 0.0
    %2686 = vmatpush1.xpose.msra.mxu0 0.0
    %2687 = vmatprep.subr.mxu0 0.0
    %2688 = vmatpush1.xpose.msra.mxu0 0.0
    %2689 = vmatprep.subr.mxu0 0.0
    %2690 = vmatpush1.xpose.msra.mxu0 0.0
    %2691 = vmatprep.subr.mxu0 0.0
    %2692 = vmatpush1.xpose.msra.mxu0 0.0
    %2693 = vmatprep.subr.mxu0 0.0
    %2694 = vmatpush1.xpose.msra.mxu0 0.0
    %2695 = vmatprep.mubr.f32.mxu0 0.0
    %2696 = vmatmul.mubr.f32.gmra.mrb[0].mxu0 %v2627
    %v2697 = vpop.f32.mrb[0].mxu0
    %v2698 = vadd.f32 0.0, %v2697
    %v2699 = vpop.f32.mrb[0].mxu0
    %2700 = vdwg.mxu0
    %2701 = vrot.lane.b32.xlu0 %v2242, 96
    %v2702 = vpop.permute.xlu0 %2701
    %v2703 = vsel %vm436, %v2242, 0
    %v2705 = vsel %vm436, %v2702, 0
    %2707 = vmatprep.subr.mxu0 0.0
    %2708 = vmatpush1.xpose.msra.mxu0 %v2705
    %2709 = vmatprep.subr.mxu0 0.0
    %2710 = vmatpush1.xpose.msra.mxu0 0.0
    %2711 = vmatprep.subr.mxu0 0.0
    %2712 = vmatpush1.xpose.msra.mxu0 0.0
    %2713 = vmatprep.subr.mxu0 0.0
    %2714 = vmatpush1.xpose.msra.mxu0 0.0
    %2715 = vmatprep.subr.mxu0 0.0
    %2716 = vmatpush1.xpose.msra.mxu0 0.0
    %2717 = vmatprep.subr.mxu0 0.0
    %2718 = vmatpush1.xpose.msra.mxu0 0.0
    %2719 = vmatprep.subr.mxu0 0.0
    %2720 = vmatpush1.xpose.msra.mxu0 0.0
    %2721 = vmatprep.subr.mxu0 0.0
    %2722 = vmatpush1.xpose.msra.mxu0 0.0
    %2723 = vmatprep.subr.mxu0 0.0
    %2724 = vmatpush1.xpose.msra.mxu0 0.0
    %2725 = vmatprep.subr.mxu0 0.0
    %2726 = vmatpush1.xpose.msra.mxu0 0.0
    %2727 = vmatprep.subr.mxu0 0.0
    %2728 = vmatpush1.xpose.msra.mxu0 0.0
    %2729 = vmatprep.subr.mxu0 0.0
    %2730 = vmatpush1.xpose.msra.mxu0 0.0
    %2731 = vmatprep.subr.mxu0 0.0
    %2732 = vmatpush1.xpose.msra.mxu0 0.0
    %2733 = vmatprep.subr.mxu0 0.0
    %2734 = vmatpush1.xpose.msra.mxu0 0.0
    %2735 = vmatprep.subr.mxu0 0.0
    %2736 = vmatpush1.xpose.msra.mxu0 0.0
    %2737 = vmatprep.subr.mxu0 0.0
    %2738 = vmatpush1.xpose.msra.mxu0 0.0
    %2739 = vmatprep.subr.mxu0 0.0
    %2740 = vmatpush1.xpose.msra.mxu0 0.0
    %2741 = vmatprep.subr.mxu0 0.0
    %2742 = vmatpush1.xpose.msra.mxu0 0.0
    %2743 = vmatprep.subr.mxu0 0.0
    %2744 = vmatpush1.xpose.msra.mxu0 0.0
    %2745 = vmatprep.subr.mxu0 0.0
    %2746 = vmatpush1.xpose.msra.mxu0 0.0
    %2747 = vmatprep.subr.mxu0 0.0
    %2748 = vmatpush1.xpose.msra.mxu0 0.0
    %2749 = vmatprep.subr.mxu0 0.0
    %2750 = vmatpush1.xpose.msra.mxu0 0.0
    %2751 = vmatprep.subr.mxu0 0.0
    %2752 = vmatpush1.xpose.msra.mxu0 0.0
    %2753 = vmatprep.subr.mxu0 0.0
    %2754 = vmatpush1.xpose.msra.mxu0 0.0
    %2755 = vmatprep.subr.mxu0 0.0
    %2756 = vmatpush1.xpose.msra.mxu0 0.0
    %2757 = vmatprep.subr.mxu0 0.0
    %2758 = vmatpush1.xpose.msra.mxu0 0.0
    %2759 = vmatprep.subr.mxu0 0.0
    %2760 = vmatpush1.xpose.msra.mxu0 0.0
    %2761 = vmatprep.subr.mxu0 0.0
    %2762 = vmatpush1.xpose.msra.mxu0 0.0
    %2763 = vmatprep.subr.mxu0 0.0
    %2764 = vmatpush1.xpose.msra.mxu0 0.0
    %2765 = vmatprep.subr.mxu0 0.0
    %2766 = vmatpush1.xpose.msra.mxu0 0.0
    %2767 = vmatprep.subr.mxu0 0.0
    %2768 = vmatpush1.xpose.msra.mxu0 0.0
    %2769 = vmatprep.subr.mxu0 0.0
    %2770 = vmatpush1.xpose.msra.mxu0 0.0
    %2771 = vmatprep.mubr.f32.mxu0 0.0
    %2772 = vmatmul.mubr.f32.gmra.mrb[0].mxu0 %v2703
    %v2773 = vpop.f32.mrb[0].mxu0
    %v2774 = vadd.f32 0.0, %v2773
    %v2775 = vpop.f32.mrb[0].mxu0
    %2776 = vdwg.mxu0
    %2777 = vrot.lane.b32.xlu0 %v2244, 96
    %v2778 = vpop.permute.xlu0 %2777
    %v2779 = vsel %vm436, %v2244, 0
    %v2781 = vsel %vm436, %v2778, 0
    %2783 = vmatprep.subr.mxu0 0.0
    %2784 = vmatpush1.xpose.msra.mxu0 %v2781
    %2785 = vmatprep.subr.mxu0 0.0
    %2786 = vmatpush1.xpose.msra.mxu0 0.0
    %2787 = vmatprep.subr.mxu0 0.0
    %2788 = vmatpush1.xpose.msra.mxu0 0.0
    %2789 = vmatprep.subr.mxu0 0.0
    %2790 = vmatpush1.xpose.msra.mxu0 0.0
    %2791 = vmatprep.subr.mxu0 0.0
    %2792 = vmatpush1.xpose.msra.mxu0 0.0
    %2793 = vmatprep.subr.mxu0 0.0
    %2794 = vmatpush1.xpose.msra.mxu0 0.0
    %2795 = vmatprep.subr.mxu0 0.0
    %2796 = vmatpush1.xpose.msra.mxu0 0.0
    %2797 = vmatprep.subr.mxu0 0.0
    %2798 = vmatpush1.xpose.msra.mxu0 0.0
    %2799 = vmatprep.subr.mxu0 0.0
    %2800 = vmatpush1.xpose.msra.mxu0 0.0
    %2801 = vmatprep.subr.mxu0 0.0
    %2802 = vmatpush1.xpose.msra.mxu0 0.0
    %2803 = vmatprep.subr.mxu0 0.0
    %2804 = vmatpush1.xpose.msra.mxu0 0.0
    %2805 = vmatprep.subr.mxu0 0.0
    %2806 = vmatpush1.xpose.msra.mxu0 0.0
    %2807 = vmatprep.subr.mxu0 0.0
    %2808 = vmatpush1.xpose.msra.mxu0 0.0
    %2809 = vmatprep.subr.mxu0 0.0
    %2810 = vmatpush1.xpose.msra.mxu0 0.0
    %2811 = vmatprep.subr.mxu0 0.0
    %2812 = vmatpush1.xpose.msra.mxu0 0.0
    %2813 = vmatprep.subr.mxu0 0.0
    %2814 = vmatpush1.xpose.msra.mxu0 0.0
    %2815 = vmatprep.subr.mxu0 0.0
    %2816 = vmatpush1.xpose.msra.mxu0 0.0
    %2817 = vmatprep.subr.mxu0 0.0
    %2818 = vmatpush1.xpose.msra.mxu0 0.0
    %2819 = vmatprep.subr.mxu0 0.0
    %2820 = vmatpush1.xpose.msra.mxu0 0.0
    %2821 = vmatprep.subr.mxu0 0.0
    %2822 = vmatpush1.xpose.msra.mxu0 0.0
    %2823 = vmatprep.subr.mxu0 0.0
    %2824 = vmatpush1.xpose.msra.mxu0 0.0
    %2825 = vmatprep.subr.mxu0 0.0
    %2826 = vmatpush1.xpose.msra.mxu0 0.0
    %2827 = vmatprep.subr.mxu0 0.0
    %2828 = vmatpush1.xpose.msra.mxu0 0.0
    %2829 = vmatprep.subr.mxu0 0.0
    %2830 = vmatpush1.xpose.msra.mxu0 0.0
    %2831 = vmatprep.subr.mxu0 0.0
    %2832 = vmatpush1.xpose.msra.mxu0 0.0
    %2833 = vmatprep.subr.mxu0 0.0
    %2834 = vmatpush1.xpose.msra.mxu0 0.0
    %2835 = vmatprep.subr.mxu0 0.0
    %2836 = vmatpush1.xpose.msra.mxu0 0.0
    %2837 = vmatprep.subr.mxu0 0.0
    %2838 = vmatpush1.xpose.msra.mxu0 0.0
    %2839 = vmatprep.subr.mxu0 0.0
    %2840 = vmatpush1.xpose.msra.mxu0 0.0
    %2841 = vmatprep.subr.mxu0 0.0
    %2842 = vmatpush1.xpose.msra.mxu0 0.0
    %2843 = vmatprep.subr.mxu0 0.0
    %2844 = vmatpush1.xpose.msra.mxu0 0.0
    %2845 = vmatprep.subr.mxu0 0.0
    %2846 = vmatpush1.xpose.msra.mxu0 0.0
    %2847 = vmatprep.mubr.f32.mxu0 0.0
    %2848 = vmatmul.mubr.f32.gmra.mrb[0].mxu0 %v2779
    %v2849 = vpop.f32.mrb[0].mxu0
    %v2850 = vadd.f32 0.0, %v2849
    %v2851 = vpop.f32.mrb[0].mxu0
    %2852 = vdwg.mxu0
    %v2853 = vsel %vm436, %v2318, -inf
    %2854 = vmax.xlane.f32.xlu0 %v2853
    %v2855 = vpop.xlane.xlu0 %2854
    %v2856 = vsel %vm436, %v2394, -inf
    %2857 = vmax.xlane.f32.xlu0 %v2856
    %v2858 = vpop.xlane.xlu0 %2857
    %v2859 = vsel %vm436, %v2470, -inf
    %2860 = vmax.xlane.f32.xlu0 %v2859
    %v2861 = vpop.xlane.xlu0 %2860
    %v2862 = vsel %vm436, %v2546, -inf
    %2863 = vmax.xlane.f32.xlu0 %v2862
    %v2864 = vpop.xlane.xlu0 %2863
    %v2865 = vsel %vm436, %v2622, -inf
    %2866 = vmax.xlane.f32.xlu0 %v2865
    %v2867 = vpop.xlane.xlu0 %2866
    %v2868 = vsel %vm436, %v2698, -inf
    %2869 = vmax.xlane.f32.xlu0 %v2868
    %v2870 = vpop.xlane.xlu0 %2869
    %v2871 = vsel %vm436, %v2774, -inf
    %2872 = vmax.xlane.f32.xlu0 %v2871
    %v2873 = vpop.xlane.xlu0 %2872
    %v2874 = vsel %vm436, %v2850, -inf
    %2875 = vmax.xlane.f32.xlu0 %v2874
    %v2876 = vpop.xlane.xlu0 %2875
    %v2877 = vsub.f32 %v2318, %v2855
    %v2878 = vsub.f32 %v2394, %v2858
    %v2879 = vsub.f32 %v2470, %v2861
    %v2880 = vsub.f32 %v2546, %v2864
    %v2881 = vsub.f32 %v2622, %v2867
    %v2882 = vsub.f32 %v2698, %v2870
    %v2883 = vsub.f32 %v2774, %v2873
    %v2884 = vsub.f32 %v2850, %v2876
    %v2885 = vmul.f32 %v2877, 1.442695
    %v2886 = vpow.pop %v2885
    %v2887 = vmul.f32 %v2878, 1.442695
    %v2888 = vpow.pop %v2887
    %v2889 = vmul.f32 %v2879, 1.442695
    %v2890 = vpow.pop %v2889
    %v2891 = vmul.f32 %v2880, 1.442695
    %v2892 = vpow.pop %v2891
    %v2893 = vmul.f32 %v2881, 1.442695
    %v2894 = vpow.pop %v2893
    %v2895 = vmul.f32 %v2882, 1.442695
    %v2896 = vpow.pop %v2895
    %v2897 = vmul.f32 %v2883, 1.442695
    %v2898 = vpow.pop %v2897
    %v2899 = vmul.f32 %v2884, 1.442695
    %v2900 = vpow.pop %v2899
    %v2901 = vsel %vm436, %v2886, 0.0
    %2902 = vadd.xlane.f32.xlu0 %v2901
    %v2903 = vpop.xlane.xlu0 %2902
    %v2904 = vsel %vm436, %v2888, 0.0
    %2905 = vadd.xlane.f32.xlu0 %v2904
    %v2906 = vpop.xlane.xlu0 %2905
    %v2907 = vsel %vm436, %v2890, 0.0
    %2908 = vadd.xlane.f32.xlu0 %v2907
    %v2909 = vpop.xlane.xlu0 %2908
    %v2910 = vsel %vm436, %v2892, 0.0
    %2911 = vadd.xlane.f32.xlu0 %v2910
    %v2912 = vpop.xlane.xlu0 %2911
    %v2913 = vsel %vm436, %v2894, 0.0
    %2914 = vadd.xlane.f32.xlu0 %v2913
    %v2915 = vpop.xlane.xlu0 %2914
    %v2916 = vsel %vm436, %v2896, 0.0
    %2917 = vadd.xlane.f32.xlu0 %v2916
    %v2918 = vpop.xlane.xlu0 %2917
    %v2919 = vsel %vm436, %v2898, 0.0
    %2920 = vadd.xlane.f32.xlu0 %v2919
    %v2921 = vpop.xlane.xlu0 %2920
    %v2922 = vsel %vm436, %v2900, 0.0
    %2923 = vadd.xlane.f32.xlu0 %v2922
    %v2924 = vpop.xlane.xlu0 %2923
    %v2925 = vrcp.pop %v2903
    %v2926 = vrcp.pop %v2906
    %v2927 = vrcp.pop %v2909
    %v2928 = vrcp.pop %v2912
    %v2929 = vrcp.pop %v2915
    %v2930 = vrcp.pop %v2918
    %v2931 = vrcp.pop %v2921
    %v2932 = vrcp.pop %v2924
    %v2933 = vmul.f32 %v2886, %v2925
    %v2934 = vmul.f32 %v2888, %v2926
    %v2935 = vmul.f32 %v2890, %v2927
    %v2936 = vmul.f32 %v2892, %v2928
    %v2937 = vmul.f32 %v2894, %v2929
    %v2938 = vmul.f32 %v2896, %v2930
    %v2939 = vmul.f32 %v2898, %v2931
    %v2940 = vmul.f32 %v2900, %v2932
    %2941 = vrot.lane.b32.xlu0 %v2223, 64
    %v2942 = vpop.permute.xlu0 %2941
    %v2945 = vsel %vm436, %v2933, 0
    %2947 = vmatprep.subr.mxu0 0.0
    %2948 = vmatpush1.msra.mxu0 %v2942
    %2949 = vmatprep.subr.mxu0 0.0
    %2950 = vmatpush1.msra.mxu0 0.0
    %2951 = vmatprep.subr.mxu0 0.0
    %2952 = vmatpush1.msra.mxu0 0.0
    %2953 = vmatprep.subr.mxu0 0.0
    %2954 = vmatpush1.msra.mxu0 0.0
    %2955 = vmatprep.subr.mxu0 0.0
    %2956 = vmatpush1.msra.mxu0 0.0
    %2957 = vmatprep.subr.mxu0 0.0
    %2958 = vmatpush1.msra.mxu0 0.0
    %2959 = vmatprep.subr.mxu0 0.0
    %2960 = vmatpush1.msra.mxu0 0.0
    %2961 = vmatprep.subr.mxu0 0.0
    %2962 = vmatpush1.msra.mxu0 0.0
    %2963 = vmatprep.subr.mxu0 0.0
    %2964 = vmatpush1.msra.mxu0 0.0
    %2965 = vmatprep.subr.mxu0 0.0
    %2966 = vmatpush1.msra.mxu0 0.0
    %2967 = vmatprep.subr.mxu0 0.0
    %2968 = vmatpush1.msra.mxu0 0.0
    %2969 = vmatprep.subr.mxu0 0.0
    %2970 = vmatpush1.msra.mxu0 0.0
    %2971 = vmatprep.subr.mxu0 0.0
    %2972 = vmatpush1.msra.mxu0 0.0
    %2973 = vmatprep.subr.mxu0 0.0
    %2974 = vmatpush1.msra.mxu0 0.0
    %2975 = vmatprep.subr.mxu0 0.0
    %2976 = vmatpush1.msra.mxu0 0.0
    %2977 = vmatprep.subr.mxu0 0.0
    %2978 = vmatpush1.msra.mxu0 0.0
    %2979 = vmatprep.subr.mxu0 0.0
    %2980 = vmatpush1.msra.mxu0 0.0
    %2981 = vmatprep.subr.mxu0 0.0
    %2982 = vmatpush1.msra.mxu0 0.0
    %2983 = vmatprep.subr.mxu0 0.0
    %2984 = vmatpush1.msra.mxu0 0.0
    %2985 = vmatprep.subr.mxu0 0.0
    %2986 = vmatpush1.msra.mxu0 0.0
    %2987 = vmatprep.subr.mxu0 0.0
    %2988 = vmatpush1.msra.mxu0 0.0
    %2989 = vmatprep.subr.mxu0 0.0
    %2990 = vmatpush1.msra.mxu0 0.0
    %2991 = vmatprep.subr.mxu0 0.0
    %2992 = vmatpush1.msra.mxu0 0.0
    %2993 = vmatprep.subr.mxu0 0.0
    %2994 = vmatpush1.msra.mxu0 0.0
    %2995 = vmatprep.subr.mxu0 0.0
    %2996 = vmatpush1.msra.mxu0 0.0
    %2997 = vmatprep.subr.mxu0 0.0
    %2998 = vmatpush1.msra.mxu0 0.0
    %2999 = vmatprep.subr.mxu0 0.0
    %3000 = vmatpush1.msra.mxu0 0.0
    %3001 = vmatprep.subr.mxu0 0.0
    %3002 = vmatpush1.msra.mxu0 0.0
    %3003 = vmatprep.subr.mxu0 0.0
    %3004 = vmatpush1.msra.mxu0 0.0
    %3005 = vmatprep.subr.mxu0 0.0
    %3006 = vmatpush1.msra.mxu0 0.0
    %3007 = vmatprep.subr.mxu0 0.0
    %3008 = vmatpush1.msra.mxu0 0.0
    %3009 = vmatprep.subr.mxu0 0.0
    %3010 = vmatpush1.msra.mxu0 0.0
    %3011 = vmatprep.mubr.f32.mxu0 0.0
    %3012 = vmatmul.mubr.f32.gmra.mrb[0].mxu0 %v2945
    %v3013 = vpop.f32.mrb[0].mxu0
    %v3014 = vadd.f32 0.0, %v3013
    %v3015 = vpop.f32.mrb[0].mxu0
    %3016 = vdwg.mxu0
    %3017 = vrot.lane.b32.xlu0 %v2228, 64
    %v3018 = vpop.permute.xlu0 %3017
    %v3021 = vsel %vm436, %v2934, 0
    %3023 = vmatprep.subr.mxu0 0.0
    %3024 = vmatpush1.msra.mxu0 %v3018
    %3025 = vmatprep.subr.mxu0 0.0
    %3026 = vmatpush1.msra.mxu0 0.0
    %3027 = vmatprep.subr.mxu0 0.0
    %3028 = vmatpush1.msra.mxu0 0.0
    %3029 = vmatprep.subr.mxu0 0.0
    %3030 = vmatpush1.msra.mxu0 0.0
    %3031 = vmatprep.subr.mxu0 0.0
    %3032 = vmatpush1.msra.mxu0 0.0
    %3033 = vmatprep.subr.mxu0 0.0
    %3034 = vmatpush1.msra.mxu0 0.0
    %3035 = vmatprep.subr.mxu0 0.0
    %3036 = vmatpush1.msra.mxu0 0.0
    %3037 = vmatprep.subr.mxu0 0.0
    %3038 = vmatpush1.msra.mxu0 0.0
    %3039 = vmatprep.subr.mxu0 0.0
    %3040 = vmatpush1.msra.mxu0 0.0
    %3041 = vmatprep.subr.mxu0 0.0
    %3042 = vmatpush1.msra.mxu0 0.0
    %3043 = vmatprep.subr.mxu0 0.0
    %3044 = vmatpush1.msra.mxu0 0.0
    %3045 = vmatprep.subr.mxu0 0.0
    %3046 = vmatpush1.msra.mxu0 0.0
    %3047 = vmatprep.subr.mxu0 0.0
    %3048 = vmatpush1.msra.mxu0 0.0
    %3049 = vmatprep.subr.mxu0 0.0
    %3050 = vmatpush1.msra.mxu0 0.0
    %3051 = vmatprep.subr.mxu0 0.0
    %3052 = vmatpush1.msra.mxu0 0.0
    %3053 = vmatprep.subr.mxu0 0.0
    %3054 = vmatpush1.msra.mxu0 0.0
    %3055 = vmatprep.subr.mxu0 0.0
    %3056 = vmatpush1.msra.mxu0 0.0
    %3057 = vmatprep.subr.mxu0 0.0
    %3058 = vmatpush1.msra.mxu0 0.0
    %3059 = vmatprep.subr.mxu0 0.0
    %3060 = vmatpush1.msra.mxu0 0.0
    %3061 = vmatprep.subr.mxu0 0.0
    %3062 = vmatpush1.msra.mxu0 0.0
    %3063 = vmatprep.subr.mxu0 0.0
    %3064 = vmatpush1.msra.mxu0 0.0
    %3065 = vmatprep.subr.mxu0 0.0
    %3066 = vmatpush1.msra.mxu0 0.0
    %3067 = vmatprep.subr.mxu0 0.0
    %3068 = vmatpush1.msra.mxu0 0.0
    %3069 = vmatprep.subr.mxu0 0.0
    %3070 = vmatpush1.msra.mxu0 0.0
    %3071 = vmatprep.subr.mxu0 0.0
    %3072 = vmatpush1.msra.mxu0 0.0
    %3073 = vmatprep.subr.mxu0 0.0
    %3074 = vmatpush1.msra.mxu0 0.0
    %3075 = vmatprep.subr.mxu0 0.0
    %3076 = vmatpush1.msra.mxu0 0.0
    %3077 = vmatprep.subr.mxu0 0.0
    %3078 = vmatpush1.msra.mxu0 0.0
    %3079 = vmatprep.subr.mxu0 0.0
    %3080 = vmatpush1.msra.mxu0 0.0
    %3081 = vmatprep.subr.mxu0 0.0
    %3082 = vmatpush1.msra.mxu0 0.0
    %3083 = vmatprep.subr.mxu0 0.0
    %3084 = vmatpush1.msra.mxu0 0.0
    %3085 = vmatprep.subr.mxu0 0.0
    %3086 = vmatpush1.msra.mxu0 0.0
    %3087 = vmatprep.mubr.f32.mxu0 0.0
    %3088 = vmatmul.mubr.f32.gmra.mrb[0].mxu0 %v3021
    %v3089 = vpop.f32.mrb[0].mxu0
    %v3090 = vadd.f32 0.0, %v3089
    %v3091 = vpop.f32.mrb[0].mxu0
    %3092 = vdwg.mxu0
    %3093 = vrot.lane.b32.xlu0 %v2234, 64
    %v3094 = vpop.permute.xlu0 %3093
    %v3097 = vsel %vm436, %v2935, 0
    %3099 = vmatprep.subr.mxu0 0.0
    %3100 = vmatpush1.msra.mxu0 %v3094
    %3101 = vmatprep.subr.mxu0 0.0
    %3102 = vmatpush1.msra.mxu0 0.0
    %3103 = vmatprep.subr.mxu0 0.0
    %3104 = vmatpush1.msra.mxu0 0.0
    %3105 = vmatprep.subr.mxu0 0.0
    %3106 = vmatpush1.msra.mxu0 0.0
    %3107 = vmatprep.subr.mxu0 0.0
    %3108 = vmatpush1.msra.mxu0 0.0
    %3109 = vmatprep.subr.mxu0 0.0
    %3110 = vmatpush1.msra.mxu0 0.0
    %3111 = vmatprep.subr.mxu0 0.0
    %3112 = vmatpush1.msra.mxu0 0.0
    %3113 = vmatprep.subr.mxu0 0.0
    %3114 = vmatpush1.msra.mxu0 0.0
    %3115 = vmatprep.subr.mxu0 0.0
    %3116 = vmatpush1.msra.mxu0 0.0
    %3117 = vmatprep.subr.mxu0 0.0
    %3118 = vmatpush1.msra.mxu0 0.0
    %3119 = vmatprep.subr.mxu0 0.0
    %3120 = vmatpush1.msra.mxu0 0.0
    %3121 = vmatprep.subr.mxu0 0.0
    %3122 = vmatpush1.msra.mxu0 0.0
    %3123 = vmatprep.subr.mxu0 0.0
    %3124 = vmatpush1.msra.mxu0 0.0
    %3125 = vmatprep.subr.mxu0 0.0
    %3126 = vmatpush1.msra.mxu0 0.0
    %3127 = vmatprep.subr.mxu0 0.0
    %3128 = vmatpush1.msra.mxu0 0.0
    %3129 = vmatprep.subr.mxu0 0.0
    %3130 = vmatpush1.msra.mxu0 0.0
    %3131 = vmatprep.subr.mxu0 0.0
    %3132 = vmatpush1.msra.mxu0 0.0
    %3133 = vmatprep.subr.mxu0 0.0
    %3134 = vmatpush1.msra.mxu0 0.0
    %3135 = vmatprep.subr.mxu0 0.0
    %3136 = vmatpush1.msra.mxu0 0.0
    %3137 = vmatprep.subr.mxu0 0.0
    %3138 = vmatpush1.msra.mxu0 0.0
    %3139 = vmatprep.subr.mxu0 0.0
    %3140 = vmatpush1.msra.mxu0 0.0
    %3141 = vmatprep.subr.mxu0 0.0
    %3142 = vmatpush1.msra.mxu0 0.0
    %3143 = vmatprep.subr.mxu0 0.0
    %3144 = vmatpush1.msra.mxu0 0.0
    %3145 = vmatprep.subr.mxu0 0.0
    %3146 = vmatpush1.msra.mxu0 0.0
    %3147 = vmatprep.subr.mxu0 0.0
    %3148 = vmatpush1.msra.mxu0 0.0
    %3149 = vmatprep.subr.mxu0 0.0
    %3150 = vmatpush1.msra.mxu0 0.0
    %3151 = vmatprep.subr.mxu0 0.0
    %3152 = vmatpush1.msra.mxu0 0.0
    %3153 = vmatprep.subr.mxu0 0.0
    %3154 = vmatpush1.msra.mxu0 0.0
    %3155 = vmatprep.subr.mxu0 0.0
    %3156 = vmatpush1.msra.mxu0 0.0
    %3157 = vmatprep.subr.mxu0 0.0
    %3158 = vmatpush1.msra.mxu0 0.0
    %3159 = vmatprep.subr.mxu0 0.0
    %3160 = vmatpush1.msra.mxu0 0.0
    %3161 = vmatprep.subr.mxu0 0.0
    %3162 = vmatpush1.msra.mxu0 0.0
    %3163 = vmatprep.mubr.f32.mxu0 0.0
    %3164 = vmatmul.mubr.f32.gmra.mrb[0].mxu0 %v3097
    %v3165 = vpop.f32.mrb[0].mxu0
    %v3166 = vadd.f32 0.0, %v3165
    %v3167 = vpop.f32.mrb[0].mxu0
    %3168 = vdwg.mxu0
    %3169 = vrot.lane.b32.xlu0 %v2236, 64
    %v3170 = vpop.permute.xlu0 %3169
    %v3173 = vsel %vm436, %v2936, 0
    %3175 = vmatprep.subr.mxu0 0.0
    %3176 = vmatpush1.msra.mxu0 %v3170
    %3177 = vmatprep.subr.mxu0 0.0
    %3178 = vmatpush1.msra.mxu0 0.0
    %3179 = vmatprep.subr.mxu0 0.0
    %3180 = vmatpush1.msra.mxu0 0.0
    %3181 = vmatprep.subr.mxu0 0.0
    %3182 = vmatpush1.msra.mxu0 0.0
    %3183 = vmatprep.subr.mxu0 0.0
    %3184 = vmatpush1.msra.mxu0 0.0
    %3185 = vmatprep.subr.mxu0 0.0
    %3186 = vmatpush1.msra.mxu0 0.0
    %3187 = vmatprep.subr.mxu0 0.0
    %3188 = vmatpush1.msra.mxu0 0.0
    %3189 = vmatprep.subr.mxu0 0.0
    %3190 = vmatpush1.msra.mxu0 0.0
    %3191 = vmatprep.subr.mxu0 0.0
    %3192 = vmatpush1.msra.mxu0 0.0
    %3193 = vmatprep.subr.mxu0 0.0
    %3194 = vmatpush1.msra.mxu0 0.0
    %3195 = vmatprep.subr.mxu0 0.0
    %3196 = vmatpush1.msra.mxu0 0.0
    %3197 = vmatprep.subr.mxu0 0.0
    %3198 = vmatpush1.msra.mxu0 0.0
    %3199 = vmatprep.subr.mxu0 0.0
    %3200 = vmatpush1.msra.mxu0 0.0
    %3201 = vmatprep.subr.mxu0 0.0
    %3202 = vmatpush1.msra.mxu0 0.0
    %3203 = vmatprep.subr.mxu0 0.0
    %3204 = vmatpush1.msra.mxu0 0.0
    %3205 = vmatprep.subr.mxu0 0.0
    %3206 = vmatpush1.msra.mxu0 0.0
    %3207 = vmatprep.subr.mxu0 0.0
    %3208 = vmatpush1.msra.mxu0 0.0
    %3209 = vmatprep.subr.mxu0 0.0
    %3210 = vmatpush1.msra.mxu0 0.0
    %3211 = vmatprep.subr.mxu0 0.0
    %3212 = vmatpush1.msra.mxu0 0.0
    %3213 = vmatprep.subr.mxu0 0.0
    %3214 = vmatpush1.msra.mxu0 0.0
    %3215 = vmatprep.subr.mxu0 0.0
    %3216 = vmatpush1.msra.mxu0 0.0
    %3217 = vmatprep.subr.mxu0 0.0
    %3218 = vmatpush1.msra.mxu0 0.0
    %3219 = vmatprep.subr.mxu0 0.0
    %3220 = vmatpush1.msra.mxu0 0.0
    %3221 = vmatprep.subr.mxu0 0.0
    %3222 = vmatpush1.msra.mxu0 0.0
    %3223 = vmatprep.subr.mxu0 0.0
    %3224 = vmatpush1.msra.mxu0 0.0
    %3225 = vmatprep.subr.mxu0 0.0
    %3226 = vmatpush1.msra.mxu0 0.0
    %3227 = vmatprep.subr.mxu0 0.0
    %3228 = vmatpush1.msra.mxu0 0.0
    %3229 = vmatprep.subr.mxu0 0.0
    %3230 = vmatpush1.msra.mxu0 0.0
    %3231 = vmatprep.subr.mxu0 0.0
    %3232 = vmatpush1.msra.mxu0 0.0
    %3233 = vmatprep.subr.mxu0 0.0
    %3234 = vmatpush1.msra.mxu0 0.0
    %3235 = vmatprep.subr.mxu0 0.0
    %3236 = vmatpush1.msra.mxu0 0.0
    %3237 = vmatprep.subr.mxu0 0.0
    %3238 = vmatpush1.msra.mxu0 0.0
    %3239 = vmatprep.mubr.f32.mxu0 0.0
    %3240 = vmatmul.mubr.f32.gmra.mrb[0].mxu0 %v3173
    %v3241 = vpop.f32.mrb[0].mxu0
    %v3242 = vadd.f32 0.0, %v3241
    %v3243 = vpop.f32.mrb[0].mxu0
    %3244 = vdwg.mxu0
    %3245 = vrot.lane.b32.xlu0 %v2238, 64
    %v3246 = vpop.permute.xlu0 %3245
    %v3249 = vsel %vm436, %v2937, 0
    %3251 = vmatprep.subr.mxu0 0.0
    %3252 = vmatpush1.msra.mxu0 %v3246
    %3253 = vmatprep.subr.mxu0 0.0
    %3254 = vmatpush1.msra.mxu0 0.0
    %3255 = vmatprep.subr.mxu0 0.0
    %3256 = vmatpush1.msra.mxu0 0.0
    %3257 = vmatprep.subr.mxu0 0.0
    %3258 = vmatpush1.msra.mxu0 0.0
    %3259 = vmatprep.subr.mxu0 0.0
    %3260 = vmatpush1.msra.mxu0 0.0
    %3261 = vmatprep.subr.mxu0 0.0
    %3262 = vmatpush1.msra.mxu0 0.0
    %3263 = vmatprep.subr.mxu0 0.0
    %3264 = vmatpush1.msra.mxu0 0.0
    %3265 = vmatprep.subr.mxu0 0.0
    %3266 = vmatpush1.msra.mxu0 0.0
    %3267 = vmatprep.subr.mxu0 0.0
    %3268 = vmatpush1.msra.mxu0 0.0
    %3269 = vmatprep.subr.mxu0 0.0
    %3270 = vmatpush1.msra.mxu0 0.0
    %3271 = vmatprep.subr.mxu0 0.0
    %3272 = vmatpush1.msra.mxu0 0.0
    %3273 = vmatprep.subr.mxu0 0.0
    %3274 = vmatpush1.msra.mxu0 0.0
    %3275 = vmatprep.subr.mxu0 0.0
    %3276 = vmatpush1.msra.mxu0 0.0
    %3277 = vmatprep.subr.mxu0 0.0
    %3278 = vmatpush1.msra.mxu0 0.0
    %3279 = vmatprep.subr.mxu0 0.0
    %3280 = vmatpush1.msra.mxu0 0.0
    %3281 = vmatprep.subr.mxu0 0.0
    %3282 = vmatpush1.msra.mxu0 0.0
    %3283 = vmatprep.subr.mxu0 0.0
    %3284 = vmatpush1.msra.mxu0 0.0
    %3285 = vmatprep.subr.mxu0 0.0
    %3286 = vmatpush1.msra.mxu0 0.0
    %3287 = vmatprep.subr.mxu0 0.0
    %3288 = vmatpush1.msra.mxu0 0.0
    %3289 = vmatprep.subr.mxu0 0.0
    %3290 = vmatpush1.msra.mxu0 0.0
    %3291 = vmatprep.subr.mxu0 0.0
    %3292 = vmatpush1.msra.mxu0 0.0
    %3293 = vmatprep.subr.mxu0 0.0
    %3294 = vmatpush1.msra.mxu0 0.0
    %3295 = vmatprep.subr.mxu0 0.0
    %3296 = vmatpush1.msra.mxu0 0.0
    %3297 = vmatprep.subr.mxu0 0.0
    %3298 = vmatpush1.msra.mxu0 0.0
    %3299 = vmatprep.subr.mxu0 0.0
    %3300 = vmatpush1.msra.mxu0 0.0
    %3301 = vmatprep.subr.mxu0 0.0
    %3302 = vmatpush1.msra.mxu0 0.0
    %3303 = vmatprep.subr.mxu0 0.0
    %3304 = vmatpush1.msra.mxu0 0.0
    %3305 = vmatprep.subr.mxu0 0.0
    %3306 = vmatpush1.msra.mxu0 0.0
    %3307 = vmatprep.subr.mxu0 0.0
    %3308 = vmatpush1.msra.mxu0 0.0
    %3309 = vmatprep.subr.mxu0 0.0
    %3310 = vmatpush1.msra.mxu0 0.0
    %3311 = vmatprep.subr.mxu0 0.0
    %3312 = vmatpush1.msra.mxu0 0.0
    %3313 = vmatprep.subr.mxu0 0.0
    %3314 = vmatpush1.msra.mxu0 0.0
    %3315 = vmatprep.mubr.f32.mxu0 0.0
    %3316 = vmatmul.mubr.f32.gmra.mrb[0].mxu0 %v3249
    %v3317 = vpop.f32.mrb[0].mxu0
    %v3318 = vadd.f32 0.0, %v3317
    %v3319 = vpop.f32.mrb[0].mxu0
    %3320 = vdwg.mxu0
    %3321 = vrot.lane.b32.xlu0 %v2240, 64
    %v3322 = vpop.permute.xlu0 %3321
    %v3325 = vsel %vm436, %v2938, 0
    %3327 = vmatprep.subr.mxu0 0.0
    %3328 = vmatpush1.msra.mxu0 %v3322
    %3329 = vmatprep.subr.mxu0 0.0
    %3330 = vmatpush1.msra.mxu0 0.0
    %3331 = vmatprep.subr.mxu0 0.0
    %3332 = vmatpush1.msra.mxu0 0.0
    %3333 = vmatprep.subr.mxu0 0.0
    %3334 = vmatpush1.msra.mxu0 0.0
    %3335 = vmatprep.subr.mxu0 0.0
    %3336 = vmatpush1.msra.mxu0 0.0
    %3337 = vmatprep.subr.mxu0 0.0
    %3338 = vmatpush1.msra.mxu0 0.0
    %3339 = vmatprep.subr.mxu0 0.0
    %3340 = vmatpush1.msra.mxu0 0.0
    %3341 = vmatprep.subr.mxu0 0.0
    %3342 = vmatpush1.msra.mxu0 0.0
    %3343 = vmatprep.subr.mxu0 0.0
    %3344 = vmatpush1.msra.mxu0 0.0
    %3345 = vmatprep.subr.mxu0 0.0
    %3346 = vmatpush1.msra.mxu0 0.0
    %3347 = vmatprep.subr.mxu0 0.0
    %3348 = vmatpush1.msra.mxu0 0.0
    %3349 = vmatprep.subr.mxu0 0.0
    %3350 = vmatpush1.msra.mxu0 0.0
    %3351 = vmatprep.subr.mxu0 0.0
    %3352 = vmatpush1.msra.mxu0 0.0
    %3353 = vmatprep.subr.mxu0 0.0
    %3354 = vmatpush1.msra.mxu0 0.0
    %3355 = vmatprep.subr.mxu0 0.0
    %3356 = vmatpush1.msra.mxu0 0.0
    %3357 = vmatprep.subr.mxu0 0.0
    %3358 = vmatpush1.msra.mxu0 0.0
    %3359 = vmatprep.subr.mxu0 0.0
    %3360 = vmatpush1.msra.mxu0 0.0
    %3361 = vmatprep.subr.mxu0 0.0
    %3362 = vmatpush1.msra.mxu0 0.0
    %3363 = vmatprep.subr.mxu0 0.0
    %3364 = vmatpush1.msra.mxu0 0.0
    %3365 = vmatprep.subr.mxu0 0.0
    %3366 = vmatpush1.msra.mxu0 0.0
    %3367 = vmatprep.subr.mxu0 0.0
    %3368 = vmatpush1.msra.mxu0 0.0
    %3369 = vmatprep.subr.mxu0 0.0
    %3370 = vmatpush1.msra.mxu0 0.0
    %3371 = vmatprep.subr.mxu0 0.0
    %3372 = vmatpush1.msra.mxu0 0.0
    %3373 = vmatprep.subr.mxu0 0.0
    %3374 = vmatpush1.msra.mxu0 0.0
    %3375 = vmatprep.subr.mxu0 0.0
    %3376 = vmatpush1.msra.mxu0 0.0
    %3377 = vmatprep.subr.mxu0 0.0
    %3378 = vmatpush1.msra.mxu0 0.0
    %3379 = vmatprep.subr.mxu0 0.0
    %3380 = vmatpush1.msra.mxu0 0.0
    %3381 = vmatprep.subr.mxu0 0.0
    %3382 = vmatpush1.msra.mxu0 0.0
    %3383 = vmatprep.subr.mxu0 0.0
    %3384 = vmatpush1.msra.mxu0 0.0
    %3385 = vmatprep.subr.mxu0 0.0
    %3386 = vmatpush1.msra.mxu0 0.0
    %3387 = vmatprep.subr.mxu0 0.0
    %3388 = vmatpush1.msra.mxu0 0.0
    %3389 = vmatprep.subr.mxu0 0.0
    %3390 = vmatpush1.msra.mxu0 0.0
    %3391 = vmatprep.mubr.f32.mxu0 0.0
    %3392 = vmatmul.mubr.f32.gmra.mrb[0].mxu0 %v3325
    %v3393 = vpop.f32.mrb[0].mxu0
    %v3394 = vadd.f32 0.0, %v3393
    %v3395 = vpop.f32.mrb[0].mxu0
    %3396 = vdwg.mxu0
    %3397 = vrot.lane.b32.xlu0 %v2242, 64
    %v3398 = vpop.permute.xlu0 %3397
    %v3401 = vsel %vm436, %v2939, 0
    %3403 = vmatprep.subr.mxu0 0.0
    %3404 = vmatpush1.msra.mxu0 %v3398
    %3405 = vmatprep.subr.mxu0 0.0
    %3406 = vmatpush1.msra.mxu0 0.0
    %3407 = vmatprep.subr.mxu0 0.0
    %3408 = vmatpush1.msra.mxu0 0.0
    %3409 = vmatprep.subr.mxu0 0.0
    %3410 = vmatpush1.msra.mxu0 0.0
    %3411 = vmatprep.subr.mxu0 0.0
    %3412 = vmatpush1.msra.mxu0 0.0
    %3413 = vmatprep.subr.mxu0 0.0
    %3414 = vmatpush1.msra.mxu0 0.0
    %3415 = vmatprep.subr.mxu0 0.0
    %3416 = vmatpush1.msra.mxu0 0.0
    %3417 = vmatprep.subr.mxu0 0.0
    %3418 = vmatpush1.msra.mxu0 0.0
    %3419 = vmatprep.subr.mxu0 0.0
    %3420 = vmatpush1.msra.mxu0 0.0
    %3421 = vmatprep.subr.mxu0 0.0
    %3422 = vmatpush1.msra.mxu0 0.0
    %3423 = vmatprep.subr.mxu0 0.0
    %3424 = vmatpush1.msra.mxu0 0.0
    %3425 = vmatprep.subr.mxu0 0.0
    %3426 = vmatpush1.msra.mxu0 0.0
    %3427 = vmatprep.subr.mxu0 0.0
    %3428 = vmatpush1.msra.mxu0 0.0
    %3429 = vmatprep.subr.mxu0 0.0
    %3430 = vmatpush1.msra.mxu0 0.0
    %3431 = vmatprep.subr.mxu0 0.0
    %3432 = vmatpush1.msra.mxu0 0.0
    %3433 = vmatprep.subr.mxu0 0.0
    %3434 = vmatpush1.msra.mxu0 0.0
    %3435 = vmatprep.subr.mxu0 0.0
    %3436 = vmatpush1.msra.mxu0 0.0
    %3437 = vmatprep.subr.mxu0 0.0
    %3438 = vmatpush1.msra.mxu0 0.0
    %3439 = vmatprep.subr.mxu0 0.0
    %3440 = vmatpush1.msra.mxu0 0.0
    %3441 = vmatprep.subr.mxu0 0.0
    %3442 = vmatpush1.msra.mxu0 0.0
    %3443 = vmatprep.subr.mxu0 0.0
    %3444 = vmatpush1.msra.mxu0 0.0
    %3445 = vmatprep.subr.mxu0 0.0
    %3446 = vmatpush1.msra.mxu0 0.0
    %3447 = vmatprep.subr.mxu0 0.0
    %3448 = vmatpush1.msra.mxu0 0.0
    %3449 = vmatprep.subr.mxu0 0.0
    %3450 = vmatpush1.msra.mxu0 0.0
    %3451 = vmatprep.subr.mxu0 0.0
    %3452 = vmatpush1.msra.mxu0 0.0
    %3453 = vmatprep.subr.mxu0 0.0
    %3454 = vmatpush1.msra.mxu0 0.0
    %3455 = vmatprep.subr.mxu0 0.0
    %3456 = vmatpush1.msra.mxu0 0.0
    %3457 = vmatprep.subr.mxu0 0.0
    %3458 = vmatpush1.msra.mxu0 0.0
    %3459 = vmatprep.subr.mxu0 0.0
    %3460 = vmatpush1.msra.mxu0 0.0
    %3461 = vmatprep.subr.mxu0 0.0
    %3462 = vmatpush1.msra.mxu0 0.0
    %3463 = vmatprep.subr.mxu0 0.0
    %3464 = vmatpush1.msra.mxu0 0.0
    %3465 = vmatprep.subr.mxu0 0.0
    %3466 = vmatpush1.msra.mxu0 0.0
    %3467 = vmatprep.mubr.f32.mxu0 0.0
    %3468 = vmatmul.mubr.f32.gmra.mrb[0].mxu0 %v3401
    %v3469 = vpop.f32.mrb[0].mxu0
    %v3470 = vadd.f32 0.0, %v3469
    %v3471 = vpop.f32.mrb[0].mxu0
    %3472 = vdwg.mxu0
    %3473 = vrot.lane.b32.xlu0 %v2244, 64
    %v3474 = vpop.permute.xlu0 %3473
    %v3477 = vsel %vm436, %v2940, 0
    %3479 = vmatprep.subr.mxu0 0.0
    %3480 = vmatpush1.msra.mxu0 %v3474
    %3481 = vmatprep.subr.mxu0 0.0
    %3482 = vmatpush1.msra.mxu0 0.0
    %3483 = vmatprep.subr.mxu0 0.0
    %3484 = vmatpush1.msra.mxu0 0.0
    %3485 = vmatprep.subr.mxu0 0.0
    %3486 = vmatpush1.msra.mxu0 0.0
    %3487 = vmatprep.subr.mxu0 0.0
    %3488 = vmatpush1.msra.mxu0 0.0
    %3489 = vmatprep.subr.mxu0 0.0
    %3490 = vmatpush1.msra.mxu0 0.0
    %3491 = vmatprep.subr.mxu0 0.0
    %3492 = vmatpush1.msra.mxu0 0.0
    %3493 = vmatprep.subr.mxu0 0.0
    %3494 = vmatpush1.msra.mxu0 0.0
    %3495 = vmatprep.subr.mxu0 0.0
    %3496 = vmatpush1.msra.mxu0 0.0
    %3497 = vmatprep.subr.mxu0 0.0
    %3498 = vmatpush1.msra.mxu0 0.0
    %3499 = vmatprep.subr.mxu0 0.0
    %3500 = vmatpush1.msra.mxu0 0.0
    %3501 = vmatprep.subr.mxu0 0.0
    %3502 = vmatpush1.msra.mxu0 0.0
    %3503 = vmatprep.subr.mxu0 0.0
    %3504 = vmatpush1.msra.mxu0 0.0
    %3505 = vmatprep.subr.mxu0 0.0
    %3506 = vmatpush1.msra.mxu0 0.0
    %3507 = vmatprep.subr.mxu0 0.0
    %3508 = vmatpush1.msra.mxu0 0.0
    %3509 = vmatprep.subr.mxu0 0.0
    %3510 = vmatpush1.msra.mxu0 0.0
    %3511 = vmatprep.subr.mxu0 0.0
    %3512 = vmatpush1.msra.mxu0 0.0
    %3513 = vmatprep.subr.mxu0 0.0
    %3514 = vmatpush1.msra.mxu0 0.0
    %3515 = vmatprep.subr.mxu0 0.0
    %3516 = vmatpush1.msra.mxu0 0.0
    %3517 = vmatprep.subr.mxu0 0.0
    %3518 = vmatpush1.msra.mxu0 0.0
    %3519 = vmatprep.subr.mxu0 0.0
    %3520 = vmatpush1.msra.mxu0 0.0
    %3521 = vmatprep.subr.mxu0 0.0
    %3522 = vmatpush1.msra.mxu0 0.0
    %3523 = vmatprep.subr.mxu0 0.0
    %3524 = vmatpush1.msra.mxu0 0.0
    %3525 = vmatprep.subr.mxu0 0.0
    %3526 = vmatpush1.msra.mxu0 0.0
    %3527 = vmatprep.subr.mxu0 0.0
    %3528 = vmatpush1.msra.mxu0 0.0
    %3529 = vmatprep.subr.mxu0 0.0
    %3530 = vmatpush1.msra.mxu0 0.0
    %3531 = vmatprep.subr.mxu0 0.0
    %3532 = vmatpush1.msra.mxu0 0.0
    %3533 = vmatprep.subr.mxu0 0.0
    %3534 = vmatpush1.msra.mxu0 0.0
    %3535 = vmatprep.subr.mxu0 0.0
    %3536 = vmatpush1.msra.mxu0 0.0
    %3537 = vmatprep.subr.mxu0 0.0
    %3538 = vmatpush1.msra.mxu0 0.0
    %3539 = vmatprep.subr.mxu0 0.0
    %3540 = vmatpush1.msra.mxu0 0.0
    %3541 = vmatprep.subr.mxu0 0.0
    %3542 = vmatpush1.msra.mxu0 0.0
    %3543 = vmatprep.mubr.f32.mxu0 0.0
    %3544 = vmatmul.mubr.f32.gmra.mrb[0].mxu0 %v3477
    %v3545 = vpop.f32.mrb[0].mxu0
    %v3546 = vadd.f32 0.0, %v3545
    %v3547 = vpop.f32.mrb[0].mxu0
    %3548 = vdwg.mxu0
    %3551 = vrot.lane.b32.xlu0 %v3166, 8
    %v3552 = vpop.permute.xlu0 %3551
    %3553 = vrot.lane.b32.xlu0 %v3242, 8
    %v3554 = vpop.permute.xlu0 %3553
    %3559 = vrot.lane.b32.xlu0 %v3318, 16
    %v3560 = vpop.permute.xlu0 %3559
    %3561 = vrot.lane.b32.xlu0 %v3394, 16
    %v3562 = vpop.permute.xlu0 %3561
    %3567 = vrot.lane.b32.xlu0 %v3470, 24
    %v3568 = vpop.permute.xlu0 %3567
    %3569 = vrot.lane.b32.xlu0 %v3546, 24
    %v3570 = vpop.permute.xlu0 %3569
    %v3573 = vsel %vm436, %v3014, %v3552
    %v3574 = vsel %vm436, %v3090, %v3554
    %v3575 = vsel %vm1765, %v3573, %v3560
    %v3576 = vsel %vm1765, %v3574, %v3562
    %v3577 = vsel %vm1768, %v3575, %v3568
    %v3578 = vsel %vm1768, %v3576, %v3570
    %s3579 = scalar_lea.vmem %s4, 32
    %v3580 = vld [vmem:[%s3579] sm:$0xff]
    %v3581 = vld [vmem:[%s3579 + $0x8] sm:$0xff]
    %v3582 = vld [vmem:[%s3579 + $0x10] sm:$0xff]
    %v3583 = vld [vmem:[%s3579 + $0x18] sm:$0xff]
    %v3584 = vlaneseq
    %v3585 = vshrl.u32 %v3584, 7
    %v3586 = vsub.s32 4, %v3585
    %v3587 = vrot.slane %v47, %v3586
    %v3589 = vsel %vm291, %v3577, 0
    %v3592 = vsel %vm291, %v3578, 0
    %3594 = vmatprep.subr.mxu0 0.0
    %3595 = vmatpush1.msra.mxu0 %v3580
    %3596 = vmatprep.subr.mxu0 0.0
    %3597 = vmatpush1.msra.mxu0 %v3581
    %3598 = vmatprep.subr.mxu0 0.0
    %3599 = vmatpush1.msra.mxu0 %v3582
    %3600 = vmatprep.subr.mxu0 0.0
    %3601 = vmatpush1.msra.mxu0 %v3583
    %3602 = vmatprep.subr.mxu0 0.0
    %3603 = vmatpush1.msra.mxu0 0.0
    %3604 = vmatprep.subr.mxu0 0.0
    %3605 = vmatpush1.msra.mxu0 0.0
    %3606 = vmatprep.subr.mxu0 0.0
    %3607 = vmatpush1.msra.mxu0 0.0
    %3608 = vmatprep.subr.mxu0 0.0
    %3609 = vmatpush1.msra.mxu0 0.0
    %3610 = vmatprep.subr.mxu0 0.0
    %3611 = vmatpush1.msra.mxu0 0.0
    %3612 = vmatprep.subr.mxu0 0.0
    %3613 = vmatpush1.msra.mxu0 0.0
    %3614 = vmatprep.subr.mxu0 0.0
    %3615 = vmatpush1.msra.mxu0 0.0
    %3616 = vmatprep.subr.mxu0 0.0
    %3617 = vmatpush1.msra.mxu0 0.0
    %3618 = vmatprep.subr.mxu0 0.0
    %3619 = vmatpush1.msra.mxu0 0.0
    %3620 = vmatprep.subr.mxu0 0.0
    %3621 = vmatpush1.msra.mxu0 0.0
    %3622 = vmatprep.subr.mxu0 0.0
    %3623 = vmatpush1.msra.mxu0 0.0
    %3624 = vmatprep.subr.mxu0 0.0
    %3625 = vmatpush1.msra.mxu0 0.0
    %3626 = vmatprep.subr.mxu0 0.0
    %3627 = vmatpush1.msra.mxu0 0.0
    %3628 = vmatprep.subr.mxu0 0.0
    %3629 = vmatpush1.msra.mxu0 0.0
    %3630 = vmatprep.subr.mxu0 0.0
    %3631 = vmatpush1.msra.mxu0 0.0
    %3632 = vmatprep.subr.mxu0 0.0
    %3633 = vmatpush1.msra.mxu0 0.0
    %3634 = vmatprep.subr.mxu0 0.0
    %3635 = vmatpush1.msra.mxu0 0.0
    %3636 = vmatprep.subr.mxu0 0.0
    %3637 = vmatpush1.msra.mxu0 0.0
    %3638 = vmatprep.subr.mxu0 0.0
    %3639 = vmatpush1.msra.mxu0 0.0
    %3640 = vmatprep.subr.mxu0 0.0
    %3641 = vmatpush1.msra.mxu0 0.0
    %3642 = vmatprep.subr.mxu0 0.0
    %3643 = vmatpush1.msra.mxu0 0.0
    %3644 = vmatprep.subr.mxu0 0.0
    %3645 = vmatpush1.msra.mxu0 0.0
    %3646 = vmatprep.subr.mxu0 0.0
    %3647 = vmatpush1.msra.mxu0 0.0
    %3648 = vmatprep.subr.mxu0 0.0
    %3649 = vmatpush1.msra.mxu0 0.0
    %3650 = vmatprep.subr.mxu0 0.0
    %3651 = vmatpush1.msra.mxu0 0.0
    %3652 = vmatprep.subr.mxu0 0.0
    %3653 = vmatpush1.msra.mxu0 0.0
    %3654 = vmatprep.subr.mxu0 0.0
    %3655 = vmatpush1.msra.mxu0 0.0
    %3656 = vmatprep.subr.mxu0 0.0
    %3657 = vmatpush1.msra.mxu0 0.0
    %3658 = vmatprep.mubr.f32.mxu0 0.0
    %3659 = vmatmul.mubr.f32.gmra.mrb[0].mxu0 %v3589
    %v3660 = vpop.f32.mrb[0].mxu0
    %v3661 = vadd.f32 %v3587, %v3660
    %v3662 = vpop.f32.mrb[0].mxu0
    %3663 = vmatprep.mubr.f32.mxu0 0.0
    %3664 = vmatmul.mubr.f32.gmra.mrb[0].mxu0 %v3592
    %v3665 = vpop.f32.mrb[0].mxu0
    %v3666 = vadd.f32 %v3587, %v3665
    %v3667 = vpop.f32.mrb[0].mxu0
    %3668 = vdwg.mxu0
    %v3669 = vadd.f32 %v2139, %v3661
    %v3670 = vadd.f32 %v2140, %v3666
    %v3671 = vsel %vm291, %v3669, 0.0
    %3672 = vadd.xlane.f32.xlu0 %v3671
    %v3673 = vpop.xlane.xlu0 %3672
    %v3674 = vsel %vm291, %v3670, 0.0
    %3675 = vadd.xlane.f32.xlu0 %v3674
    %v3676 = vpop.xlane.xlu0 %3675
    %v3677 = vmul.f32 %v3673, %v298
    %v3678 = vmul.f32 %v3676, %v298
    %v3679 = vsub.f32 %v3669, %v3677
    %v3680 = vsub.f32 %v3670, %v3678
    %v3681 = vmul.f32 %v3679, %v3679
    %v3682 = vmul.f32 %v3680, %v3680
    %v3683 = vsel %vm291, %v3681, 0.0
    %3684 = vadd.xlane.f32.xlu0 %v3683
    %v3685 = vpop.xlane.xlu0 %3684
    %v3686 = vsel %vm291, %v3682, 0.0
    %3687 = vadd.xlane.f32.xlu0 %v3686
    %v3688 = vpop.xlane.xlu0 %3687
    %v3689 = vmul.f32 %v3685, %v298
    %v3690 = vmul.f32 %v3688, %v298
    %v3691 = vadd.f32 %v3689, 1e-12
    %v3692 = vadd.f32 %v3690, 1e-12
    %v3693 = vrsqrt.pop %v3691
    %v3694 = vrsqrt.pop %v3692
    %v3695 = vmul.f32 %v3679, %v3693
    %v3696 = vmul.f32 %v3680, %v3694
    %v3697 = vlaneseq
    %v3698 = vshrl.u32 %v3697, 7
    %v3699 = vsub.s32 5, %v3698
    %v3700 = vrot.slane %v47, %v3699
    %v3701 = vmul.f32 %v3695, %v3700
    %v3702 = vmul.f32 %v3696, %v3700
    %v3703 = vlaneseq
    %v3704 = vshrl.u32 %v3703, 7
    %v3705 = vsub.s32 6, %v3704
    %v3706 = vrot.slane %v47, %v3705
    %v3707 = vadd.f32 %v3701, %v3706
    %v3708 = vadd.f32 %v3702, %v3706
    %s3709 = scalar_lea.vmem %s5, 32
    %v3710 = vld [vmem:[%s3709] sm:$0xff]
    %v3711 = vld [vmem:[%s3709 + $0x8] sm:$0xff]
    %v3712 = vld [vmem:[%s3709 + $0x10] sm:$0xff]
    %v3713 = vld [vmem:[%s3709 + $0x18] sm:$0xff]
    %v3714 = vlaneseq
    %v3715 = vshrl.u32 %v3714, 7
    %v3716 = vsub.s32 7, %v3715
    %v3717 = vrot.slane %v47, %v3716
    %v3719 = vsel %vm291, %v3707, 0
    %v3722 = vsel %vm291, %v3708, 0
    %3724 = vmatprep.subr.mxu0 0.0
    %3725 = vmatpush1.msra.mxu0 %v3710
    %3726 = vmatprep.subr.mxu0 0.0
    %3727 = vmatpush1.msra.mxu0 %v3711
    %3728 = vmatprep.subr.mxu0 0.0
    %3729 = vmatpush1.msra.mxu0 %v3712
    %3730 = vmatprep.subr.mxu0 0.0
    %3731 = vmatpush1.msra.mxu0 %v3713
    %3732 = vmatprep.subr.mxu0 0.0
    %3733 = vmatpush1.msra.mxu0 0.0
    %3734 = vmatprep.subr.mxu0 0.0
    %3735 = vmatpush1.msra.mxu0 0.0
    %3736 = vmatprep.subr.mxu0 0.0
    %3737 = vmatpush1.msra.mxu0 0.0
    %3738 = vmatprep.subr.mxu0 0.0
    %3739 = vmatpush1.msra.mxu0 0.0
    %3740 = vmatprep.subr.mxu0 0.0
    %3741 = vmatpush1.msra.mxu0 0.0
    %3742 = vmatprep.subr.mxu0 0.0
    %3743 = vmatpush1.msra.mxu0 0.0
    %3744 = vmatprep.subr.mxu0 0.0
    %3745 = vmatpush1.msra.mxu0 0.0
    %3746 = vmatprep.subr.mxu0 0.0
    %3747 = vmatpush1.msra.mxu0 0.0
    %3748 = vmatprep.subr.mxu0 0.0
    %3749 = vmatpush1.msra.mxu0 0.0
    %3750 = vmatprep.subr.mxu0 0.0
    %3751 = vmatpush1.msra.mxu0 0.0
    %3752 = vmatprep.subr.mxu0 0.0
    %3753 = vmatpush1.msra.mxu0 0.0
    %3754 = vmatprep.subr.mxu0 0.0
    %3755 = vmatpush1.msra.mxu0 0.0
    %3756 = vmatprep.subr.mxu0 0.0
    %3757 = vmatpush1.msra.mxu0 0.0
    %3758 = vmatprep.subr.mxu0 0.0
    %3759 = vmatpush1.msra.mxu0 0.0
    %3760 = vmatprep.subr.mxu0 0.0
    %3761 = vmatpush1.msra.mxu0 0.0
    %3762 = vmatprep.subr.mxu0 0.0
    %3763 = vmatpush1.msra.mxu0 0.0
    %3764 = vmatprep.subr.mxu0 0.0
    %3765 = vmatpush1.msra.mxu0 0.0
    %3766 = vmatprep.subr.mxu0 0.0
    %3767 = vmatpush1.msra.mxu0 0.0
    %3768 = vmatprep.subr.mxu0 0.0
    %3769 = vmatpush1.msra.mxu0 0.0
    %3770 = vmatprep.subr.mxu0 0.0
    %3771 = vmatpush1.msra.mxu0 0.0
    %3772 = vmatprep.subr.mxu0 0.0
    %3773 = vmatpush1.msra.mxu0 0.0
    %3774 = vmatprep.subr.mxu0 0.0
    %3775 = vmatpush1.msra.mxu0 0.0
    %3776 = vmatprep.subr.mxu0 0.0
    %3777 = vmatpush1.msra.mxu0 0.0
    %3778 = vmatprep.subr.mxu0 0.0
    %3779 = vmatpush1.msra.mxu0 0.0
    %3780 = vmatprep.subr.mxu0 0.0
    %3781 = vmatpush1.msra.mxu0 0.0
    %3782 = vmatprep.subr.mxu0 0.0
    %3783 = vmatpush1.msra.mxu0 0.0
    %3784 = vmatprep.subr.mxu0 0.0
    %3785 = vmatpush1.msra.mxu0 0.0
    %3786 = vmatprep.subr.mxu0 0.0
    %3787 = vmatpush1.msra.mxu0 0.0
    %3788 = vmatprep.mubr.f32.mxu0 0.0
    %3789 = vmatmul.mubr.f32.gmra.mrb[0].mxu0 %v3719
    %v3790 = vpop.f32.mrb[0].mxu0
    %v3791 = vadd.f32 %v3717, %v3790
    %v3792 = vpop.f32.mrb[0].mxu0
    %3793 = vmatprep.mubr.f32.mxu0 0.0
    %3794 = vmatmul.mubr.f32.gmra.mrb[0].mxu0 %v3722
    %v3795 = vpop.f32.mrb[0].mxu0
    %v3796 = vadd.f32 %v3717, %v3795
    %v3797 = vpop.f32.mrb[0].mxu0
    %3798 = vdwg.mxu0
    %v3799 = vmul.f32 %v3791, %v3791
    %v3800 = vmul.f32 %v3796, %v3796
    %v3801 = vmul.f32 %v3791, %v3799
    %v3802 = vmul.f32 %v3796, %v3800
    %v3803 = vmul.f32 %v3801, 0.044715
    %v3804 = vmul.f32 %v3802, 0.044715
    %v3805 = vadd.f32 %v3791, %v3803
    %v3806 = vadd.f32 %v3796, %v3804
    %v3807 = vmul.f32 %v3805, 0.7978846
    %v3808 = vmul.f32 %v3806, 0.7978846
    %v3809 = vtanh.pop %v3807
    %v3810 = vtanh.pop %v3808
    %v3811 = vadd.f32 %v3809, 1.0
    %v3812 = vadd.f32 %v3810, 1.0
    %v3813 = vmul.f32 %v3811, 0.5
    %v3814 = vmul.f32 %v3812, 0.5
    %v3815 = vmul.f32 %v3791, %v3813
    %v3816 = vmul.f32 %v3796, %v3814
    %s3817 = scalar_lea.vmem %s6, 64
    %v3818 = vld [vmem:[%s3817] sm:$0xff]
    %v3819 = vld [vmem:[%s3817 + $0x8] sm:$0xff]
    %v3820 = vld [vmem:[%s3817 + $0x10] sm:$0xff]
    %v3821 = vld [vmem:[%s3817 + $0x18] sm:$0xff]
    %v3822 = vld [vmem:[%s3817 + $0x20] sm:$0xff]
    %v3823 = vld [vmem:[%s3817 + $0x28] sm:$0xff]
    %v3824 = vld [vmem:[%s3817 + $0x30] sm:$0xff]
    %v3825 = vld [vmem:[%s3817 + $0x38] sm:$0xff]
    %v3826 = vlaneseq
    %v3827 = vshrl.u32 %v3826, 7
    %v3828 = vsub.s32 0, %v3827
    %v3829 = vrot.slane %v48, %v3828
    %v3831 = vsel %vm2019, %v3815, 0
    %v3834 = vsel %vm2019, %v3816, 0
    %3836 = vmatprep.subr.mxu0 0.0
    %3837 = vmatpush1.msra.mxu0 %v3818
    %3838 = vmatprep.subr.mxu0 0.0
    %3839 = vmatpush1.msra.mxu0 %v3819
    %3840 = vmatprep.subr.mxu0 0.0
    %3841 = vmatpush1.msra.mxu0 %v3820
    %3842 = vmatprep.subr.mxu0 0.0
    %3843 = vmatpush1.msra.mxu0 %v3821
    %3844 = vmatprep.subr.mxu0 0.0
    %3845 = vmatpush1.msra.mxu0 %v3822
    %3846 = vmatprep.subr.mxu0 0.0
    %3847 = vmatpush1.msra.mxu0 %v3823
    %3848 = vmatprep.subr.mxu0 0.0
    %3849 = vmatpush1.msra.mxu0 %v3824
    %3850 = vmatprep.subr.mxu0 0.0
    %3851 = vmatpush1.msra.mxu0 %v3825
    %3852 = vmatprep.subr.mxu0 0.0
    %3853 = vmatpush1.msra.mxu0 0.0
    %3854 = vmatprep.subr.mxu0 0.0
    %3855 = vmatpush1.msra.mxu0 0.0
    %3856 = vmatprep.subr.mxu0 0.0
    %3857 = vmatpush1.msra.mxu0 0.0
    %3858 = vmatprep.subr.mxu0 0.0
    %3859 = vmatpush1.msra.mxu0 0.0
    %3860 = vmatprep.subr.mxu0 0.0
    %3861 = vmatpush1.msra.mxu0 0.0
    %3862 = vmatprep.subr.mxu0 0.0
    %3863 = vmatpush1.msra.mxu0 0.0
    %3864 = vmatprep.subr.mxu0 0.0
    %3865 = vmatpush1.msra.mxu0 0.0
    %3866 = vmatprep.subr.mxu0 0.0
    %3867 = vmatpush1.msra.mxu0 0.0
    %3868 = vmatprep.subr.mxu0 0.0
    %3869 = vmatpush1.msra.mxu0 0.0
    %3870 = vmatprep.subr.mxu0 0.0
    %3871 = vmatpush1.msra.mxu0 0.0
    %3872 = vmatprep.subr.mxu0 0.0
    %3873 = vmatpush1.msra.mxu0 0.0
    %3874 = vmatprep.subr.mxu0 0.0
    %3875 = vmatpush1.msra.mxu0 0.0
    %3876 = vmatprep.subr.mxu0 0.0
    %3877 = vmatpush1.msra.mxu0 0.0
    %3878 = vmatprep.subr.mxu0 0.0
    %3879 = vmatpush1.msra.mxu0 0.0
    %3880 = vmatprep.subr.mxu0 0.0
    %3881 = vmatpush1.msra.mxu0 0.0
    %3882 = vmatprep.subr.mxu0 0.0
    %3883 = vmatpush1.msra.mxu0 0.0
    %3884 = vmatprep.subr.mxu0 0.0
    %3885 = vmatpush1.msra.mxu0 0.0
    %3886 = vmatprep.subr.mxu0 0.0
    %3887 = vmatpush1.msra.mxu0 0.0
    %3888 = vmatprep.subr.mxu0 0.0
    %3889 = vmatpush1.msra.mxu0 0.0
    %3890 = vmatprep.subr.mxu0 0.0
    %3891 = vmatpush1.msra.mxu0 0.0
    %3892 = vmatprep.subr.mxu0 0.0
    %3893 = vmatpush1.msra.mxu0 0.0
    %3894 = vmatprep.subr.mxu0 0.0
    %3895 = vmatpush1.msra.mxu0 0.0
    %3896 = vmatprep.subr.mxu0 0.0
    %3897 = vmatpush1.msra.mxu0 0.0
    %3898 = vmatprep.subr.mxu0 0.0
    %3899 = vmatpush1.msra.mxu0 0.0
    %3900 = vmatprep.mubr.f32.mxu0 0.0
    %3901 = vmatmul.mubr.f32.gmra.mrb[0].mxu0 %v3831
    %v3902 = vpop.f32.mrb[0].mxu0
    %v3903 = vadd.f32 %v3829, %v3902
    %v3904 = vpop.f32.mrb[0].mxu0
    %3905 = vmatprep.mubr.f32.mxu0 0.0
    %3906 = vmatmul.mubr.f32.gmra.mrb[0].mxu0 %v3834
    %v3907 = vpop.f32.mrb[0].mxu0
    %v3908 = vadd.f32 %v3829, %v3907
    %v3909 = vpop.f32.mrb[0].mxu0
    %3910 = vdwg.mxu0
    %v3911 = vadd.f32 %v3707, %v3903
    %v3912 = vadd.f32 %v3708, %v3908
    %v3913 = vsel %vm291, %v3911, 0.0
    %3914 = vadd.xlane.f32.xlu0 %v3913
    %v3915 = vpop.xlane.xlu0 %3914
    %v3916 = vsel %vm291, %v3912, 0.0
    %3917 = vadd.xlane.f32.xlu0 %v3916
    %v3918 = vpop.xlane.xlu0 %3917
    %v3919 = vmul.f32 %v3915, %v298
    %v3920 = vmul.f32 %v3918, %v298
    %v3921 = vsub.f32 %v3911, %v3919
    %v3922 = vsub.f32 %v3912, %v3920
    %v3923 = vmul.f32 %v3921, %v3921
    %v3924 = vmul.f32 %v3922, %v3922
    %v3925 = vsel %vm291, %v3923, 0.0
    %3926 = vadd.xlane.f32.xlu0 %v3925
    %v3927 = vpop.xlane.xlu0 %3926
    %v3928 = vsel %vm291, %v3924, 0.0
    %3929 = vadd.xlane.f32.xlu0 %v3928
    %v3930 = vpop.xlane.xlu0 %3929
    %v3931 = vmul.f32 %v3927, %v298
    %v3932 = vmul.f32 %v3930, %v298
    %v3933 = vadd.f32 %v3931, 1e-12
    %v3934 = vadd.f32 %v3932, 1e-12
    %v3935 = vrsqrt.pop %v3933
    %v3936 = vrsqrt.pop %v3934
    %v3937 = vmul.f32 %v3921, %v3935
    %v3938 = vmul.f32 %v3922, %v3936
    %v3939 = vlaneseq
    %v3940 = vshrl.u32 %v3939, 7
    %v3941 = vsub.s32 1, %v3940
    %v3942 = vrot.slane %v48, %v3941
    %v3943 = vmul.f32 %v3937, %v3942
    %v3944 = vmul.f32 %v3938, %v3942
    %v3945 = vlaneseq
    %v3946 = vshrl.u32 %v3945, 7
    %v3947 = vsub.s32 2, %v3946
    %v3948 = vrot.slane %v48, %v3947
    %v3949 = vadd.f32 %v3943, %v3948
    %v3950 = vadd.f32 %v3944, %v3948
    %v3952 = vrot.slane %v3950, 7
    %vm3954 = vcmask 1040384
    %v3955 = vsel %vm3954, %v3949, %v3952
    %v3956 = vld [vmem:[%s8] sm:$0xff]
    %v3957 = vld [vmem:[%s8 + $0x8] sm:$0xff]
    %v3958 = vld [vmem:[%s8 + $0x10] sm:$0xff]
    %v3959 = vld [vmem:[%s8 + $0x18] sm:$0xff]
    %v3960 = vlaneseq
    %v3961 = vshrl.u32 %v3960, 7
    %v3962 = vsub.s32 2, %v3961
    %v3963 = vrot.slane %v46, %v3962
    %v3965 = vsel %vm291, %v3955, 0
    %3967 = vmatprep.subr.mxu0 0.0
    %3968 = vmatpush1.msra.mxu0 %v3956
    %3969 = vmatprep.subr.mxu0 0.0
    %3970 = vmatpush1.msra.mxu0 %v3957
    %3971 = vmatprep.subr.mxu0 0.0
    %3972 = vmatpush1.msra.mxu0 %v3958
    %3973 = vmatprep.subr.mxu0 0.0
    %3974 = vmatpush1.msra.mxu0 %v3959
    %3975 = vmatprep.subr.mxu0 0.0
    %3976 = vmatpush1.msra.mxu0 0.0
    %3977 = vmatprep.subr.mxu0 0.0
    %3978 = vmatpush1.msra.mxu0 0.0
    %3979 = vmatprep.subr.mxu0 0.0
    %3980 = vmatpush1.msra.mxu0 0.0
    %3981 = vmatprep.subr.mxu0 0.0
    %3982 = vmatpush1.msra.mxu0 0.0
    %3983 = vmatprep.subr.mxu0 0.0
    %3984 = vmatpush1.msra.mxu0 0.0
    %3985 = vmatprep.subr.mxu0 0.0
    %3986 = vmatpush1.msra.mxu0 0.0
    %3987 = vmatprep.subr.mxu0 0.0
    %3988 = vmatpush1.msra.mxu0 0.0
    %3989 = vmatprep.subr.mxu0 0.0
    %3990 = vmatpush1.msra.mxu0 0.0
    %3991 = vmatprep.subr.mxu0 0.0
    %3992 = vmatpush1.msra.mxu0 0.0
    %3993 = vmatprep.subr.mxu0 0.0
    %3994 = vmatpush1.msra.mxu0 0.0
    %3995 = vmatprep.subr.mxu0 0.0
    %3996 = vmatpush1.msra.mxu0 0.0
    %3997 = vmatprep.subr.mxu0 0.0
    %3998 = vmatpush1.msra.mxu0 0.0
    %3999 = vmatprep.subr.mxu0 0.0
    %4000 = vmatpush1.msra.mxu0 0.0
    %4001 = vmatprep.subr.mxu0 0.0
    %4002 = vmatpush1.msra.mxu0 0.0
    %4003 = vmatprep.subr.mxu0 0.0
    %4004 = vmatpush1.msra.mxu0 0.0
    %4005 = vmatprep.subr.mxu0 0.0
    %4006 = vmatpush1.msra.mxu0 0.0
    %4007 = vmatprep.subr.mxu0 0.0
    %4008 = vmatpush1.msra.mxu0 0.0
    %4009 = vmatprep.subr.mxu0 0.0
    %4010 = vmatpush1.msra.mxu0 0.0
    %4011 = vmatprep.subr.mxu0 0.0
    %4012 = vmatpush1.msra.mxu0 0.0
    %4013 = vmatprep.subr.mxu0 0.0
    %4014 = vmatpush1.msra.mxu0 0.0
    %4015 = vmatprep.subr.mxu0 0.0
    %4016 = vmatpush1.msra.mxu0 0.0
    %4017 = vmatprep.subr.mxu0 0.0
    %4018 = vmatpush1.msra.mxu0 0.0
    %4019 = vmatprep.subr.mxu0 0.0
    %4020 = vmatpush1.msra.mxu0 0.0
    %4021 = vmatprep.subr.mxu0 0.0
    %4022 = vmatpush1.msra.mxu0 0.0
    %4023 = vmatprep.subr.mxu0 0.0
    %4024 = vmatpush1.msra.mxu0 0.0
    %4025 = vmatprep.subr.mxu0 0.0
    %4026 = vmatpush1.msra.mxu0 0.0
    %4027 = vmatprep.subr.mxu0 0.0
    %4028 = vmatpush1.msra.mxu0 0.0
    %4029 = vmatprep.subr.mxu0 0.0
    %4030 = vmatpush1.msra.mxu0 0.0
    %4031 = vmatprep.mubr.f32.mxu0 0.0
    %4032 = vmatmul.mubr.f32.gmra.mrb[0].mxu0 %v3965
    %v4033 = vpop.f32.mrb[0].mxu0
    %v4034 = vadd.f32 %v3963, %v4033
    %v4035 = vpop.f32.mrb[0].mxu0
    %4036 = vdwg.mxu0
    %v4037 = vtanh.pop %v4034
    %v4039 = vrot.slane %v4037, 1
    %v4041 = vmul.f32 %v4037, %v4039
    %vm4042 = vcmask 253952
    %v4043 = vsel %vm4042, %v4041, 0.0
    %4044 = vadd.xlane.f32.xlu0 %v4043
    %v4045 = vpop.xlane.xlu0 %4044
    %v4046 = vmul.f32 %v4037, %v4037
    %v4047 = vsel %vm4042, %v4046, 0.0
    %4048 = vadd.xlane.f32.xlu0 %v4047
    %v4049 = vpop.xlane.xlu0 %4048
    %v4050 = vrsqrt.pop %v4049
    %v4051 = vmul.f32 %v4049, %v4050
    %vm4052 = vcmp.eq.f32.partialorder %v4049, inf
    %v4053 = vsel %vm4052, %v4049, %v4051
    %vm4054 = vcmp.eq.f32.partialorder %v4049, 0.0
    %v4055 = vand.u32 %v4049, 2147483648
    %v4056 = vsel %vm4054, %v4055, %v4053
    %vm4057 = vcmask 254977
    %v4058 = vsel %vm4057, %v4046, 0.0
    %4059 = vadd.xlane.f32.xlu0 %v4058
    %v4060 = vpop.xlane.xlu0 %4059
    %v4061 = vrsqrt.pop %v4060
    %v4062 = vmul.f32 %v4060, %v4061
    %vm4063 = vcmp.eq.f32.partialorder %v4060, inf
    %v4064 = vsel %vm4063, %v4060, %v4062
    %vm4065 = vcmp.eq.f32.partialorder %v4060, 0.0
    %v4066 = vand.u32 %v4060, 2147483648
    %v4067 = vsel %vm4065, %v4066, %v4064
    %v4069 = vrot.slane %v4067, 1
    %v4071 = vmul.f32 %v4056, %v4069
    %v4072 = vmax.f32 %v4071, 1e-08
    %v4073 = vrcp.pop %v4072
    %v4074 = vmul.f32 %v4045, %v4073
    %vm4075 = vcmask 0
    %4076 = vst.msk [vmem:[#allocation5] sm:$0x1] %vm4075, %v4074
    // Predicated region
    $region42: #{text_similarity.1} parent=1 // pred_check
      _
    $region43: #{text_similarity.1} parent=1 // pred_check_branch
      %4078 = sbr.rel (0) target = $region45
    $region44: #{text_similarity.1} parent=1 // pred_region
      %s4080 = ssub.s32 16, 16
      %4081 = vsyncadd [#allocation3], %s4080
      %s4083 = sshll.u32 [#allocation5], 4
      %s4084 = int_to_ptr.vmem [resolvable:$true] %s4083
      %4086 = dma.vmem_to_hbm [thread:$0]  %s4084, 16, %s9, [#allocation3]
    $region45: #{text_similarity.1} parent=1 // pred_fallthru
      _
    // Predicated region
    $region46: #{text_similarity.1} parent=1 // pred_check
      _
    $region47: #{text_similarity.1} parent=1 // pred_check_branch
      %4088 = sbr.rel (0) target = $region49
    $region48: #{text_similarity.1} parent=1 // pred_region
      %4089 = dma.done [#allocation3], 16
    $region49: #{text_similarity.1} parent=1 // pred_fallthru
      _
    %4090 = vsyncpa [#allocation3], 1
    %4091 = vsyncpa [#allocation4], 1

</llo_original>
